<compile_context>
chip_gen: v5e
topology: v5e:2x2
jax: 0.10.0
libtpu: 0.0.40
codegen_flags: <defaults>
</compile_context>

<pallas_src>
import functools

import jax
import jax.numpy as jnp
import numpy as np
from jax.experimental import pallas as pl
from jax.experimental.pallas import tpu as pltpu


def _round_up(x, m):
    return ((x + m - 1) // m) * m


def _pick_block_b(N, HW, target_rows=256):
    """Largest divisor of N with block_b * H * W <= ~target_rows (always >=1)."""
    max_b = max(1, target_rows // HW)
    best = 1
    for d in range(1, min(N, max_b) + 1):
        if N % d == 0:
            best = d
    return best


# ----------------------------------------------------------------------------
# Fused BRM kernel: one grid step == block_b samples, all intermediates VMEM.
# ----------------------------------------------------------------------------
def _brm_kernel(x1_ref, x2_ref, w1t_ref, w2_ref, b2_ref, w3_ref, b3_ref,
                o_ref, pad_ref, *, B, H, W, C, Cp, OFF, W_pad):
    HW = H * W
    M = B * HW

    # ---- stage 1: x = x1 + x2 (NCHW block, lanes = H*W) ---------------------
    x = x1_ref[...] + x2_ref[...]                                # (B, C, HW) f32

    # channel gate g = sigmoid(conv1_1x1(global_avg_pool(x)))  -- bf16 MXU dot
    mean = jnp.sum(x, axis=2) * (1.0 / HW)                       # (B, C) f32
    g = jax.nn.sigmoid(
        jnp.dot(mean.astype(jnp.bfloat16), w1t_ref[...],
                preferred_element_type=jnp.float32))             # (B, C) f32
    y = x * (1.0 + g[:, :, None])                                # x*g + x

    # CHW -> HWC in VMEM (the wrapper no longer does HBM transpose passes).
    y = jnp.transpose(y, (0, 2, 1)).reshape(B, H, W, C)          # (B, H, W, C)

    # Zero-padded conv scratch.  Re-zeroed every step: cheap next to the two
    # K=9*Cp matmuls, and correct even if the batch axis is core-partitioned
    # (per-core scratch starts uninitialized, so a program_id==0 guard is
    # unsafe under "parallel" semantics).
    pad_ref[...] = jnp.zeros((B, H + 2, W_pad, Cp), jnp.float32)
    # Interior at rows [1, H], cols [OFF, OFF+W): OFF % 8 == 0 keeps the hot
    # interior store and the center-tap read sublane-aligned (unmasked).
    pad_ref[:, 1:H + 1, OFF:OFF + W, :C] = y

    def conv3x3_bias_relu(w_ref, b_ref):
        # im2col over the zero-padded interior.  Channels are padded to
        # Cp (=128) lanes, so the 9-tap concat is lane-aligned and the conv is
        # a single (M, 9*Cp) @ (9*Cp, Cp) MXU matmul (bf16 in, f32 acc).
        taps = [
            pad_ref[:, kh:kh + H, OFF - 1 + kw:OFF - 1 + kw + W, :]
            .reshape(M, Cp).astype(jnp.bfloat16)     # per-tap cast keeps the
            for kh in range(3) for kw in range(3)    # big concat bf16-only
        ]
        patches = jnp.concatenate(taps, axis=-1)                 # (M, 9*Cp)
        acc = jnp.dot(patches, w_ref[...],
                      preferred_element_type=jnp.float32)        # (M, Cp) f32
        # BN scale is folded into w_ref; only bias + ReLU remain.  Padded
        # output channels (>= C) come out exactly 0 (zero weight cols/bias).
        return jnp.maximum(acc + b_ref[...], 0.0)

    # ---- conv2: 3x3 + BN + ReLU --------------------------------------------
    y = conv3x3_bias_relu(w2_ref, b2_ref)                        # (M, Cp)
    pad_ref[:, 1:H + 1, OFF:OFF + W, :] = y.reshape(B, H, W, Cp)

    # ---- conv3: 3x3 + BN + ReLU --------------------------------------------
    y = conv3x3_bias_relu(w3_ref, b3_ref)                        # (M, Cp)

    # HWC -> CHW and store; the out block covers the full (C, H*W) extent so
    # each sample is one contiguous HBM slab.
    out = jnp.transpose(y[:, :C].reshape(B, HW, C), (0, 2, 1))   # (B, C, HW)
    o_ref[...] = out


# ----------------------------------------------------------------------------
# Glue
# ----------------------------------------------------------------------------
def _prep_conv_weights(w_oihw, gamma, beta, rmean, rvar, C, Cp, eps=1e-3):
    """torch (Cout,Cin,3,3) -> im2col (9*Cp, Cp) bf16 with BN scale folded in,
    plus the folded BN bias padded to (1, Cp)."""
    scale = gamma / jnp.sqrt(rvar + eps)                         # (C,)
    bias = beta - rmean * scale                                  # (C,)
    w = jnp.transpose(w_oihw, (2, 3, 1, 0)) * scale[None, None, None, :]
    w = jnp.pad(w, ((0, 0), (0, 0), (0, Cp - C), (0, Cp - C)))   # (3,3,Cp,Cp)
    w = w.reshape(9 * Cp, Cp).astype(jnp.bfloat16)
    b = jnp.pad(bias, (0, Cp - C)).reshape(1, Cp).astype(jnp.float32)
    return w, b


def brm_forward(x1_nchw, x2_nchw, params):
    """BRM.forward.  Inputs NCHW (PyTorch convention), output NCHW."""
    N, C, H, W = x1_nchw.shape
    HW = H * W
    Cp = _round_up(C, 128)                   # lane-padded channel count
    OFF = 8                                  # sublane-aligned interior offset
    W_pad = _round_up(OFF + W + 1, 8)        # width of padded scratch
    block_b = _pick_block_b(N, HW)           # samples per grid step

    # Free reshapes only -- no NCHW<->NHWC transpose passes through HBM.
    x1 = x1_nchw.reshape(N, C, HW).astype(jnp.float32)
    x2 = x2_nchw.reshape(N, C, HW).astype(jnp.float32)

    # conv1 (1x1, no bias): torch (Cout, Cin, 1, 1) -> (Cin, Cout), bf16
    w1t = jnp.transpose(params["w1"].reshape(C, C), (1, 0)).astype(jnp.bfloat16)
    w2, b2 = _prep_conv_weights(params["w2"], params["g2"], params["b2"],
                                params["rm2"], params["rv2"], C, Cp)
    w3, b3 = _prep_conv_weights(params["w3"], params["g3"], params["b3"],
                                params["rm3"], params["rv3"], C, Cp)

    kernel = functools.partial(_brm_kernel, B=block_b, H=H, W=W, C=C, Cp=Cp,
                               OFF=OFF, W_pad=W_pad)
    out = pl.pallas_call(
        kernel,
        out_shape=jax.ShapeDtypeStruct((N, C, HW), jnp.float32),
        grid=(N // block_b,),
        in_specs=[
            pl.BlockSpec((block_b, C, HW), lambda n: (n, 0, 0)),   # x1
            pl.BlockSpec((block_b, C, HW), lambda n: (n, 0, 0)),   # x2
            pl.BlockSpec((C, C), lambda n: (0, 0)),                # W1^T (bf16)
            pl.BlockSpec((9 * Cp, Cp), lambda n: (0, 0)),          # W2 folded
            pl.BlockSpec((1, Cp), lambda n: (0, 0)),               # BN2 bias
            pl.BlockSpec((9 * Cp, Cp), lambda n: (0, 0)),          # W3 folded
            pl.BlockSpec((1, Cp), lambda n: (0, 0)),               # BN3 bias
        ],
        out_specs=pl.BlockSpec((block_b, C, HW), lambda n: (n, 0, 0)),
        scratch_shapes=[pltpu.VMEM((block_b, H + 2, W_pad, Cp), jnp.float32)],
        compiler_params=pltpu.CompilerParams(
            dimension_semantics=("parallel",),
            vmem_limit_bytes=48 * 1024 * 1024,   # safe on v5e/v6e/v7x
        ),
    )(x1, x2, w1t, w2, b2, w3, b3)

    return out.reshape(N, C, H, W)


# ----------------------------------------------------------------------------
# Pure-JAX f32 reference (mirrors the PyTorch module, NCHW end to end)
# ----------------------------------------------------------------------------
def brm_reference(x1, x2, params):
    x1 = x1.astype(jnp.float32)
    x2 = x2.astype(jnp.float32)
    C = x1.shape[1]
    x = x1 + x2
    mean = jnp.mean(x, axis=(2, 3))                               # (N, C)
    g = jax.nn.sigmoid(mean @ params["w1"].reshape(C, C).T)       # (N, C)
    y = x * g[:, :, None, None] + x

    def conv_bn_relu(z, w_oihw, gamma, beta, rmean, rvar):
        z = jax.lax.conv_general_dilated(
            z, w_oihw, (1, 1), "SAME",
            dimension_numbers=("NCHW", "OIHW", "NCHW"))
        z = ((z - rmean[None, :, None, None])
             / jnp.sqrt(rvar[None, :, None, None] + 1e-3)
             * gamma[None, :, None, None] + beta[None, :, None, None])
        return jnp.maximum(z, 0.0)

    y = conv_bn_relu(y, params["w2"], params["g2"], params["b2"],
                     params["rm2"], params["rv2"])
    y = conv_bn_relu(y, params["w3"], params["g3"], params["b3"],
                     params["rm3"], params["rv3"])
    return y


# ----------------------------------------------------------------------------
def make_params(key, C):
    ks = jax.random.split(key, 11)
    return dict(
        w1=jax.random.normal(ks[0], (C, C, 1, 1), jnp.float32) * 0.1,
        w2=jax.random.normal(ks[1], (C, C, 3, 3), jnp.float32) * 0.05,
        g2=1.0 + 0.1 * jax.random.normal(ks[2], (C,), jnp.float32),
        b2=0.1 * jax.random.normal(ks[3], (C,), jnp.float32),
        rm2=0.1 * jax.random.normal(ks[4], (C,), jnp.float32),
        rv2=1.0 + 0.1 * jax.random.uniform(ks[5], (C,), jnp.float32),
        w3=jax.random.normal(ks[6], (C, C, 3, 3), jnp.float32) * 0.05,
        g3=1.0 + 0.1 * jax.random.normal(ks[7], (C,), jnp.float32),
        b3=0.1 * jax.random.normal(ks[8], (C,), jnp.float32),
        rm3=0.1 * jax.random.normal(ks[9], (C,), jnp.float32),
        rv3=1.0 + 0.1 * jax.random.uniform(ks[10], (C,), jnp.float32),
    )


if __name__ == "__main__":
    key = jax.random.PRNGKey(0)
    k1, k2, kp = jax.random.split(key, 3)

    N, C, H, W = 2, 32, 8, 8                        # small NCHW shapes
    x1 = jax.random.normal(k1, (N, C, H, W), jnp.float32)
    x2 = jax.random.normal(k2, (N, C, H, W), jnp.float32)
    params = make_params(kp, C)

    out = jax.block_until_ready(brm_forward(x1, x2, params))
    ref = jax.block_until_ready(brm_reference(x1, x2, params))

    assert out.shape == (N, C, H, W)
    # Tolerance accounts for bf16 conv / gate operands (f32 accumulation) vs.
    # the pure-f32 reference across two stacked 3x3 convs.
    np.testing.assert_allclose(np.asarray(out), np.asarray(ref),
                               rtol=5e-2, atol=5e-2)
    print("KERNEL_OK")
</pallas_src>

<mosaic_0001>
module attributes {stable_mosaic.version = 11 : i64} {
  func.func @_brm_kernel(%arg0: i32, %arg1: memref<2x32x64xf32, #tpu.memory_space<vmem>>, %arg2: memref<2x32x64xf32, #tpu.memory_space<vmem>>, %arg3: memref<32x32xbf16, #tpu.memory_space<vmem>>, %arg4: memref<1152x128xbf16, #tpu.memory_space<vmem>>, %arg5: memref<1x128xf32, #tpu.memory_space<vmem>>, %arg6: memref<1152x128xbf16, #tpu.memory_space<vmem>>, %arg7: memref<1x128xf32, #tpu.memory_space<vmem>>, %arg8: memref<2x32x64xf32, #tpu.memory_space<vmem>>, %arg9: memref<2x10x24x128xf32, #tpu.memory_space<vmem>>) attributes {dimension_semantics = [#tpu.dimension_semantics<parallel>], iteration_bounds = array<i64: 1>, scalar_prefetch = 0 : i64, scratch_operands = 1 : i64, tpu.core_type = #tpu.core_type<tc>, window_params = [{transform_indices = @transform_0, window_bounds = array<i64: 2, 32, 64>}, {transform_indices = @transform_1, window_bounds = array<i64: 2, 32, 64>}, {pipeline_mode = #tpu.pipeline_mode<synchronous>, transform_indices = @transform_2, window_bounds = array<i64: 32, 32>}, {pipeline_mode = #tpu.pipeline_mode<synchronous>, transform_indices = @transform_3, window_bounds = array<i64: 1152, 128>}, {pipeline_mode = #tpu.pipeline_mode<synchronous>, transform_indices = @transform_4, window_bounds = array<i64: 1, 128>}, {pipeline_mode = #tpu.pipeline_mode<synchronous>, transform_indices = @transform_5, window_bounds = array<i64: 1152, 128>}, {pipeline_mode = #tpu.pipeline_mode<synchronous>, transform_indices = @transform_6, window_bounds = array<i64: 1, 128>}, {transform_indices = @transform_7, window_bounds = array<i64: 2, 32, 64>}]} {
    %c0 = arith.constant 0 : index
    %c0_0 = arith.constant 0 : index
    %c0_1 = arith.constant 0 : index
    %0 = vector.load %arg1[%c0, %c0_0, %c0_1] : memref<2x32x64xf32, #tpu.memory_space<vmem>>, vector<2x32x64xf32>
    %c0_2 = arith.constant 0 : index
    %c0_3 = arith.constant 0 : index
    %c0_4 = arith.constant 0 : index
    %1 = vector.load %arg2[%c0_2, %c0_3, %c0_4] : memref<2x32x64xf32, #tpu.memory_space<vmem>>, vector<2x32x64xf32>
    %2 = arith.addf %0, %1 : vector<2x32x64xf32>
    %cst = arith.constant dense<0.000000e+00> : vector<2x32xf32>
    %3 = vector.multi_reduction <add>, %2, %cst [2] : vector<2x32x64xf32> to vector<2x32xf32>
    %cst_5 = arith.constant 1.562500e-02 : f32
    %4 = vector.broadcast %cst_5 : f32 to vector<2x32xf32>
    %5 = arith.mulf %3, %4 : vector<2x32xf32>
    %6 = arith.truncf %5 : vector<2x32xf32> to vector<2x32xbf16>
    %c0_6 = arith.constant 0 : index
    %c0_7 = arith.constant 0 : index
    %7 = vector.load %arg3[%c0_6, %c0_7] : memref<32x32xbf16, #tpu.memory_space<vmem>>, vector<32x32xbf16>
    %cst_8 = arith.constant dense<0.000000e+00> : vector<2x32xf32>
    %8 = tpu.matmul %6, %7, %cst_8 {dimension_numbers = #tpu.dot_dimension_numbers<[1], [0], [0], [1], [0, 0, 1, 1], [], []>} : vector<2x32xbf16>, vector<32x32xbf16>, vector<2x32xf32> -> vector<2x32xf32>
    %9 = arith.negf %8 : vector<2x32xf32>
    %10 = math.exp %9 : vector<2x32xf32>
    %cst_9 = arith.constant 1.000000e+00 : f32
    %11 = vector.broadcast %cst_9 : f32 to vector<2x32xf32>
    %12 = arith.addf %11, %10 : vector<2x32xf32>
    %13 = arith.divf %11, %12 : vector<2x32xf32>
    %14 = vector.shape_cast %13 : vector<2x32xf32> to vector<2x32x1xf32>
    %cst_10 = arith.constant 1.000000e+00 : f32
    %15 = vector.broadcast %cst_10 : f32 to vector<2x32x1xf32>
    %16 = arith.addf %15, %14 : vector<2x32x1xf32>
    %17 = vector.broadcast %16 : vector<2x32x1xf32> to vector<2x32x64xf32>
    %18 = arith.mulf %2, %17 : vector<2x32x64xf32>
    %19 = tpu.transpose %18, [0, 2, 1] : vector<2x32x64xf32> -> vector<2x64x32xf32>
    %20 = vector.shape_cast %19 : vector<2x64x32xf32> to vector<2x8x8x32xf32>
    %cst_11 = arith.constant 0.000000e+00 : f32
    %21 = vector.broadcast %cst_11 : f32 to vector<2x10x24x128xf32>
    %c0_12 = arith.constant 0 : index
    %c0_13 = arith.constant 0 : index
    %c0_14 = arith.constant 0 : index
    %c0_15 = arith.constant 0 : index
    %22 = vector.load %arg9[%c0_12, %c0_13, %c0_14, %c0_15] : memref<2x10x24x128xf32, #tpu.memory_space<vmem>>, vector<2x10x24x128xf32>
    tpu.vector_store %arg9[%c0_12, %c0_13, %c0_14, %c0_15], %21 {strides = array<i32>} : memref<2x10x24x128xf32, #tpu.memory_space<vmem>>, vector<2x10x24x128xf32>,
    %c0_16 = arith.constant 0 : index
    %c1 = arith.constant 1 : index
    %c8 = arith.constant 8 : index
    %c0_17 = arith.constant 0 : index
    %23 = vector.load %arg9[%c0_16, %c1, %c8, %c0_17] : memref<2x10x24x128xf32, #tpu.memory_space<vmem>>, vector<2x8x8x32xf32>
    tpu.vector_store %arg9[%c0_16, %c1, %c8, %c0_17], %20 {strides = array<i32>} : memref<2x10x24x128xf32, #tpu.memory_space<vmem>>, vector<2x8x8x32xf32>,
    %c0_18 = arith.constant 0 : index
    %c0_19 = arith.constant 0 : index
    %c7 = arith.constant 7 : index
    %c0_20 = arith.constant 0 : index
    %24 = vector.load %arg9[%c0_18, %c0_19, %c7, %c0_20] : memref<2x10x24x128xf32, #tpu.memory_space<vmem>>, vector<2x8x8x128xf32>
    %25 = vector.shape_cast %24 : vector<2x8x8x128xf32> to vector<128x128xf32>
    %26 = arith.truncf %25 : vector<128x128xf32> to vector<128x128xbf16>
    %c0_21 = arith.constant 0 : index
    %c0_22 = arith.constant 0 : index
    %c8_23 = arith.constant 8 : index
    %c0_24 = arith.constant 0 : index
    %27 = vector.load %arg9[%c0_21, %c0_22, %c8_23, %c0_24] : memref<2x10x24x128xf32, #tpu.memory_space<vmem>>, vector<2x8x8x128xf32>
    %28 = vector.shape_cast %27 : vector<2x8x8x128xf32> to vector<128x128xf32>
    %29 = arith.truncf %28 : vector<128x128xf32> to vector<128x128xbf16>
    %c0_25 = arith.constant 0 : index
    %c0_26 = arith.constant 0 : index
    %c9 = arith.constant 9 : index
    %c0_27 = arith.constant 0 : index
    %30 = vector.load %arg9[%c0_25, %c0_26, %c9, %c0_27] : memref<2x10x24x128xf32, #tpu.memory_space<vmem>>, vector<2x8x8x128xf32>
    %31 = vector.shape_cast %30 : vector<2x8x8x128xf32> to vector<128x128xf32>
    %32 = arith.truncf %31 : vector<128x128xf32> to vector<128x128xbf16>
    %c0_28 = arith.constant 0 : index
    %c1_29 = arith.constant 1 : index
    %c7_30 = arith.constant 7 : index
    %c0_31 = arith.constant 0 : index
    %33 = vector.load %arg9[%c0_28, %c1_29, %c7_30, %c0_31] : memref<2x10x24x128xf32, #tpu.memory_space<vmem>>, vector<2x8x8x128xf32>
    %34 = vector.shape_cast %33 : vector<2x8x8x128xf32> to vector<128x128xf32>
    %35 = arith.truncf %34 : vector<128x128xf32> to vector<128x128xbf16>
    %c0_32 = arith.constant 0 : index
    %c1_33 = arith.constant 1 : index
    %c8_34 = arith.constant 8 : index
    %c0_35 = arith.constant 0 : index
    %36 = vector.load %arg9[%c0_32, %c1_33, %c8_34, %c0_35] : memref<2x10x24x128xf32, #tpu.memory_space<vmem>>, vector<2x8x8x128xf32>
    %37 = vector.shape_cast %36 : vector<2x8x8x128xf32> to vector<128x128xf32>
    %38 = arith.truncf %37 : vector<128x128xf32> to vector<128x128xbf16>
    %c0_36 = arith.constant 0 : index
    %c1_37 = arith.constant 1 : index
    %c9_38 = arith.constant 9 : index
    %c0_39 = arith.constant 0 : index
    %39 = vector.load %arg9[%c0_36, %c1_37, %c9_38, %c0_39] : memref<2x10x24x128xf32, #tpu.memory_space<vmem>>, vector<2x8x8x128xf32>
    %40 = vector.shape_cast %39 : vector<2x8x8x128xf32> to vector<128x128xf32>
    %41 = arith.truncf %40 : vector<128x128xf32> to vector<128x128xbf16>
    %c0_40 = arith.constant 0 : index
    %c2 = arith.constant 2 : index
    %c7_41 = arith.constant 7 : index
    %c0_42 = arith.constant 0 : index
    %42 = vector.load %arg9[%c0_40, %c2, %c7_41, %c0_42] : memref<2x10x24x128xf32, #tpu.memory_space<vmem>>, vector<2x8x8x128xf32>
    %43 = vector.shape_cast %42 : vector<2x8x8x128xf32> to vector<128x128xf32>
    %44 = arith.truncf %43 : vector<128x128xf32> to vector<128x128xbf16>
    %c0_43 = arith.constant 0 : index
    %c2_44 = arith.constant 2 : index
    %c8_45 = arith.constant 8 : index
    %c0_46 = arith.constant 0 : index
    %45 = vector.load %arg9[%c0_43, %c2_44, %c8_45, %c0_46] : memref<2x10x24x128xf32, #tpu.memory_space<vmem>>, vector<2x8x8x128xf32>
    %46 = vector.shape_cast %45 : vector<2x8x8x128xf32> to vector<128x128xf32>
    %47 = arith.truncf %46 : vector<128x128xf32> to vector<128x128xbf16>
    %c0_47 = arith.constant 0 : index
    %c2_48 = arith.constant 2 : index
    %c9_49 = arith.constant 9 : index
    %c0_50 = arith.constant 0 : index
    %48 = vector.load %arg9[%c0_47, %c2_48, %c9_49, %c0_50] : memref<2x10x24x128xf32, #tpu.memory_space<vmem>>, vector<2x8x8x128xf32>
    %49 = vector.shape_cast %48 : vector<2x8x8x128xf32> to vector<128x128xf32>
    %50 = arith.truncf %49 : vector<128x128xf32> to vector<128x128xbf16>
    %51 = tpu.concatenate %26, %29, %32, %35, %38, %41, %44, %47, %50 in 1 : vector<128x128xbf16>, vector<128x128xbf16>, vector<128x128xbf16>, vector<128x128xbf16>, vector<128x128xbf16>, vector<128x128xbf16>, vector<128x128xbf16>, vector<128x128xbf16>, vector<128x128xbf16> -> vector<128x1152xbf16>
    %c0_51 = arith.constant 0 : index
    %c0_52 = arith.constant 0 : index
    %52 = vector.load %arg4[%c0_51, %c0_52] : memref<1152x128xbf16, #tpu.memory_space<vmem>>, vector<1152x128xbf16>
    %cst_53 = arith.constant dense<0.000000e+00> : vector<128x128xf32>
    %53 = tpu.matmul %51, %52, %cst_53 {dimension_numbers = #tpu.dot_dimension_numbers<[1], [0], [0], [1], [0, 0, 1, 1], [], []>} : vector<128x1152xbf16>, vector<1152x128xbf16>, vector<128x128xf32> -> vector<128x128xf32>
    %c0_54 = arith.constant 0 : index
    %c0_55 = arith.constant 0 : index
    %54 = vector.load %arg5[%c0_54, %c0_55] : memref<1x128xf32, #tpu.memory_space<vmem>>, vector<1x128xf32>
    %55 = vector.broadcast %54 : vector<1x128xf32> to vector<128x128xf32>
    %56 = arith.addf %53, %55 : vector<128x128xf32>
    %cst_56 = arith.constant 0.000000e+00 : f32
    %57 = vector.broadcast %cst_56 : f32 to vector<128x128xf32>
    %58 = arith.maximumf %56, %57 : vector<128x128xf32>
    %59 = vector.shape_cast %58 : vector<128x128xf32> to vector<2x8x8x128xf32>
    %c0_57 = arith.constant 0 : index
    %c1_58 = arith.constant 1 : index
    %c8_59 = arith.constant 8 : index
    %c0_60 = arith.constant 0 : index
    %60 = vector.load %arg9[%c0_57, %c1_58, %c8_59, %c0_60] : memref<2x10x24x128xf32, #tpu.memory_space<vmem>>, vector<2x8x8x128xf32>
    tpu.vector_store %arg9[%c0_57, %c1_58, %c8_59, %c0_60], %59 {strides = array<i32>} : memref<2x10x24x128xf32, #tpu.memory_space<vmem>>, vector<2x8x8x128xf32>,
    %c0_61 = arith.constant 0 : index
    %c0_62 = arith.constant 0 : index
    %c7_63 = arith.constant 7 : index
    %c0_64 = arith.constant 0 : index
    %61 = vector.load %arg9[%c0_61, %c0_62, %c7_63, %c0_64] : memref<2x10x24x128xf32, #tpu.memory_space<vmem>>, vector<2x8x8x128xf32>
    %62 = vector.shape_cast %61 : vector<2x8x8x128xf32> to vector<128x128xf32>
    %63 = arith.truncf %62 : vector<128x128xf32> to vector<128x128xbf16>
    %c0_65 = arith.constant 0 : index
    %c0_66 = arith.constant 0 : index
    %c8_67 = arith.constant 8 : index
    %c0_68 = arith.constant 0 : index
    %64 = vector.load %arg9[%c0_65, %c0_66, %c8_67, %c0_68] : memref<2x10x24x128xf32, #tpu.memory_space<vmem>>, vector<2x8x8x128xf32>
    %65 = vector.shape_cast %64 : vector<2x8x8x128xf32> to vector<128x128xf32>
    %66 = arith.truncf %65 : vector<128x128xf32> to vector<128x128xbf16>
    %c0_69 = arith.constant 0 : index
    %c0_70 = arith.constant 0 : index
    %c9_71 = arith.constant 9 : index
    %c0_72 = arith.constant 0 : index
    %67 = vector.load %arg9[%c0_69, %c0_70, %c9_71, %c0_72] : memref<2x10x24x128xf32, #tpu.memory_space<vmem>>, vector<2x8x8x128xf32>
    %68 = vector.shape_cast %67 : vector<2x8x8x128xf32> to vector<128x128xf32>
    %69 = arith.truncf %68 : vector<128x128xf32> to vector<128x128xbf16>
    %c0_73 = arith.constant 0 : index
    %c1_74 = arith.constant 1 : index
    %c7_75 = arith.constant 7 : index
    %c0_76 = arith.constant 0 : index
    %70 = vector.load %arg9[%c0_73, %c1_74, %c7_75, %c0_76] : memref<2x10x24x128xf32, #tpu.memory_space<vmem>>, vector<2x8x8x128xf32>
    %71 = vector.shape_cast %70 : vector<2x8x8x128xf32> to vector<128x128xf32>
    %72 = arith.truncf %71 : vector<128x128xf32> to vector<128x128xbf16>
    %c0_77 = arith.constant 0 : index
    %c1_78 = arith.constant 1 : index
    %c8_79 = arith.constant 8 : index
    %c0_80 = arith.constant 0 : index
    %73 = vector.load %arg9[%c0_77, %c1_78, %c8_79, %c0_80] : memref<2x10x24x128xf32, #tpu.memory_space<vmem>>, vector<2x8x8x128xf32>
    %74 = vector.shape_cast %73 : vector<2x8x8x128xf32> to vector<128x128xf32>
    %75 = arith.truncf %74 : vector<128x128xf32> to vector<128x128xbf16>
    %c0_81 = arith.constant 0 : index
    %c1_82 = arith.constant 1 : index
    %c9_83 = arith.constant 9 : index
    %c0_84 = arith.constant 0 : index
    %76 = vector.load %arg9[%c0_81, %c1_82, %c9_83, %c0_84] : memref<2x10x24x128xf32, #tpu.memory_space<vmem>>, vector<2x8x8x128xf32>
    %77 = vector.shape_cast %76 : vector<2x8x8x128xf32> to vector<128x128xf32>
    %78 = arith.truncf %77 : vector<128x128xf32> to vector<128x128xbf16>
    %c0_85 = arith.constant 0 : index
    %c2_86 = arith.constant 2 : index
    %c7_87 = arith.constant 7 : index
    %c0_88 = arith.constant 0 : index
    %79 = vector.load %arg9[%c0_85, %c2_86, %c7_87, %c0_88] : memref<2x10x24x128xf32, #tpu.memory_space<vmem>>, vector<2x8x8x128xf32>
    %80 = vector.shape_cast %79 : vector<2x8x8x128xf32> to vector<128x128xf32>
    %81 = arith.truncf %80 : vector<128x128xf32> to vector<128x128xbf16>
    %c0_89 = arith.constant 0 : index
    %c2_90 = arith.constant 2 : index
    %c8_91 = arith.constant 8 : index
    %c0_92 = arith.constant 0 : index
    %82 = vector.load %arg9[%c0_89, %c2_90, %c8_91, %c0_92] : memref<2x10x24x128xf32, #tpu.memory_space<vmem>>, vector<2x8x8x128xf32>
    %83 = vector.shape_cast %82 : vector<2x8x8x128xf32> to vector<128x128xf32>
    %84 = arith.truncf %83 : vector<128x128xf32> to vector<128x128xbf16>
    %c0_93 = arith.constant 0 : index
    %c2_94 = arith.constant 2 : index
    %c9_95 = arith.constant 9 : index
    %c0_96 = arith.constant 0 : index
    %85 = vector.load %arg9[%c0_93, %c2_94, %c9_95, %c0_96] : memref<2x10x24x128xf32, #tpu.memory_space<vmem>>, vector<2x8x8x128xf32>
    %86 = vector.shape_cast %85 : vector<2x8x8x128xf32> to vector<128x128xf32>
    %87 = arith.truncf %86 : vector<128x128xf32> to vector<128x128xbf16>
    %88 = tpu.concatenate %63, %66, %69, %72, %75, %78, %81, %84, %87 in 1 : vector<128x128xbf16>, vector<128x128xbf16>, vector<128x128xbf16>, vector<128x128xbf16>, vector<128x128xbf16>, vector<128x128xbf16>, vector<128x128xbf16>, vector<128x128xbf16>, vector<128x128xbf16> -> vector<128x1152xbf16>
    %c0_97 = arith.constant 0 : index
    %c0_98 = arith.constant 0 : index
    %89 = vector.load %arg6[%c0_97, %c0_98] : memref<1152x128xbf16, #tpu.memory_space<vmem>>, vector<1152x128xbf16>
    %cst_99 = arith.constant dense<0.000000e+00> : vector<128x128xf32>
    %90 = tpu.matmul %88, %89, %cst_99 {dimension_numbers = #tpu.dot_dimension_numbers<[1], [0], [0], [1], [0, 0, 1, 1], [], []>} : vector<128x1152xbf16>, vector<1152x128xbf16>, vector<128x128xf32> -> vector<128x128xf32>
    %c0_100 = arith.constant 0 : index
    %c0_101 = arith.constant 0 : index
    %91 = vector.load %arg7[%c0_100, %c0_101] : memref<1x128xf32, #tpu.memory_space<vmem>>, vector<1x128xf32>
    %92 = vector.broadcast %91 : vector<1x128xf32> to vector<128x128xf32>
    %93 = arith.addf %90, %92 : vector<128x128xf32>
    %cst_102 = arith.constant 0.000000e+00 : f32
    %94 = vector.broadcast %cst_102 : f32 to vector<128x128xf32>
    %95 = arith.maximumf %93, %94 : vector<128x128xf32>
    %96 = vector.extract_strided_slice %95 {offsets = [0, 0], sizes = [128, 32], strides = [1, 1]} : vector<128x128xf32> to vector<128x32xf32>
    %97 = vector.shape_cast %96 : vector<128x32xf32> to vector<2x64x32xf32>
    %98 = tpu.transpose %97, [0, 2, 1] : vector<2x64x32xf32> -> vector<2x32x64xf32>
    %c0_103 = arith.constant 0 : index
    %c0_104 = arith.constant 0 : index
    %c0_105 = arith.constant 0 : index
    %99 = vector.load %arg8[%c0_103, %c0_104, %c0_105] : memref<2x32x64xf32, #tpu.memory_space<vmem>>, vector<2x32x64xf32>
    tpu.vector_store %arg8[%c0_103, %c0_104, %c0_105], %98 {strides = array<i32>} : memref<2x32x64xf32, #tpu.memory_space<vmem>>, vector<2x32x64xf32>,
    return
  }
  func.func @transform_0(%arg0: i32) -> (i32, i32, i32) {
    %c0_i32 = arith.constant 0 : i32
    %c0_i32_0 = arith.constant 0 : i32
    %c0_i32_1 = arith.constant 0 : i32
    return %arg0, %c0_i32, %c0_i32_0 : i32, i32, i32
  }
  func.func @transform_1(%arg0: i32) -> (i32, i32, i32) {
    %c0_i32 = arith.constant 0 : i32
    %c0_i32_0 = arith.constant 0 : i32
    %c0_i32_1 = arith.constant 0 : i32
    return %arg0, %c0_i32, %c0_i32_0 : i32, i32, i32
  }
  func.func @transform_2(%arg0: i32) -> (i32, i32) {
    %c0_i32 = arith.constant 0 : i32
    %c0_i32_0 = arith.constant 0 : i32
    %c0_i32_1 = arith.constant 0 : i32
    return %c0_i32, %c0_i32_0 : i32, i32
  }
  func.func @transform_3(%arg0: i32) -> (i32, i32) {
    %c0_i32 = arith.constant 0 : i32
    %c0_i32_0 = arith.constant 0 : i32
    %c0_i32_1 = arith.constant 0 : i32
    return %c0_i32, %c0_i32_0 : i32, i32
  }
  func.func @transform_4(%arg0: i32) -> (i32, i32) {
    %c0_i32 = arith.constant 0 : i32
    %c0_i32_0 = arith.constant 0 : i32
    %c0_i32_1 = arith.constant 0 : i32
    return %c0_i32, %c0_i32_0 : i32, i32
  }
  func.func @transform_5(%arg0: i32) -> (i32, i32) {
    %c0_i32 = arith.constant 0 : i32
    %c0_i32_0 = arith.constant 0 : i32
    %c0_i32_1 = arith.constant 0 : i32
    return %c0_i32, %c0_i32_0 : i32, i32
  }
  func.func @transform_6(%arg0: i32) -> (i32, i32) {
    %c0_i32 = arith.constant 0 : i32
    %c0_i32_0 = arith.constant 0 : i32
    %c0_i32_1 = arith.constant 0 : i32
    return %c0_i32, %c0_i32_0 : i32, i32
  }
  func.func @transform_7(%arg0: i32) -> (i32, i32, i32) {
    %c0_i32 = arith.constant 0 : i32
    %c0_i32_0 = arith.constant 0 : i32
    %c0_i32_1 = arith.constant 0 : i32
    return %arg0, %c0_i32, %c0_i32_0 : i32, i32, i32
  }
}

</mosaic_0001>

<llo_original>
// kernel: tpu_custom_call.1
$region0: #{tpu_custom_call.1}
  #allocation0 [shape = 'u32[]', space=smem, size = 0x4, offset = 0x4, fixed_abs, tag = 'smem constant byte address 0x4 - core index']
  #allocation1 [shape = 'u32[72,128]{1,0:T(1,128)}', space=vmem, size = 0x9000, scoped, tag = 'internal scratch']
  #allocation2 [shape = 'f32[2,10,24,128]{3,2,1,0:T(8,128)}', space=vmem, size = 0x3c000, scoped, tag = 'scratch operand']
  %s0 = inlined_call_operand.hbm [shape: f32[2,32,64], index: 0, kind: input, shape index: {}]
  %s1 = inlined_call_operand.hbm [shape: f32[2,32,64], index: 1, kind: input, shape index: {}]
  %s2 = inlined_call_operand.hbm [shape: bf16[32,32], index: 2, kind: input, shape index: {}]
  %s3 = inlined_call_operand.hbm [shape: bf16[1152,128], index: 3, kind: input, shape index: {}]
  %s4 = inlined_call_operand.vmem [shape: f32[1,128], index: 4, kind: input, shape index: {}]
  %s5 = inlined_call_operand.hbm [shape: bf16[1152,128], index: 5, kind: input, shape index: {}]
  %s6 = inlined_call_operand.vmem [shape: f32[1,128], index: 6, kind: input, shape index: {}]
  %s7 = inlined_call_operand.hbm [shape: f32[2,32,64], index: 7, kind: output, shape index: {}]
  %s8 = sld [smem:[#allocation0]]
  $region58: #{tpu_custom_call.1} parent=0
    _
  %s10 = ssub.s32 1, %s8
  %s11 = scalar_select 0, %s10, %s8
  $region1: #{tpu_custom_call.1} parent=0
    #allocation3 [shape = 'u8[32768]{0}', space=vmem, size = 0x8000, scoped, tag = 'input window, operand 0, single buffered']
    #allocation4 [shape = 's32[1]{0}', space=sflag, size = 0x4, scoped, tag = 'scoped memory for tpu_custom_call.1']
    #allocation5 [shape = 's32[1]{0}', space=sflag, size = 0x4, scoped, tag = 'scoped memory for tpu_custom_call.1']
    #allocation6 [shape = 'u8[32768]{0}', space=vmem, size = 0x8000, scoped, tag = 'input window, operand 1, single buffered']
    #allocation7 [shape = 's32[1]{0}', space=sflag, size = 0x4, scoped, tag = 'scoped memory for tpu_custom_call.1']
    #allocation8 [shape = 'u8[8192]{0}', space=vmem, size = 0x2000, scoped, tag = 'input window, operand 2, single buffered']
    #allocation9 [shape = 'u8[294912]{0}', space=vmem, size = 0x48000, scoped, tag = 'input window, operand 3, single buffered']
    #allocation10 [shape = 's32[1]{0}', space=sflag, size = 0x4, scoped, tag = 'scoped memory for tpu_custom_call.1']
    #allocation11 [shape = 'u8[294912]{0}', space=vmem, size = 0x48000, scoped, tag = 'input window, operand 5, single buffered']
    #allocation12 [shape = 'u8[32768]{0}', space=vmem, size = 0x8000, scoped, tag = 'output window, operand 0, single buffered']
    %12 = vsyncpa [#allocation4], 0
    %13 = vsyncpa [#allocation7], 0
    %14 = vsyncpa [#allocation10], 0
    %15 = vsyncpa [#allocation5], 0
    // Predicated region
    $region2: #{tpu_custom_call.1} parent=1 // pred_check
      _
    $region3: #{tpu_custom_call.1} parent=1 // pred_check_branch
      %17 = sbr.rel (0) target = $region5
    $region4: #{tpu_custom_call.1} parent=1 // pred_region
      %19 = vsyncadd [#allocation4], 0
      %s20 = sshll.u32 %s0, 4
      %s21 = int_to_ptr.hbm [resolvable:$true] %s20
      %s22 = sshll.u32 [#allocation3], 4
      %s23 = int_to_ptr.vmem [resolvable:$true] %s22
      %28 = dma.hbm_to_vmem [thread:$0]  %s21, 1024, %s23, [#allocation4], 128, 128, 8
    $region5: #{tpu_custom_call.1} parent=1 // pred_fallthru
      _
    // Predicated region
    $region6: #{tpu_custom_call.1} parent=1 // pred_check
      _
    $region7: #{tpu_custom_call.1} parent=1 // pred_check_branch
      %30 = sbr.rel (0) target = $region9
    $region8: #{tpu_custom_call.1} parent=1 // pred_region
      %32 = vsyncadd [#allocation7], 0
      %s33 = sshll.u32 %s1, 4
      %s34 = int_to_ptr.hbm [resolvable:$true] %s33
      %s35 = sshll.u32 [#allocation6], 4
      %s36 = int_to_ptr.vmem [resolvable:$true] %s35
      %41 = dma.hbm_to_vmem [thread:$0]  %s34, 1024, %s36, [#allocation7], 128, 128, 8
    $region9: #{tpu_custom_call.1} parent=1 // pred_fallthru
      _
    // Predicated region
    $region10: #{tpu_custom_call.1} parent=1 // pred_check
      _
    $region11: #{tpu_custom_call.1} parent=1 // pred_check_branch
      %43 = sbr.rel (0) target = $region13
    $region12: #{tpu_custom_call.1} parent=1 // pred_region
      %45 = vsyncadd [#allocation7], 0
      %s46 = sshll.u32 %s2, 4
      %s47 = int_to_ptr.hbm [resolvable:$true] %s46
      %s48 = sshll.u32 [#allocation8], 4
      %s49 = int_to_ptr.vmem [resolvable:$true] %s48
      %54 = dma.hbm_to_vmem [thread:$0]  %s47, 256, %s49, [#allocation7], 64, 64, 4
    $region13: #{tpu_custom_call.1} parent=1 // pred_fallthru
      _
    // Predicated region
    $region14: #{tpu_custom_call.1} parent=1 // pred_check
      _
    $region15: #{tpu_custom_call.1} parent=1 // pred_check_branch
      %56 = sbr.rel (0) target = $region17
    $region16: #{tpu_custom_call.1} parent=1 // pred_region
      %58 = vsyncadd [#allocation10], 0
      %s59 = sshll.u32 %s3, 4
      %s60 = int_to_ptr.hbm [resolvable:$true] %s59
      %s61 = sshll.u32 [#allocation9], 4
      %s62 = int_to_ptr.vmem [resolvable:$true] %s61
      %67 = dma.hbm_to_vmem [thread:$0]  %s60, 9216, %s62, [#allocation10], 64, 64, 4
    $region17: #{tpu_custom_call.1} parent=1 // pred_fallthru
      _
    // Predicated region
    $region18: #{tpu_custom_call.1} parent=1 // pred_check
      _
    $region19: #{tpu_custom_call.1} parent=1 // pred_check_branch
      %69 = sbr.rel (0) target = $region21
    $region20: #{tpu_custom_call.1} parent=1 // pred_region
      _
    $region21: #{tpu_custom_call.1} parent=1 // pred_fallthru
      _
    // Predicated region
    $region22: #{tpu_custom_call.1} parent=1 // pred_check
      _
    $region23: #{tpu_custom_call.1} parent=1 // pred_check_branch
      %71 = sbr.rel (0) target = $region25
    $region24: #{tpu_custom_call.1} parent=1 // pred_region
      %73 = vsyncadd [#allocation10], 0
      %s74 = sshll.u32 %s5, 4
      %s75 = int_to_ptr.hbm [resolvable:$true] %s74
      %s76 = sshll.u32 [#allocation11], 4
      %s77 = int_to_ptr.vmem [resolvable:$true] %s76
      %82 = dma.hbm_to_vmem [thread:$0]  %s75, 9216, %s77, [#allocation10], 64, 64, 4
    $region25: #{tpu_custom_call.1} parent=1 // pred_fallthru
      _
    // Predicated region
    $region26: #{tpu_custom_call.1} parent=1 // pred_check
      _
    $region27: #{tpu_custom_call.1} parent=1 // pred_check_branch
      %84 = sbr.rel (0) target = $region29
    $region28: #{tpu_custom_call.1} parent=1 // pred_region
      _
    $region29: #{tpu_custom_call.1} parent=1 // pred_fallthru
      _
    // Predicated region
    $region30: #{tpu_custom_call.1} parent=1 // pred_check
      _
    $region31: #{tpu_custom_call.1} parent=1 // pred_check_branch
      %86 = sbr.rel (0) target = $region33
    $region32: #{tpu_custom_call.1} parent=1 // pred_region
      %88 = dma.done [#allocation4], 1024
    $region33: #{tpu_custom_call.1} parent=1 // pred_fallthru
      _
    // Predicated region
    $region34: #{tpu_custom_call.1} parent=1 // pred_check
      _
    $region35: #{tpu_custom_call.1} parent=1 // pred_check_branch
      %90 = sbr.rel (0) target = $region37
    $region36: #{tpu_custom_call.1} parent=1 // pred_region
      %92 = dma.done [#allocation7], 1024
    $region37: #{tpu_custom_call.1} parent=1 // pred_fallthru
      _
    // Predicated region
    $region38: #{tpu_custom_call.1} parent=1 // pred_check
      _
    $region39: #{tpu_custom_call.1} parent=1 // pred_check_branch
      %94 = sbr.rel (0) target = $region41
    $region40: #{tpu_custom_call.1} parent=1 // pred_region
      %96 = dma.done [#allocation7], 256
    $region41: #{tpu_custom_call.1} parent=1 // pred_fallthru
      _
    // Predicated region
    $region42: #{tpu_custom_call.1} parent=1 // pred_check
      _
    $region43: #{tpu_custom_call.1} parent=1 // pred_check_branch
      %98 = sbr.rel (0) target = $region45
    $region44: #{tpu_custom_call.1} parent=1 // pred_region
      %100 = dma.done [#allocation10], 9216
    $region45: #{tpu_custom_call.1} parent=1 // pred_fallthru
      _
    // Predicated region
    $region46: #{tpu_custom_call.1} parent=1 // pred_check
      _
    $region47: #{tpu_custom_call.1} parent=1 // pred_check_branch
      %102 = sbr.rel (0) target = $region49
    $region48: #{tpu_custom_call.1} parent=1 // pred_region
      %104 = dma.done [#allocation10], 9216
    $region49: #{tpu_custom_call.1} parent=1 // pred_fallthru
      _
    %v106 = vld [vmem:[#allocation3] sm:$0xff]
    %v107 = vld [vmem:[#allocation3 + $0x8] sm:$0xff]
    %v108 = vld [vmem:[#allocation3 + $0x10] sm:$0xff]
    %v109 = vld [vmem:[#allocation3 + $0x18] sm:$0xff]
    %v110 = vld [vmem:[#allocation3 + $0x20] sm:$0xff]
    %v111 = vld [vmem:[#allocation3 + $0x28] sm:$0xff]
    %v112 = vld [vmem:[#allocation3 + $0x30] sm:$0xff]
    %v113 = vld [vmem:[#allocation3 + $0x38] sm:$0xff]
    %v114 = vld [vmem:[#allocation6] sm:$0xff]
    %v115 = vld [vmem:[#allocation6 + $0x8] sm:$0xff]
    %v116 = vld [vmem:[#allocation6 + $0x10] sm:$0xff]
    %v117 = vld [vmem:[#allocation6 + $0x18] sm:$0xff]
    %v118 = vld [vmem:[#allocation6 + $0x20] sm:$0xff]
    %v119 = vld [vmem:[#allocation6 + $0x28] sm:$0xff]
    %v120 = vld [vmem:[#allocation6 + $0x30] sm:$0xff]
    %v121 = vld [vmem:[#allocation6 + $0x38] sm:$0xff]
    %v122 = vadd.f32 %v106, %v114
    %v123 = vadd.f32 %v107, %v115
    %v124 = vadd.f32 %v108, %v116
    %v125 = vadd.f32 %v109, %v117
    %v126 = vadd.f32 %v110, %v118
    %v127 = vadd.f32 %v111, %v119
    %v128 = vadd.f32 %v112, %v120
    %v129 = vadd.f32 %v113, %v121
    %vm130 = vcmask 523264
    %v131 = vsel %vm130, %v122, 0.0
    %132 = vadd.xlane.f32.xlu0 %v131
    %v133 = vpop.xlane.xlu0 %132
    %v134 = vsel %vm130, %v123, 0.0
    %135 = vadd.xlane.f32.xlu0 %v134
    %v136 = vpop.xlane.xlu0 %135
    %v137 = vsel %vm130, %v124, 0.0
    %138 = vadd.xlane.f32.xlu0 %v137
    %v139 = vpop.xlane.xlu0 %138
    %v140 = vsel %vm130, %v125, 0.0
    %141 = vadd.xlane.f32.xlu0 %v140
    %v142 = vpop.xlane.xlu0 %141
    %v143 = vsel %vm130, %v126, 0.0
    %144 = vadd.xlane.f32.xlu0 %v143
    %v145 = vpop.xlane.xlu0 %144
    %v146 = vsel %vm130, %v127, 0.0
    %147 = vadd.xlane.f32.xlu0 %v146
    %v148 = vpop.xlane.xlu0 %147
    %v149 = vsel %vm130, %v128, 0.0
    %150 = vadd.xlane.f32.xlu0 %v149
    %v151 = vpop.xlane.xlu0 %150
    %v152 = vsel %vm130, %v129, 0.0
    %153 = vadd.xlane.f32.xlu0 %v152
    %v154 = vpop.xlane.xlu0 %153
    %v155 = vmul.f32 %v133, 0.015625
    %v156 = vmul.f32 %v136, 0.015625
    %v157 = vmul.f32 %v139, 0.015625
    %v158 = vmul.f32 %v142, 0.015625
    %v159 = vmul.f32 %v145, 0.015625
    %v160 = vmul.f32 %v148, 0.015625
    %v161 = vmul.f32 %v151, 0.015625
    %v162 = vmul.f32 %v154, 0.015625
    %v163 = vpack.c.bf16 %v156, %v155
    %v164 = vpack.c.bf16 %v158, %v157
    %v165 = vpack.c.bf16 %v160, %v159
    %v166 = vpack.c.bf16 %v162, %v161
    %v167 = vld [vmem:[#allocation8] sm:$0xf]
    %v168 = vld [vmem:[#allocation8 + $0x4] sm:$0xf]
    %v169 = vld [vmem:[#allocation8 + $0x8] sm:$0xf]
    %v170 = vld [vmem:[#allocation8 + $0xc] sm:$0xf]
    %v175 = vunpack.c.l.b16 %v163
    %v176 = vunpack.c.h.b16 %v163
    %v177 = vunpack.c.l.b16 %v164
    %v178 = vunpack.c.h.b16 %v164
    %v179 = vunpack.c.l.b16 %v165
    %v180 = vunpack.c.h.b16 %v165
    %v181 = vunpack.c.l.b16 %v166
    %v182 = vunpack.c.h.b16 %v166
    %v183 = vlaneseq
    %v184 = vand.u32 %v183, 127
    %v185 = vperm.slane %v175, %v184
    %v186 = vadd.s32 %v184, 4294967288
    %v187 = vperm.slane %v176, %v186
    %vm188 = vcmask 130112
    %v189 = vsel %vm188, %v187, %v185
    %v190 = vadd.s32 %v184, 4294967280
    %v191 = vperm.slane %v177, %v190
    %vm192 = vcmask 195712
    %v193 = vsel %vm192, %v191, %v189
    %v194 = vadd.s32 %v184, 4294967272
    %v195 = vperm.slane %v178, %v194
    %vm196 = vcmask 261312
    %v197 = vsel %vm196, %v195, %v193
    %v198 = vperm.slane %v179, %v184
    %v199 = vperm.slane %v180, %v186
    %v200 = vsel %vm188, %v199, %v198
    %v201 = vperm.slane %v181, %v190
    %v202 = vsel %vm192, %v201, %v200
    %v203 = vperm.slane %v182, %v194
    %v204 = vsel %vm196, %v203, %v202
    %vm205 = vcmask 1041409
    %v206 = vsel %vm205, %v204, %v197
    %v207 = vpack.c.b16 %v206, %v206
    %v212 = vunpack.c.l.b16 %v167
    %v213 = vunpack.c.l.b16 %v168
    %v214 = vunpack.c.l.b16 %v169
    %v215 = vunpack.c.l.b16 %v170
    %v216 = vpack.c.b16 %v213, %v212
    %v217 = vpack.c.b16 %v215, %v214
    %vm220 = vcmask 261120
    %v222 = vsel %vm220, %v207, 0
    %224 = vmatpush.bf16.msra.mxu0 0
    %225 = vmatpush.bf16.msra.mxu0 0
    %226 = vmatpush.bf16.msra.mxu0 0
    %227 = vmatpush.bf16.msra.mxu0 0
    %228 = vmatpush.bf16.msra.mxu0 0
    %229 = vmatpush.bf16.msra.mxu0 0
    %230 = vmatpush.bf16.msra.mxu0 %v217
    %231 = vmatpush.bf16.msra.mxu0 %v216
    %232 = vmatmul.bf16.gmra.mxu0 %v222
    %v233 = vpop.f32.mrf.mxu0
    %v234 = vadd.f32 0.0, %v233
    %v235 = vpop.f32.mrf.mxu0
    %236 = vdwg.mxu0
    %v237 = vxor.u32 %v234, 2147483648
    %v238 = vmul.f32 %v237, 1.442695
    %v239 = vpow.pop %v238
    %v240 = vadd.f32 %v239, 1.0
    %v241 = vrcp.pop %v240
    %v242 = vmul.f32 %v240, %v241
    %v243 = vsub.f32 1.0, %v242
    %v244 = vmul.f32 %v241, %v243
    %v245 = vadd.f32 %v241, %v244
    %vm246 = vweird.f32 %v240
    %vm247 = vweird.f32 %v241
    %vm248 = vmor %vm246, %vm247
    %v249 = vsel %vm248, %v241, %v245
    %v250 = vand.u32 2147483647, %v240
    %vm251 = vcmp.eq.f32.partialorder %v250, 8.507059e+37
    %v252 = vand.u32 %v240, 2147483648
    %v253 = vor.u32 1.1754944e-38, %v252
    %v254 = vsel %vm251, %v253, %v249
    %v255 = vmul.f32 1.0, %v254
    %v256 = vperm.slane %v255, 0
    %v257 = vlaneseq
    %v258 = vshrl.u32 %v257, 7
    %260 = vset.pattern.permute.xlu0 %v258
    %261 = vperm.xlu0 %260, %v256
    %v262 = vpop.permute.xlu0 %261
    %v263 = vlaneseq
    %v264 = vshrl.u32 %v263, 7
    %v265 = vadd.s32 %v264, 8
    %266 = vset.pattern.permute.xlu0 %v265
    %267 = vperm.xlu0 %266, %v256
    %v268 = vpop.permute.xlu0 %267
    %v269 = vlaneseq
    %v270 = vshrl.u32 %v269, 7
    %v271 = vadd.s32 %v270, 16
    %272 = vset.pattern.permute.xlu0 %v271
    %273 = vperm.xlu0 %272, %v256
    %v274 = vpop.permute.xlu0 %273
    %v275 = vlaneseq
    %v276 = vshrl.u32 %v275, 7
    %v277 = vadd.s32 %v276, 24
    %278 = vset.pattern.permute.xlu0 %v277
    %279 = vperm.xlu0 %278, %v256
    %v280 = vpop.permute.xlu0 %279
    %v281 = vperm.slane %v255, 1
    %v282 = vlaneseq
    %v283 = vshrl.u32 %v282, 7
    %285 = vset.pattern.permute.xlu0 %v283
    %286 = vperm.xlu0 %285, %v281
    %v287 = vpop.permute.xlu0 %286
    %v288 = vlaneseq
    %v289 = vshrl.u32 %v288, 7
    %v290 = vadd.s32 %v289, 8
    %291 = vset.pattern.permute.xlu0 %v290
    %292 = vperm.xlu0 %291, %v281
    %v293 = vpop.permute.xlu0 %292
    %v294 = vlaneseq
    %v295 = vshrl.u32 %v294, 7
    %v296 = vadd.s32 %v295, 16
    %297 = vset.pattern.permute.xlu0 %v296
    %298 = vperm.xlu0 %297, %v281
    %v299 = vpop.permute.xlu0 %298
    %v300 = vlaneseq
    %v301 = vshrl.u32 %v300, 7
    %v302 = vadd.s32 %v301, 24
    %303 = vset.pattern.permute.xlu0 %v302
    %304 = vperm.xlu0 %303, %v281
    %v305 = vpop.permute.xlu0 %304
    %v306 = vadd.f32 %v262, 1.0
    %v307 = vadd.f32 %v268, 1.0
    %v308 = vadd.f32 %v274, 1.0
    %v309 = vadd.f32 %v280, 1.0
    %v310 = vadd.f32 %v287, 1.0
    %v311 = vadd.f32 %v293, 1.0
    %v312 = vadd.f32 %v299, 1.0
    %v313 = vadd.f32 %v305, 1.0
    %v314 = vmul.f32 %v122, %v306
    %v315 = vmul.f32 %v123, %v307
    %v316 = vmul.f32 %v124, %v308
    %v317 = vmul.f32 %v125, %v309
    %v318 = vmul.f32 %v126, %v310
    %v319 = vmul.f32 %v127, %v311
    %v320 = vmul.f32 %v128, %v312
    %v321 = vmul.f32 %v129, %v313
    %322 = vxpose.xlu0.b32.start [1/16] %v314, 128
    %323 = vxpose.xlu0.b32.cont [2/16] %v315, 128
    %324 = vxpose.xlu0.b32.cont [3/16] %v316, 128
    %325 = vxpose.xlu0.b32.cont [4/16] %v317, 128
    %326 = vxpose.xlu0.b32.cont [5/16] 0.0, 128
    %327 = vxpose.xlu0.b32.cont [6/16] 0.0, 128
    %328 = vxpose.xlu0.b32.cont [7/16] 0.0, 128
    %329 = vxpose.xlu0.b32.cont [8/16] 0.0, 128
    %330 = vxpose.xlu0.b32.cont [9/16] 0.0, 128
    %331 = vxpose.xlu0.b32.cont [10/16] 0.0, 128
    %332 = vxpose.xlu0.b32.cont [11/16] 0.0, 128
    %333 = vxpose.xlu0.b32.cont [12/16] 0.0, 128
    %334 = vxpose.xlu0.b32.cont [13/16] 0.0, 128
    %335 = vxpose.xlu0.b32.cont [14/16] 0.0, 128
    %336 = vxpose.xlu0.b32.cont [15/16] 0.0, 128
    %337 = vxpose.xlu0.b32.end [16/16] 0.0, 128
    %v338 = vpop.trf.xlu0
    %v339 = vpop.trf.xlu0
    %v340 = vpop.trf.xlu0
    %v341 = vpop.trf.xlu0
    %v342 = vpop.trf.xlu0
    %v343 = vpop.trf.xlu0
    %v344 = vpop.trf.xlu0
    %v345 = vpop.trf.xlu0
    %v346 = vpop.trf.xlu0
    %v347 = vpop.trf.xlu0
    %v348 = vpop.trf.xlu0
    %v349 = vpop.trf.xlu0
    %v350 = vpop.trf.xlu0
    %v351 = vpop.trf.xlu0
    %v352 = vpop.trf.xlu0
    %v353 = vpop.trf.xlu0
    %354 = vxpose.xlu0.b32.start [1/16] %v318, 128
    %355 = vxpose.xlu0.b32.cont [2/16] %v319, 128
    %356 = vxpose.xlu0.b32.cont [3/16] %v320, 128
    %357 = vxpose.xlu0.b32.cont [4/16] %v321, 128
    %358 = vxpose.xlu0.b32.cont [5/16] 0.0, 128
    %359 = vxpose.xlu0.b32.cont [6/16] 0.0, 128
    %360 = vxpose.xlu0.b32.cont [7/16] 0.0, 128
    %361 = vxpose.xlu0.b32.cont [8/16] 0.0, 128
    %362 = vxpose.xlu0.b32.cont [9/16] 0.0, 128
    %363 = vxpose.xlu0.b32.cont [10/16] 0.0, 128
    %364 = vxpose.xlu0.b32.cont [11/16] 0.0, 128
    %365 = vxpose.xlu0.b32.cont [12/16] 0.0, 128
    %366 = vxpose.xlu0.b32.cont [13/16] 0.0, 128
    %367 = vxpose.xlu0.b32.cont [14/16] 0.0, 128
    %368 = vxpose.xlu0.b32.cont [15/16] 0.0, 128
    %369 = vxpose.xlu0.b32.end [16/16] 0.0, 128
    %v370 = vpop.trf.xlu0
    %v371 = vpop.trf.xlu0
    %v372 = vpop.trf.xlu0
    %v373 = vpop.trf.xlu0
    %v374 = vpop.trf.xlu0
    %v375 = vpop.trf.xlu0
    %v376 = vpop.trf.xlu0
    %v377 = vpop.trf.xlu0
    %v378 = vpop.trf.xlu0
    %v379 = vpop.trf.xlu0
    %v380 = vpop.trf.xlu0
    %v381 = vpop.trf.xlu0
    %v382 = vpop.trf.xlu0
    %v383 = vpop.trf.xlu0
    %v384 = vpop.trf.xlu0
    %v385 = vpop.trf.xlu0
    %386 = vst [vmem:[#allocation2] sm:$0xff] 0.0
    %387 = vst [vmem:[#allocation2 + $0x8] sm:$0xff] 0.0
    %388 = vst [vmem:[#allocation2 + $0x10] sm:$0xff] 0.0
    %389 = vst [vmem:[#allocation2 + $0x18] sm:$0xff] 0.0
    %390 = vst [vmem:[#allocation2 + $0x20] sm:$0xff] 0.0
    %391 = vst [vmem:[#allocation2 + $0x28] sm:$0xff] 0.0
    %392 = vst [vmem:[#allocation2 + $0x30] sm:$0xff] 0.0
    %393 = vst [vmem:[#allocation2 + $0x38] sm:$0xff] 0.0
    %394 = vst [vmem:[#allocation2 + $0x40] sm:$0xff] 0.0
    %395 = vst [vmem:[#allocation2 + $0x48] sm:$0xff] 0.0
    %396 = vst [vmem:[#allocation2 + $0x50] sm:$0xff] 0.0
    %397 = vst [vmem:[#allocation2 + $0x58] sm:$0xff] 0.0
    %398 = vst [vmem:[#allocation2 + $0x60] sm:$0xff] 0.0
    %399 = vst [vmem:[#allocation2 + $0x68] sm:$0xff] 0.0
    %400 = vst [vmem:[#allocation2 + $0x70] sm:$0xff] 0.0
    %401 = vst [vmem:[#allocation2 + $0x78] sm:$0xff] 0.0
    %402 = vst [vmem:[#allocation2 + $0x80] sm:$0xff] 0.0
    %403 = vst [vmem:[#allocation2 + $0x88] sm:$0xff] 0.0
    %404 = vst [vmem:[#allocation2 + $0x90] sm:$0xff] 0.0
    %405 = vst [vmem:[#allocation2 + $0x98] sm:$0xff] 0.0
    %406 = vst [vmem:[#allocation2 + $0xa0] sm:$0xff] 0.0
    %407 = vst [vmem:[#allocation2 + $0xa8] sm:$0xff] 0.0
    %408 = vst [vmem:[#allocation2 + $0xb0] sm:$0xff] 0.0
    %409 = vst [vmem:[#allocation2 + $0xb8] sm:$0xff] 0.0
    %410 = vst [vmem:[#allocation2 + $0xc0] sm:$0xff] 0.0
    %411 = vst [vmem:[#allocation2 + $0xc8] sm:$0xff] 0.0
    %412 = vst [vmem:[#allocation2 + $0xd0] sm:$0xff] 0.0
    %413 = vst [vmem:[#allocation2 + $0xd8] sm:$0xff] 0.0
    %414 = vst [vmem:[#allocation2 + $0xe0] sm:$0xff] 0.0
    %415 = vst [vmem:[#allocation2 + $0xe8] sm:$0xff] 0.0
    %416 = vst [vmem:[#allocation2 + $0xf0] sm:$0xff] 0.0
    %417 = vst [vmem:[#allocation2 + $0xf8] sm:$0xff] 0.0
    %418 = vst [vmem:[#allocation2 + $0x100] sm:$0xff] 0.0
    %419 = vst [vmem:[#allocation2 + $0x108] sm:$0xff] 0.0
    %420 = vst [vmem:[#allocation2 + $0x110] sm:$0xff] 0.0
    %421 = vst [vmem:[#allocation2 + $0x118] sm:$0xff] 0.0
    %422 = vst [vmem:[#allocation2 + $0x120] sm:$0xff] 0.0
    %423 = vst [vmem:[#allocation2 + $0x128] sm:$0xff] 0.0
    %424 = vst [vmem:[#allocation2 + $0x130] sm:$0xff] 0.0
    %425 = vst [vmem:[#allocation2 + $0x138] sm:$0xff] 0.0
    %426 = vst [vmem:[#allocation2 + $0x140] sm:$0xff] 0.0
    %427 = vst [vmem:[#allocation2 + $0x148] sm:$0xff] 0.0
    %428 = vst [vmem:[#allocation2 + $0x150] sm:$0xff] 0.0
    %429 = vst [vmem:[#allocation2 + $0x158] sm:$0xff] 0.0
    %430 = vst [vmem:[#allocation2 + $0x160] sm:$0xff] 0.0
    %431 = vst [vmem:[#allocation2 + $0x168] sm:$0xff] 0.0
    %432 = vst [vmem:[#allocation2 + $0x170] sm:$0xff] 0.0
    %433 = vst [vmem:[#allocation2 + $0x178] sm:$0xff] 0.0
    %434 = vst [vmem:[#allocation2 + $0x180] sm:$0xff] 0.0
    %435 = vst [vmem:[#allocation2 + $0x188] sm:$0xff] 0.0
    %436 = vst [vmem:[#allocation2 + $0x190] sm:$0xff] 0.0
    %437 = vst [vmem:[#allocation2 + $0x198] sm:$0xff] 0.0
    %438 = vst [vmem:[#allocation2 + $0x1a0] sm:$0xff] 0.0
    %439 = vst [vmem:[#allocation2 + $0x1a8] sm:$0xff] 0.0
    %440 = vst [vmem:[#allocation2 + $0x1b0] sm:$0xff] 0.0
    %441 = vst [vmem:[#allocation2 + $0x1b8] sm:$0xff] 0.0
    %442 = vst [vmem:[#allocation2 + $0x1c0] sm:$0xff] 0.0
    %443 = vst [vmem:[#allocation2 + $0x1c8] sm:$0xff] 0.0
    %444 = vst [vmem:[#allocation2 + $0x1d0] sm:$0xff] 0.0
    %445 = vst [vmem:[#allocation2 + $0x1d8] sm:$0xff] 0.0
    %s446 = scalar_lea.vmem [#allocation2], 24
    %447 = vst.msk [vmem:[%s446 + $0x8] sm:$0xff] %vm220, %v338
    %448 = vst.msk [vmem:[%s446 + $0x20] sm:$0xff] %vm220, %v339
    %449 = vst.msk [vmem:[%s446 + $0x38] sm:$0xff] %vm220, %v340
    %450 = vst.msk [vmem:[%s446 + $0x50] sm:$0xff] %vm220, %v341
    %451 = vst.msk [vmem:[%s446 + $0x68] sm:$0xff] %vm220, %v342
    %452 = vst.msk [vmem:[%s446 + $0x80] sm:$0xff] %vm220, %v343
    %453 = vst.msk [vmem:[%s446 + $0x98] sm:$0xff] %vm220, %v344
    %454 = vst.msk [vmem:[%s446 + $0xb0] sm:$0xff] %vm220, %v345
    %455 = vst.msk [vmem:[%s446 + $0xf8] sm:$0xff] %vm220, %v370
    %456 = vst.msk [vmem:[%s446 + $0x110] sm:$0xff] %vm220, %v371
    %457 = vst.msk [vmem:[%s446 + $0x128] sm:$0xff] %vm220, %v372
    %458 = vst.msk [vmem:[%s446 + $0x140] sm:$0xff] %vm220, %v373
    %459 = vst.msk [vmem:[%s446 + $0x158] sm:$0xff] %vm220, %v374
    %460 = vst.msk [vmem:[%s446 + $0x170] sm:$0xff] %vm220, %v375
    %461 = vst.msk [vmem:[%s446 + $0x188] sm:$0xff] %vm220, %v376
    %462 = vst.msk [vmem:[%s446 + $0x1a0] sm:$0xff] %vm220, %v377
    %v463 = vld [vmem:[#allocation2 + $0x7] sm:$0xff]
    %v464 = vld [vmem:[#allocation2 + $0x1f] sm:$0xff]
    %v465 = vld [vmem:[#allocation2 + $0x37] sm:$0xff]
    %v466 = vld [vmem:[#allocation2 + $0x4f] sm:$0xff]
    %v467 = vld [vmem:[#allocation2 + $0x67] sm:$0xff]
    %v468 = vld [vmem:[#allocation2 + $0x7f] sm:$0xff]
    %v469 = vld [vmem:[#allocation2 + $0x97] sm:$0xff]
    %v470 = vld [vmem:[#allocation2 + $0xaf] sm:$0xff]
    %v471 = vld [vmem:[#allocation2 + $0xf7] sm:$0xff]
    %v472 = vld [vmem:[#allocation2 + $0x10f] sm:$0xff]
    %v473 = vld [vmem:[#allocation2 + $0x127] sm:$0xff]
    %v474 = vld [vmem:[#allocation2 + $0x13f] sm:$0xff]
    %v475 = vld [vmem:[#allocation2 + $0x157] sm:$0xff]
    %v476 = vld [vmem:[#allocation2 + $0x16f] sm:$0xff]
    %v477 = vld [vmem:[#allocation2 + $0x187] sm:$0xff]
    %v478 = vld [vmem:[#allocation2 + $0x19f] sm:$0xff]
    %v479 = vpack.c.bf16 %v463, %v463
    %v480 = vpack.c.bf16 %v464, %v464
    %v481 = vpack.c.bf16 %v465, %v465
    %v482 = vpack.c.bf16 %v466, %v466
    %v483 = vpack.c.bf16 %v467, %v467
    %v484 = vpack.c.bf16 %v468, %v468
    %v485 = vpack.c.bf16 %v469, %v469
    %v486 = vpack.c.bf16 %v470, %v470
    %v487 = vpack.c.bf16 %v471, %v471
    %v488 = vpack.c.bf16 %v472, %v472
    %v489 = vpack.c.bf16 %v473, %v473
    %v490 = vpack.c.bf16 %v474, %v474
    %v491 = vpack.c.bf16 %v475, %v475
    %v492 = vpack.c.bf16 %v476, %v476
    %v493 = vpack.c.bf16 %v477, %v477
    %v494 = vpack.c.bf16 %v478, %v478
    %v495 = vld [vmem:[#allocation2 + $0x8] sm:$0xff]
    %v496 = vld [vmem:[#allocation2 + $0x20] sm:$0xff]
    %v497 = vld [vmem:[#allocation2 + $0x38] sm:$0xff]
    %v498 = vld [vmem:[#allocation2 + $0x50] sm:$0xff]
    %v499 = vld [vmem:[#allocation2 + $0x68] sm:$0xff]
    %v500 = vld [vmem:[#allocation2 + $0x80] sm:$0xff]
    %v501 = vld [vmem:[#allocation2 + $0x98] sm:$0xff]
    %v502 = vld [vmem:[#allocation2 + $0xb0] sm:$0xff]
    %v503 = vld [vmem:[#allocation2 + $0xf8] sm:$0xff]
    %v504 = vld [vmem:[#allocation2 + $0x110] sm:$0xff]
    %v505 = vld [vmem:[#allocation2 + $0x128] sm:$0xff]
    %v506 = vld [vmem:[#allocation2 + $0x140] sm:$0xff]
    %v507 = vld [vmem:[#allocation2 + $0x158] sm:$0xff]
    %v508 = vld [vmem:[#allocation2 + $0x170] sm:$0xff]
    %v509 = vld [vmem:[#allocation2 + $0x188] sm:$0xff]
    %v510 = vld [vmem:[#allocation2 + $0x1a0] sm:$0xff]
    %v511 = vpack.c.bf16 %v495, %v495
    %v512 = vpack.c.bf16 %v496, %v496
    %v513 = vpack.c.bf16 %v497, %v497
    %v514 = vpack.c.bf16 %v498, %v498
    %v515 = vpack.c.bf16 %v499, %v499
    %v516 = vpack.c.bf16 %v500, %v500
    %v517 = vpack.c.bf16 %v501, %v501
    %v518 = vpack.c.bf16 %v502, %v502
    %v519 = vpack.c.bf16 %v503, %v503
    %v520 = vpack.c.bf16 %v504, %v504
    %v521 = vpack.c.bf16 %v505, %v505
    %v522 = vpack.c.bf16 %v506, %v506
    %v523 = vpack.c.bf16 %v507, %v507
    %v524 = vpack.c.bf16 %v508, %v508
    %v525 = vpack.c.bf16 %v509, %v509
    %v526 = vpack.c.bf16 %v510, %v510
    %v527 = vld [vmem:[#allocation2 + $0x9] sm:$0xff]
    %v528 = vld [vmem:[#allocation2 + $0x21] sm:$0xff]
    %v529 = vld [vmem:[#allocation2 + $0x39] sm:$0xff]
    %v530 = vld [vmem:[#allocation2 + $0x51] sm:$0xff]
    %v531 = vld [vmem:[#allocation2 + $0x69] sm:$0xff]
    %v532 = vld [vmem:[#allocation2 + $0x81] sm:$0xff]
    %v533 = vld [vmem:[#allocation2 + $0x99] sm:$0xff]
    %v534 = vld [vmem:[#allocation2 + $0xb1] sm:$0xff]
    %v535 = vld [vmem:[#allocation2 + $0xf9] sm:$0xff]
    %v536 = vld [vmem:[#allocation2 + $0x111] sm:$0xff]
    %v537 = vld [vmem:[#allocation2 + $0x129] sm:$0xff]
    %v538 = vld [vmem:[#allocation2 + $0x141] sm:$0xff]
    %v539 = vld [vmem:[#allocation2 + $0x159] sm:$0xff]
    %v540 = vld [vmem:[#allocation2 + $0x171] sm:$0xff]
    %v541 = vld [vmem:[#allocation2 + $0x189] sm:$0xff]
    %v542 = vld [vmem:[#allocation2 + $0x1a1] sm:$0xff]
    %v543 = vpack.c.bf16 %v527, %v527
    %v544 = vpack.c.bf16 %v528, %v528
    %v545 = vpack.c.bf16 %v529, %v529
    %v546 = vpack.c.bf16 %v530, %v530
    %v547 = vpack.c.bf16 %v531, %v531
    %v548 = vpack.c.bf16 %v532, %v532
    %v549 = vpack.c.bf16 %v533, %v533
    %v550 = vpack.c.bf16 %v534, %v534
    %v551 = vpack.c.bf16 %v535, %v535
    %v552 = vpack.c.bf16 %v536, %v536
    %v553 = vpack.c.bf16 %v537, %v537
    %v554 = vpack.c.bf16 %v538, %v538
    %v555 = vpack.c.bf16 %v539, %v539
    %v556 = vpack.c.bf16 %v540, %v540
    %v557 = vpack.c.bf16 %v541, %v541
    %v558 = vpack.c.bf16 %v542, %v542
    %v559 = vld [vmem:[%s446 + $0x7] sm:$0xff]
    %v560 = vld [vmem:[%s446 + $0x1f] sm:$0xff]
    %v561 = vld [vmem:[%s446 + $0x37] sm:$0xff]
    %v562 = vld [vmem:[%s446 + $0x4f] sm:$0xff]
    %v563 = vld [vmem:[%s446 + $0x67] sm:$0xff]
    %v564 = vld [vmem:[%s446 + $0x7f] sm:$0xff]
    %v565 = vld [vmem:[%s446 + $0x97] sm:$0xff]
    %v566 = vld [vmem:[%s446 + $0xaf] sm:$0xff]
    %v567 = vld [vmem:[%s446 + $0xf7] sm:$0xff]
    %v568 = vld [vmem:[%s446 + $0x10f] sm:$0xff]
    %v569 = vld [vmem:[%s446 + $0x127] sm:$0xff]
    %v570 = vld [vmem:[%s446 + $0x13f] sm:$0xff]
    %v571 = vld [vmem:[%s446 + $0x157] sm:$0xff]
    %v572 = vld [vmem:[%s446 + $0x16f] sm:$0xff]
    %v573 = vld [vmem:[%s446 + $0x187] sm:$0xff]
    %v574 = vld [vmem:[%s446 + $0x19f] sm:$0xff]
    %v575 = vpack.c.bf16 %v559, %v559
    %v576 = vpack.c.bf16 %v560, %v560
    %v577 = vpack.c.bf16 %v561, %v561
    %v578 = vpack.c.bf16 %v562, %v562
    %v579 = vpack.c.bf16 %v563, %v563
    %v580 = vpack.c.bf16 %v564, %v564
    %v581 = vpack.c.bf16 %v565, %v565
    %v582 = vpack.c.bf16 %v566, %v566
    %v583 = vpack.c.bf16 %v567, %v567
    %v584 = vpack.c.bf16 %v568, %v568
    %v585 = vpack.c.bf16 %v569, %v569
    %v586 = vpack.c.bf16 %v570, %v570
    %v587 = vpack.c.bf16 %v571, %v571
    %v588 = vpack.c.bf16 %v572, %v572
    %v589 = vpack.c.bf16 %v573, %v573
    %v590 = vpack.c.bf16 %v574, %v574
    %v591 = vld [vmem:[%s446 + $0x8] sm:$0xff]
    %v592 = vld [vmem:[%s446 + $0x20] sm:$0xff]
    %v593 = vld [vmem:[%s446 + $0x38] sm:$0xff]
    %v594 = vld [vmem:[%s446 + $0x50] sm:$0xff]
    %v595 = vld [vmem:[%s446 + $0x68] sm:$0xff]
    %v596 = vld [vmem:[%s446 + $0x80] sm:$0xff]
    %v597 = vld [vmem:[%s446 + $0x98] sm:$0xff]
    %v598 = vld [vmem:[%s446 + $0xb0] sm:$0xff]
    %v599 = vld [vmem:[%s446 + $0xf8] sm:$0xff]
    %v600 = vld [vmem:[%s446 + $0x110] sm:$0xff]
    %v601 = vld [vmem:[%s446 + $0x128] sm:$0xff]
    %v602 = vld [vmem:[%s446 + $0x140] sm:$0xff]
    %v603 = vld [vmem:[%s446 + $0x158] sm:$0xff]
    %v604 = vld [vmem:[%s446 + $0x170] sm:$0xff]
    %v605 = vld [vmem:[%s446 + $0x188] sm:$0xff]
    %v606 = vld [vmem:[%s446 + $0x1a0] sm:$0xff]
    %v607 = vpack.c.bf16 %v591, %v591
    %v608 = vpack.c.bf16 %v592, %v592
    %v609 = vpack.c.bf16 %v593, %v593
    %v610 = vpack.c.bf16 %v594, %v594
    %v611 = vpack.c.bf16 %v595, %v595
    %v612 = vpack.c.bf16 %v596, %v596
    %v613 = vpack.c.bf16 %v597, %v597
    %v614 = vpack.c.bf16 %v598, %v598
    %v615 = vpack.c.bf16 %v599, %v599
    %v616 = vpack.c.bf16 %v600, %v600
    %v617 = vpack.c.bf16 %v601, %v601
    %v618 = vpack.c.bf16 %v602, %v602
    %v619 = vpack.c.bf16 %v603, %v603
    %v620 = vpack.c.bf16 %v604, %v604
    %v621 = vpack.c.bf16 %v605, %v605
    %v622 = vpack.c.bf16 %v606, %v606
    %v623 = vld [vmem:[%s446 + $0x9] sm:$0xff]
    %v624 = vld [vmem:[%s446 + $0x21] sm:$0xff]
    %v625 = vld [vmem:[%s446 + $0x39] sm:$0xff]
    %v626 = vld [vmem:[%s446 + $0x51] sm:$0xff]
    %v627 = vld [vmem:[%s446 + $0x69] sm:$0xff]
    %v628 = vld [vmem:[%s446 + $0x81] sm:$0xff]
    %v629 = vld [vmem:[%s446 + $0x99] sm:$0xff]
    %v630 = vld [vmem:[%s446 + $0xb1] sm:$0xff]
    %v631 = vld [vmem:[%s446 + $0xf9] sm:$0xff]
    %v632 = vld [vmem:[%s446 + $0x111] sm:$0xff]
    %v633 = vld [vmem:[%s446 + $0x129] sm:$0xff]
    %v634 = vld [vmem:[%s446 + $0x141] sm:$0xff]
    %v635 = vld [vmem:[%s446 + $0x159] sm:$0xff]
    %v636 = vld [vmem:[%s446 + $0x171] sm:$0xff]
    %v637 = vld [vmem:[%s446 + $0x189] sm:$0xff]
    %v638 = vld [vmem:[%s446 + $0x1a1] sm:$0xff]
    %v639 = vpack.c.bf16 %v623, %v623
    %v640 = vpack.c.bf16 %v624, %v624
    %v641 = vpack.c.bf16 %v625, %v625
    %v642 = vpack.c.bf16 %v626, %v626
    %v643 = vpack.c.bf16 %v627, %v627
    %v644 = vpack.c.bf16 %v628, %v628
    %v645 = vpack.c.bf16 %v629, %v629
    %v646 = vpack.c.bf16 %v630, %v630
    %v647 = vpack.c.bf16 %v631, %v631
    %v648 = vpack.c.bf16 %v632, %v632
    %v649 = vpack.c.bf16 %v633, %v633
    %v650 = vpack.c.bf16 %v634, %v634
    %v651 = vpack.c.bf16 %v635, %v635
    %v652 = vpack.c.bf16 %v636, %v636
    %v653 = vpack.c.bf16 %v637, %v637
    %v654 = vpack.c.bf16 %v638, %v638
    %s655 = scalar_lea.vmem [#allocation2], 48
    %v656 = vld [vmem:[%s655 + $0x7] sm:$0xff]
    %v657 = vld [vmem:[%s655 + $0x1f] sm:$0xff]
    %v658 = vld [vmem:[%s655 + $0x37] sm:$0xff]
    %v659 = vld [vmem:[%s655 + $0x4f] sm:$0xff]
    %v660 = vld [vmem:[%s655 + $0x67] sm:$0xff]
    %v661 = vld [vmem:[%s655 + $0x7f] sm:$0xff]
    %v662 = vld [vmem:[%s655 + $0x97] sm:$0xff]
    %v663 = vld [vmem:[%s655 + $0xaf] sm:$0xff]
    %v664 = vld [vmem:[%s655 + $0xf7] sm:$0xff]
    %v665 = vld [vmem:[%s655 + $0x10f] sm:$0xff]
    %v666 = vld [vmem:[%s655 + $0x127] sm:$0xff]
    %v667 = vld [vmem:[%s655 + $0x13f] sm:$0xff]
    %v668 = vld [vmem:[%s655 + $0x157] sm:$0xff]
    %v669 = vld [vmem:[%s655 + $0x16f] sm:$0xff]
    %v670 = vld [vmem:[%s655 + $0x187] sm:$0xff]
    %v671 = vld [vmem:[%s655 + $0x19f] sm:$0xff]
    %v672 = vpack.c.bf16 %v656, %v656
    %v673 = vpack.c.bf16 %v657, %v657
    %v674 = vpack.c.bf16 %v658, %v658
    %v675 = vpack.c.bf16 %v659, %v659
    %v676 = vpack.c.bf16 %v660, %v660
    %v677 = vpack.c.bf16 %v661, %v661
    %v678 = vpack.c.bf16 %v662, %v662
    %v679 = vpack.c.bf16 %v663, %v663
    %v680 = vpack.c.bf16 %v664, %v664
    %v681 = vpack.c.bf16 %v665, %v665
    %v682 = vpack.c.bf16 %v666, %v666
    %v683 = vpack.c.bf16 %v667, %v667
    %v684 = vpack.c.bf16 %v668, %v668
    %v685 = vpack.c.bf16 %v669, %v669
    %v686 = vpack.c.bf16 %v670, %v670
    %v687 = vpack.c.bf16 %v671, %v671
    %v688 = vld [vmem:[%s655 + $0x8] sm:$0xff]
    %v689 = vld [vmem:[%s655 + $0x20] sm:$0xff]
    %v690 = vld [vmem:[%s655 + $0x38] sm:$0xff]
    %v691 = vld [vmem:[%s655 + $0x50] sm:$0xff]
    %v692 = vld [vmem:[%s655 + $0x68] sm:$0xff]
    %v693 = vld [vmem:[%s655 + $0x80] sm:$0xff]
    %v694 = vld [vmem:[%s655 + $0x98] sm:$0xff]
    %v695 = vld [vmem:[%s655 + $0xb0] sm:$0xff]
    %v696 = vld [vmem:[%s655 + $0xf8] sm:$0xff]
    %v697 = vld [vmem:[%s655 + $0x110] sm:$0xff]
    %v698 = vld [vmem:[%s655 + $0x128] sm:$0xff]
    %v699 = vld [vmem:[%s655 + $0x140] sm:$0xff]
    %v700 = vld [vmem:[%s655 + $0x158] sm:$0xff]
    %v701 = vld [vmem:[%s655 + $0x170] sm:$0xff]
    %v702 = vld [vmem:[%s655 + $0x188] sm:$0xff]
    %v703 = vld [vmem:[%s655 + $0x1a0] sm:$0xff]
    %v704 = vpack.c.bf16 %v688, %v688
    %v705 = vpack.c.bf16 %v689, %v689
    %v706 = vpack.c.bf16 %v690, %v690
    %v707 = vpack.c.bf16 %v691, %v691
    %v708 = vpack.c.bf16 %v692, %v692
    %v709 = vpack.c.bf16 %v693, %v693
    %v710 = vpack.c.bf16 %v694, %v694
    %v711 = vpack.c.bf16 %v695, %v695
    %v712 = vpack.c.bf16 %v696, %v696
    %v713 = vpack.c.bf16 %v697, %v697
    %v714 = vpack.c.bf16 %v698, %v698
    %v715 = vpack.c.bf16 %v699, %v699
    %v716 = vpack.c.bf16 %v700, %v700
    %v717 = vpack.c.bf16 %v701, %v701
    %v718 = vpack.c.bf16 %v702, %v702
    %v719 = vpack.c.bf16 %v703, %v703
    %v720 = vld [vmem:[%s655 + $0x9] sm:$0xff]
    %v721 = vld [vmem:[%s655 + $0x21] sm:$0xff]
    %v722 = vld [vmem:[%s655 + $0x39] sm:$0xff]
    %v723 = vld [vmem:[%s655 + $0x51] sm:$0xff]
    %v724 = vld [vmem:[%s655 + $0x69] sm:$0xff]
    %v725 = vld [vmem:[%s655 + $0x81] sm:$0xff]
    %v726 = vld [vmem:[%s655 + $0x99] sm:$0xff]
    %v727 = vld [vmem:[%s655 + $0xb1] sm:$0xff]
    %v728 = vld [vmem:[%s655 + $0xf9] sm:$0xff]
    %v729 = vld [vmem:[%s655 + $0x111] sm:$0xff]
    %v730 = vld [vmem:[%s655 + $0x129] sm:$0xff]
    %v731 = vld [vmem:[%s655 + $0x141] sm:$0xff]
    %v732 = vld [vmem:[%s655 + $0x159] sm:$0xff]
    %v733 = vld [vmem:[%s655 + $0x171] sm:$0xff]
    %v734 = vld [vmem:[%s655 + $0x189] sm:$0xff]
    %v735 = vld [vmem:[%s655 + $0x1a1] sm:$0xff]
    %v736 = vpack.c.bf16 %v720, %v720
    %v737 = vpack.c.bf16 %v721, %v721
    %v738 = vpack.c.bf16 %v722, %v722
    %v739 = vpack.c.bf16 %v723, %v723
    %v740 = vpack.c.bf16 %v724, %v724
    %v741 = vpack.c.bf16 %v725, %v725
    %v742 = vpack.c.bf16 %v726, %v726
    %v743 = vpack.c.bf16 %v727, %v727
    %v744 = vpack.c.bf16 %v728, %v728
    %v745 = vpack.c.bf16 %v729, %v729
    %v746 = vpack.c.bf16 %v730, %v730
    %v747 = vpack.c.bf16 %v731, %v731
    %v748 = vpack.c.bf16 %v732, %v732
    %v749 = vpack.c.bf16 %v733, %v733
    %v750 = vpack.c.bf16 %v734, %v734
    %v751 = vpack.c.bf16 %v735, %v735
    %v768 = vunpack.c.l.b16 %v479
    %v769 = vunpack.c.l.b16 %v480
    %v770 = vunpack.c.l.b16 %v481
    %v771 = vunpack.c.l.b16 %v482
    %v772 = vunpack.c.l.b16 %v483
    %v773 = vunpack.c.l.b16 %v484
    %v774 = vunpack.c.l.b16 %v485
    %v775 = vunpack.c.l.b16 %v486
    %v776 = vunpack.c.l.b16 %v487
    %v777 = vunpack.c.l.b16 %v488
    %v778 = vunpack.c.l.b16 %v489
    %v779 = vunpack.c.l.b16 %v490
    %v780 = vunpack.c.l.b16 %v491
    %v781 = vunpack.c.l.b16 %v492
    %v782 = vunpack.c.l.b16 %v493
    %v783 = vunpack.c.l.b16 %v494
    %v784 = vpack.c.b16 %v769, %v768
    %v785 = vpack.c.b16 %v771, %v770
    %v786 = vpack.c.b16 %v773, %v772
    %v787 = vpack.c.b16 %v775, %v774
    %v788 = vpack.c.b16 %v777, %v776
    %v789 = vpack.c.b16 %v779, %v778
    %v790 = vpack.c.b16 %v781, %v780
    %v791 = vpack.c.b16 %v783, %v782
    %v816 = vunpack.c.l.b16 %v511
    %v817 = vunpack.c.l.b16 %v512
    %v818 = vunpack.c.l.b16 %v513
    %v819 = vunpack.c.l.b16 %v514
    %v820 = vunpack.c.l.b16 %v515
    %v821 = vunpack.c.l.b16 %v516
    %v822 = vunpack.c.l.b16 %v517
    %v823 = vunpack.c.l.b16 %v518
    %v824 = vunpack.c.l.b16 %v519
    %v825 = vunpack.c.l.b16 %v520
    %v826 = vunpack.c.l.b16 %v521
    %v827 = vunpack.c.l.b16 %v522
    %v828 = vunpack.c.l.b16 %v523
    %v829 = vunpack.c.l.b16 %v524
    %v830 = vunpack.c.l.b16 %v525
    %v831 = vunpack.c.l.b16 %v526
    %v832 = vpack.c.b16 %v817, %v816
    %v833 = vpack.c.b16 %v819, %v818
    %v834 = vpack.c.b16 %v821, %v820
    %v835 = vpack.c.b16 %v823, %v822
    %v836 = vpack.c.b16 %v825, %v824
    %v837 = vpack.c.b16 %v827, %v826
    %v838 = vpack.c.b16 %v829, %v828
    %v839 = vpack.c.b16 %v831, %v830
    %v864 = vunpack.c.l.b16 %v543
    %v865 = vunpack.c.l.b16 %v544
    %v866 = vunpack.c.l.b16 %v545
    %v867 = vunpack.c.l.b16 %v546
    %v868 = vunpack.c.l.b16 %v547
    %v869 = vunpack.c.l.b16 %v548
    %v870 = vunpack.c.l.b16 %v549
    %v871 = vunpack.c.l.b16 %v550
    %v872 = vunpack.c.l.b16 %v551
    %v873 = vunpack.c.l.b16 %v552
    %v874 = vunpack.c.l.b16 %v553
    %v875 = vunpack.c.l.b16 %v554
    %v876 = vunpack.c.l.b16 %v555
    %v877 = vunpack.c.l.b16 %v556
    %v878 = vunpack.c.l.b16 %v557
    %v879 = vunpack.c.l.b16 %v558
    %v880 = vpack.c.b16 %v865, %v864
    %v881 = vpack.c.b16 %v867, %v866
    %v882 = vpack.c.b16 %v869, %v868
    %v883 = vpack.c.b16 %v871, %v870
    %v884 = vpack.c.b16 %v873, %v872
    %v885 = vpack.c.b16 %v875, %v874
    %v886 = vpack.c.b16 %v877, %v876
    %v887 = vpack.c.b16 %v879, %v878
    %v912 = vunpack.c.l.b16 %v575
    %v913 = vunpack.c.l.b16 %v576
    %v914 = vunpack.c.l.b16 %v577
    %v915 = vunpack.c.l.b16 %v578
    %v916 = vunpack.c.l.b16 %v579
    %v917 = vunpack.c.l.b16 %v580
    %v918 = vunpack.c.l.b16 %v581
    %v919 = vunpack.c.l.b16 %v582
    %v920 = vunpack.c.l.b16 %v583
    %v921 = vunpack.c.l.b16 %v584
    %v922 = vunpack.c.l.b16 %v585
    %v923 = vunpack.c.l.b16 %v586
    %v924 = vunpack.c.l.b16 %v587
    %v925 = vunpack.c.l.b16 %v588
    %v926 = vunpack.c.l.b16 %v589
    %v927 = vunpack.c.l.b16 %v590
    %v928 = vpack.c.b16 %v913, %v912
    %v929 = vpack.c.b16 %v915, %v914
    %v930 = vpack.c.b16 %v917, %v916
    %v931 = vpack.c.b16 %v919, %v918
    %v932 = vpack.c.b16 %v921, %v920
    %v933 = vpack.c.b16 %v923, %v922
    %v934 = vpack.c.b16 %v925, %v924
    %v935 = vpack.c.b16 %v927, %v926
    %v960 = vunpack.c.l.b16 %v607
    %v961 = vunpack.c.l.b16 %v608
    %v962 = vunpack.c.l.b16 %v609
    %v963 = vunpack.c.l.b16 %v610
    %v964 = vunpack.c.l.b16 %v611
    %v965 = vunpack.c.l.b16 %v612
    %v966 = vunpack.c.l.b16 %v613
    %v967 = vunpack.c.l.b16 %v614
    %v968 = vunpack.c.l.b16 %v615
    %v969 = vunpack.c.l.b16 %v616
    %v970 = vunpack.c.l.b16 %v617
    %v971 = vunpack.c.l.b16 %v618
    %v972 = vunpack.c.l.b16 %v619
    %v973 = vunpack.c.l.b16 %v620
    %v974 = vunpack.c.l.b16 %v621
    %v975 = vunpack.c.l.b16 %v622
    %v976 = vpack.c.b16 %v961, %v960
    %v977 = vpack.c.b16 %v963, %v962
    %v978 = vpack.c.b16 %v965, %v964
    %v979 = vpack.c.b16 %v967, %v966
    %v980 = vpack.c.b16 %v969, %v968
    %v981 = vpack.c.b16 %v971, %v970
    %v982 = vpack.c.b16 %v973, %v972
    %v983 = vpack.c.b16 %v975, %v974
    %v1008 = vunpack.c.l.b16 %v639
    %v1009 = vunpack.c.l.b16 %v640
    %v1010 = vunpack.c.l.b16 %v641
    %v1011 = vunpack.c.l.b16 %v642
    %v1012 = vunpack.c.l.b16 %v643
    %v1013 = vunpack.c.l.b16 %v644
    %v1014 = vunpack.c.l.b16 %v645
    %v1015 = vunpack.c.l.b16 %v646
    %v1016 = vunpack.c.l.b16 %v647
    %v1017 = vunpack.c.l.b16 %v648
    %v1018 = vunpack.c.l.b16 %v649
    %v1019 = vunpack.c.l.b16 %v650
    %v1020 = vunpack.c.l.b16 %v651
    %v1021 = vunpack.c.l.b16 %v652
    %v1022 = vunpack.c.l.b16 %v653
    %v1023 = vunpack.c.l.b16 %v654
    %v1024 = vpack.c.b16 %v1009, %v1008
    %v1025 = vpack.c.b16 %v1011, %v1010
    %v1026 = vpack.c.b16 %v1013, %v1012
    %v1027 = vpack.c.b16 %v1015, %v1014
    %v1028 = vpack.c.b16 %v1017, %v1016
    %v1029 = vpack.c.b16 %v1019, %v1018
    %v1030 = vpack.c.b16 %v1021, %v1020
    %v1031 = vpack.c.b16 %v1023, %v1022
    %v1056 = vunpack.c.l.b16 %v672
    %v1057 = vunpack.c.l.b16 %v673
    %v1058 = vunpack.c.l.b16 %v674
    %v1059 = vunpack.c.l.b16 %v675
    %v1060 = vunpack.c.l.b16 %v676
    %v1061 = vunpack.c.l.b16 %v677
    %v1062 = vunpack.c.l.b16 %v678
    %v1063 = vunpack.c.l.b16 %v679
    %v1064 = vunpack.c.l.b16 %v680
    %v1065 = vunpack.c.l.b16 %v681
    %v1066 = vunpack.c.l.b16 %v682
    %v1067 = vunpack.c.l.b16 %v683
    %v1068 = vunpack.c.l.b16 %v684
    %v1069 = vunpack.c.l.b16 %v685
    %v1070 = vunpack.c.l.b16 %v686
    %v1071 = vunpack.c.l.b16 %v687
    %v1072 = vpack.c.b16 %v1057, %v1056
    %v1073 = vpack.c.b16 %v1059, %v1058
    %v1074 = vpack.c.b16 %v1061, %v1060
    %v1075 = vpack.c.b16 %v1063, %v1062
    %v1076 = vpack.c.b16 %v1065, %v1064
    %v1077 = vpack.c.b16 %v1067, %v1066
    %v1078 = vpack.c.b16 %v1069, %v1068
    %v1079 = vpack.c.b16 %v1071, %v1070
    %v1104 = vunpack.c.l.b16 %v704
    %v1105 = vunpack.c.l.b16 %v705
    %v1106 = vunpack.c.l.b16 %v706
    %v1107 = vunpack.c.l.b16 %v707
    %v1108 = vunpack.c.l.b16 %v708
    %v1109 = vunpack.c.l.b16 %v709
    %v1110 = vunpack.c.l.b16 %v710
    %v1111 = vunpack.c.l.b16 %v711
    %v1112 = vunpack.c.l.b16 %v712
    %v1113 = vunpack.c.l.b16 %v713
    %v1114 = vunpack.c.l.b16 %v714
    %v1115 = vunpack.c.l.b16 %v715
    %v1116 = vunpack.c.l.b16 %v716
    %v1117 = vunpack.c.l.b16 %v717
    %v1118 = vunpack.c.l.b16 %v718
    %v1119 = vunpack.c.l.b16 %v719
    %v1120 = vpack.c.b16 %v1105, %v1104
    %v1121 = vpack.c.b16 %v1107, %v1106
    %v1122 = vpack.c.b16 %v1109, %v1108
    %v1123 = vpack.c.b16 %v1111, %v1110
    %v1124 = vpack.c.b16 %v1113, %v1112
    %v1125 = vpack.c.b16 %v1115, %v1114
    %v1126 = vpack.c.b16 %v1117, %v1116
    %v1127 = vpack.c.b16 %v1119, %v1118
    %v1152 = vunpack.c.l.b16 %v736
    %v1153 = vunpack.c.l.b16 %v737
    %v1154 = vunpack.c.l.b16 %v738
    %v1155 = vunpack.c.l.b16 %v739
    %v1156 = vunpack.c.l.b16 %v740
    %v1157 = vunpack.c.l.b16 %v741
    %v1158 = vunpack.c.l.b16 %v742
    %v1159 = vunpack.c.l.b16 %v743
    %v1160 = vunpack.c.l.b16 %v744
    %v1161 = vunpack.c.l.b16 %v745
    %v1162 = vunpack.c.l.b16 %v746
    %v1163 = vunpack.c.l.b16 %v747
    %v1164 = vunpack.c.l.b16 %v748
    %v1165 = vunpack.c.l.b16 %v749
    %v1166 = vunpack.c.l.b16 %v750
    %v1167 = vunpack.c.l.b16 %v751
    %v1168 = vpack.c.b16 %v1153, %v1152
    %v1169 = vpack.c.b16 %v1155, %v1154
    %v1170 = vpack.c.b16 %v1157, %v1156
    %v1171 = vpack.c.b16 %v1159, %v1158
    %v1172 = vpack.c.b16 %v1161, %v1160
    %v1173 = vpack.c.b16 %v1163, %v1162
    %v1174 = vpack.c.b16 %v1165, %v1164
    %v1175 = vpack.c.b16 %v1167, %v1166
    %v1184 = vld [vmem:[#allocation9] sm:$0xf]
    %v1185 = vld [vmem:[#allocation9 + $0x4] sm:$0xf]
    %v1186 = vld [vmem:[#allocation9 + $0x8] sm:$0xf]
    %v1187 = vld [vmem:[#allocation9 + $0xc] sm:$0xf]
    %v1188 = vld [vmem:[#allocation9 + $0x10] sm:$0xf]
    %v1189 = vld [vmem:[#allocation9 + $0x14] sm:$0xf]
    %v1190 = vld [vmem:[#allocation9 + $0x18] sm:$0xf]
    %v1191 = vld [vmem:[#allocation9 + $0x1c] sm:$0xf]
    %v1192 = vld [vmem:[#allocation9 + $0x20] sm:$0xf]
    %v1193 = vld [vmem:[#allocation9 + $0x24] sm:$0xf]
    %v1194 = vld [vmem:[#allocation9 + $0x28] sm:$0xf]
    %v1195 = vld [vmem:[#allocation9 + $0x2c] sm:$0xf]
    %v1196 = vld [vmem:[#allocation9 + $0x30] sm:$0xf]
    %v1197 = vld [vmem:[#allocation9 + $0x34] sm:$0xf]
    %v1198 = vld [vmem:[#allocation9 + $0x38] sm:$0xf]
    %v1199 = vld [vmem:[#allocation9 + $0x3c] sm:$0xf]
    %v1200 = vld [vmem:[#allocation9 + $0x40] sm:$0xf]
    %v1201 = vld [vmem:[#allocation9 + $0x44] sm:$0xf]
    %v1202 = vld [vmem:[#allocation9 + $0x48] sm:$0xf]
    %v1203 = vld [vmem:[#allocation9 + $0x4c] sm:$0xf]
    %v1204 = vld [vmem:[#allocation9 + $0x50] sm:$0xf]
    %v1205 = vld [vmem:[#allocation9 + $0x54] sm:$0xf]
    %v1206 = vld [vmem:[#allocation9 + $0x58] sm:$0xf]
    %v1207 = vld [vmem:[#allocation9 + $0x5c] sm:$0xf]
    %v1208 = vld [vmem:[#allocation9 + $0x60] sm:$0xf]
    %v1209 = vld [vmem:[#allocation9 + $0x64] sm:$0xf]
    %v1210 = vld [vmem:[#allocation9 + $0x68] sm:$0xf]
    %v1211 = vld [vmem:[#allocation9 + $0x6c] sm:$0xf]
    %v1212 = vld [vmem:[#allocation9 + $0x70] sm:$0xf]
    %v1213 = vld [vmem:[#allocation9 + $0x74] sm:$0xf]
    %v1214 = vld [vmem:[#allocation9 + $0x78] sm:$0xf]
    %v1215 = vld [vmem:[#allocation9 + $0x7c] sm:$0xf]
    %v1216 = vld [vmem:[#allocation9 + $0x80] sm:$0xf]
    %v1217 = vld [vmem:[#allocation9 + $0x84] sm:$0xf]
    %v1218 = vld [vmem:[#allocation9 + $0x88] sm:$0xf]
    %v1219 = vld [vmem:[#allocation9 + $0x8c] sm:$0xf]
    %v1220 = vld [vmem:[#allocation9 + $0x90] sm:$0xf]
    %v1221 = vld [vmem:[#allocation9 + $0x94] sm:$0xf]
    %v1222 = vld [vmem:[#allocation9 + $0x98] sm:$0xf]
    %v1223 = vld [vmem:[#allocation9 + $0x9c] sm:$0xf]
    %v1224 = vld [vmem:[#allocation9 + $0xa0] sm:$0xf]
    %v1225 = vld [vmem:[#allocation9 + $0xa4] sm:$0xf]
    %v1226 = vld [vmem:[#allocation9 + $0xa8] sm:$0xf]
    %v1227 = vld [vmem:[#allocation9 + $0xac] sm:$0xf]
    %v1228 = vld [vmem:[#allocation9 + $0xb0] sm:$0xf]
    %v1229 = vld [vmem:[#allocation9 + $0xb4] sm:$0xf]
    %v1230 = vld [vmem:[#allocation9 + $0xb8] sm:$0xf]
    %v1231 = vld [vmem:[#allocation9 + $0xbc] sm:$0xf]
    %v1232 = vld [vmem:[#allocation9 + $0xc0] sm:$0xf]
    %v1233 = vld [vmem:[#allocation9 + $0xc4] sm:$0xf]
    %v1234 = vld [vmem:[#allocation9 + $0xc8] sm:$0xf]
    %v1235 = vld [vmem:[#allocation9 + $0xcc] sm:$0xf]
    %v1236 = vld [vmem:[#allocation9 + $0xd0] sm:$0xf]
    %v1237 = vld [vmem:[#allocation9 + $0xd4] sm:$0xf]
    %v1238 = vld [vmem:[#allocation9 + $0xd8] sm:$0xf]
    %v1239 = vld [vmem:[#allocation9 + $0xdc] sm:$0xf]
    %v1240 = vld [vmem:[#allocation9 + $0xe0] sm:$0xf]
    %v1241 = vld [vmem:[#allocation9 + $0xe4] sm:$0xf]
    %v1242 = vld [vmem:[#allocation9 + $0xe8] sm:$0xf]
    %v1243 = vld [vmem:[#allocation9 + $0xec] sm:$0xf]
    %v1244 = vld [vmem:[#allocation9 + $0xf0] sm:$0xf]
    %v1245 = vld [vmem:[#allocation9 + $0xf4] sm:$0xf]
    %v1246 = vld [vmem:[#allocation9 + $0xf8] sm:$0xf]
    %v1247 = vld [vmem:[#allocation9 + $0xfc] sm:$0xf]
    %v1248 = vld [vmem:[#allocation9 + $0x100] sm:$0xf]
    %v1249 = vld [vmem:[#allocation9 + $0x104] sm:$0xf]
    %v1250 = vld [vmem:[#allocation9 + $0x108] sm:$0xf]
    %v1251 = vld [vmem:[#allocation9 + $0x10c] sm:$0xf]
    %v1252 = vld [vmem:[#allocation9 + $0x110] sm:$0xf]
    %v1253 = vld [vmem:[#allocation9 + $0x114] sm:$0xf]
    %v1254 = vld [vmem:[#allocation9 + $0x118] sm:$0xf]
    %v1255 = vld [vmem:[#allocation9 + $0x11c] sm:$0xf]
    %v1256 = vld [vmem:[#allocation9 + $0x120] sm:$0xf]
    %v1257 = vld [vmem:[#allocation9 + $0x124] sm:$0xf]
    %v1258 = vld [vmem:[#allocation9 + $0x128] sm:$0xf]
    %v1259 = vld [vmem:[#allocation9 + $0x12c] sm:$0xf]
    %v1260 = vld [vmem:[#allocation9 + $0x130] sm:$0xf]
    %v1261 = vld [vmem:[#allocation9 + $0x134] sm:$0xf]
    %v1262 = vld [vmem:[#allocation9 + $0x138] sm:$0xf]
    %v1263 = vld [vmem:[#allocation9 + $0x13c] sm:$0xf]
    %v1264 = vld [vmem:[#allocation9 + $0x140] sm:$0xf]
    %v1265 = vld [vmem:[#allocation9 + $0x144] sm:$0xf]
    %v1266 = vld [vmem:[#allocation9 + $0x148] sm:$0xf]
    %v1267 = vld [vmem:[#allocation9 + $0x14c] sm:$0xf]
    %v1268 = vld [vmem:[#allocation9 + $0x150] sm:$0xf]
    %v1269 = vld [vmem:[#allocation9 + $0x154] sm:$0xf]
    %v1270 = vld [vmem:[#allocation9 + $0x158] sm:$0xf]
    %v1271 = vld [vmem:[#allocation9 + $0x15c] sm:$0xf]
    %v1272 = vld [vmem:[#allocation9 + $0x160] sm:$0xf]
    %v1273 = vld [vmem:[#allocation9 + $0x164] sm:$0xf]
    %v1274 = vld [vmem:[#allocation9 + $0x168] sm:$0xf]
    %v1275 = vld [vmem:[#allocation9 + $0x16c] sm:$0xf]
    %v1276 = vld [vmem:[#allocation9 + $0x170] sm:$0xf]
    %v1277 = vld [vmem:[#allocation9 + $0x174] sm:$0xf]
    %v1278 = vld [vmem:[#allocation9 + $0x178] sm:$0xf]
    %v1279 = vld [vmem:[#allocation9 + $0x17c] sm:$0xf]
    %v1280 = vld [vmem:[#allocation9 + $0x180] sm:$0xf]
    %v1281 = vld [vmem:[#allocation9 + $0x184] sm:$0xf]
    %v1282 = vld [vmem:[#allocation9 + $0x188] sm:$0xf]
    %v1283 = vld [vmem:[#allocation9 + $0x18c] sm:$0xf]
    %v1284 = vld [vmem:[#allocation9 + $0x190] sm:$0xf]
    %v1285 = vld [vmem:[#allocation9 + $0x194] sm:$0xf]
    %v1286 = vld [vmem:[#allocation9 + $0x198] sm:$0xf]
    %v1287 = vld [vmem:[#allocation9 + $0x19c] sm:$0xf]
    %v1288 = vld [vmem:[#allocation9 + $0x1a0] sm:$0xf]
    %v1289 = vld [vmem:[#allocation9 + $0x1a4] sm:$0xf]
    %v1290 = vld [vmem:[#allocation9 + $0x1a8] sm:$0xf]
    %v1291 = vld [vmem:[#allocation9 + $0x1ac] sm:$0xf]
    %v1292 = vld [vmem:[#allocation9 + $0x1b0] sm:$0xf]
    %v1293 = vld [vmem:[#allocation9 + $0x1b4] sm:$0xf]
    %v1294 = vld [vmem:[#allocation9 + $0x1b8] sm:$0xf]
    %v1295 = vld [vmem:[#allocation9 + $0x1bc] sm:$0xf]
    %v1296 = vld [vmem:[#allocation9 + $0x1c0] sm:$0xf]
    %v1297 = vld [vmem:[#allocation9 + $0x1c4] sm:$0xf]
    %v1298 = vld [vmem:[#allocation9 + $0x1c8] sm:$0xf]
    %v1299 = vld [vmem:[#allocation9 + $0x1cc] sm:$0xf]
    %v1300 = vld [vmem:[#allocation9 + $0x1d0] sm:$0xf]
    %v1301 = vld [vmem:[#allocation9 + $0x1d4] sm:$0xf]
    %v1302 = vld [vmem:[#allocation9 + $0x1d8] sm:$0xf]
    %v1303 = vld [vmem:[#allocation9 + $0x1dc] sm:$0xf]
    %v1304 = vld [vmem:[#allocation9 + $0x1e0] sm:$0xf]
    %v1305 = vld [vmem:[#allocation9 + $0x1e4] sm:$0xf]
    %v1306 = vld [vmem:[#allocation9 + $0x1e8] sm:$0xf]
    %v1307 = vld [vmem:[#allocation9 + $0x1ec] sm:$0xf]
    %v1308 = vld [vmem:[#allocation9 + $0x1f0] sm:$0xf]
    %v1309 = vld [vmem:[#allocation9 + $0x1f4] sm:$0xf]
    %v1310 = vld [vmem:[#allocation9 + $0x1f8] sm:$0xf]
    %v1311 = vld [vmem:[#allocation9 + $0x1fc] sm:$0xf]
    %v1312 = vld [vmem:[#allocation9 + $0x200] sm:$0xf]
    %v1313 = vld [vmem:[#allocation9 + $0x204] sm:$0xf]
    %v1314 = vld [vmem:[#allocation9 + $0x208] sm:$0xf]
    %v1315 = vld [vmem:[#allocation9 + $0x20c] sm:$0xf]
    %v1316 = vld [vmem:[#allocation9 + $0x210] sm:$0xf]
    %v1317 = vld [vmem:[#allocation9 + $0x214] sm:$0xf]
    %v1318 = vld [vmem:[#allocation9 + $0x218] sm:$0xf]
    %v1319 = vld [vmem:[#allocation9 + $0x21c] sm:$0xf]
    %v1320 = vld [vmem:[#allocation9 + $0x220] sm:$0xf]
    %v1321 = vld [vmem:[#allocation9 + $0x224] sm:$0xf]
    %v1322 = vld [vmem:[#allocation9 + $0x228] sm:$0xf]
    %v1323 = vld [vmem:[#allocation9 + $0x22c] sm:$0xf]
    %v1324 = vld [vmem:[#allocation9 + $0x230] sm:$0xf]
    %v1325 = vld [vmem:[#allocation9 + $0x234] sm:$0xf]
    %v1326 = vld [vmem:[#allocation9 + $0x238] sm:$0xf]
    %v1327 = vld [vmem:[#allocation9 + $0x23c] sm:$0xf]
    %v1328 = vld [vmem:[%s4] sm:$0x1]
    %v1330 = vperm.slane %v1328, 0
    %v1476 = vunpack.c.l.b16 %v1184
    %v1477 = vunpack.c.l.b16 %v1185
    %v1478 = vunpack.c.l.b16 %v1186
    %v1479 = vunpack.c.l.b16 %v1187
    %v1480 = vunpack.c.l.b16 %v1188
    %v1481 = vunpack.c.l.b16 %v1189
    %v1482 = vunpack.c.l.b16 %v1190
    %v1483 = vunpack.c.l.b16 %v1191
    %v1484 = vunpack.c.l.b16 %v1192
    %v1485 = vunpack.c.l.b16 %v1193
    %v1486 = vunpack.c.l.b16 %v1194
    %v1487 = vunpack.c.l.b16 %v1195
    %v1488 = vunpack.c.l.b16 %v1196
    %v1489 = vunpack.c.l.b16 %v1197
    %v1490 = vunpack.c.l.b16 %v1198
    %v1491 = vunpack.c.l.b16 %v1199
    %v1492 = vunpack.c.l.b16 %v1200
    %v1493 = vunpack.c.l.b16 %v1201
    %v1494 = vunpack.c.l.b16 %v1202
    %v1495 = vunpack.c.l.b16 %v1203
    %v1496 = vunpack.c.l.b16 %v1204
    %v1497 = vunpack.c.l.b16 %v1205
    %v1498 = vunpack.c.l.b16 %v1206
    %v1499 = vunpack.c.l.b16 %v1207
    %v1500 = vunpack.c.l.b16 %v1208
    %v1501 = vunpack.c.l.b16 %v1209
    %v1502 = vunpack.c.l.b16 %v1210
    %v1503 = vunpack.c.l.b16 %v1211
    %v1504 = vunpack.c.l.b16 %v1212
    %v1505 = vunpack.c.l.b16 %v1213
    %v1506 = vunpack.c.l.b16 %v1214
    %v1507 = vunpack.c.l.b16 %v1215
    %v1508 = vunpack.c.l.b16 %v1216
    %v1509 = vunpack.c.l.b16 %v1217
    %v1510 = vunpack.c.l.b16 %v1218
    %v1511 = vunpack.c.l.b16 %v1219
    %v1512 = vunpack.c.l.b16 %v1220
    %v1513 = vunpack.c.l.b16 %v1221
    %v1514 = vunpack.c.l.b16 %v1222
    %v1515 = vunpack.c.l.b16 %v1223
    %v1516 = vunpack.c.l.b16 %v1224
    %v1517 = vunpack.c.l.b16 %v1225
    %v1518 = vunpack.c.l.b16 %v1226
    %v1519 = vunpack.c.l.b16 %v1227
    %v1520 = vunpack.c.l.b16 %v1228
    %v1521 = vunpack.c.l.b16 %v1229
    %v1522 = vunpack.c.l.b16 %v1230
    %v1523 = vunpack.c.l.b16 %v1231
    %v1524 = vunpack.c.l.b16 %v1232
    %v1525 = vunpack.c.l.b16 %v1233
    %v1526 = vunpack.c.l.b16 %v1234
    %v1527 = vunpack.c.l.b16 %v1235
    %v1528 = vunpack.c.l.b16 %v1236
    %v1529 = vunpack.c.l.b16 %v1237
    %v1530 = vunpack.c.l.b16 %v1238
    %v1531 = vunpack.c.l.b16 %v1239
    %v1532 = vunpack.c.l.b16 %v1240
    %v1533 = vunpack.c.l.b16 %v1241
    %v1534 = vunpack.c.l.b16 %v1242
    %v1535 = vunpack.c.l.b16 %v1243
    %v1536 = vunpack.c.l.b16 %v1244
    %v1537 = vunpack.c.l.b16 %v1245
    %v1538 = vunpack.c.l.b16 %v1246
    %v1539 = vunpack.c.l.b16 %v1247
    %v1540 = vunpack.c.l.b16 %v1248
    %v1541 = vunpack.c.l.b16 %v1249
    %v1542 = vunpack.c.l.b16 %v1250
    %v1543 = vunpack.c.l.b16 %v1251
    %v1544 = vunpack.c.l.b16 %v1252
    %v1545 = vunpack.c.l.b16 %v1253
    %v1546 = vunpack.c.l.b16 %v1254
    %v1547 = vunpack.c.l.b16 %v1255
    %v1548 = vunpack.c.l.b16 %v1256
    %v1549 = vunpack.c.l.b16 %v1257
    %v1550 = vunpack.c.l.b16 %v1258
    %v1551 = vunpack.c.l.b16 %v1259
    %v1552 = vunpack.c.l.b16 %v1260
    %v1553 = vunpack.c.l.b16 %v1261
    %v1554 = vunpack.c.l.b16 %v1262
    %v1555 = vunpack.c.l.b16 %v1263
    %v1556 = vunpack.c.l.b16 %v1264
    %v1557 = vunpack.c.l.b16 %v1265
    %v1558 = vunpack.c.l.b16 %v1266
    %v1559 = vunpack.c.l.b16 %v1267
    %v1560 = vunpack.c.l.b16 %v1268
    %v1561 = vunpack.c.l.b16 %v1269
    %v1562 = vunpack.c.l.b16 %v1270
    %v1563 = vunpack.c.l.b16 %v1271
    %v1564 = vunpack.c.l.b16 %v1272
    %v1565 = vunpack.c.l.b16 %v1273
    %v1566 = vunpack.c.l.b16 %v1274
    %v1567 = vunpack.c.l.b16 %v1275
    %v1568 = vunpack.c.l.b16 %v1276
    %v1569 = vunpack.c.l.b16 %v1277
    %v1570 = vunpack.c.l.b16 %v1278
    %v1571 = vunpack.c.l.b16 %v1279
    %v1572 = vunpack.c.l.b16 %v1280
    %v1573 = vunpack.c.l.b16 %v1281
    %v1574 = vunpack.c.l.b16 %v1282
    %v1575 = vunpack.c.l.b16 %v1283
    %v1576 = vunpack.c.l.b16 %v1284
    %v1577 = vunpack.c.l.b16 %v1285
    %v1578 = vunpack.c.l.b16 %v1286
    %v1579 = vunpack.c.l.b16 %v1287
    %v1580 = vunpack.c.l.b16 %v1288
    %v1581 = vunpack.c.l.b16 %v1289
    %v1582 = vunpack.c.l.b16 %v1290
    %v1583 = vunpack.c.l.b16 %v1291
    %v1584 = vunpack.c.l.b16 %v1292
    %v1585 = vunpack.c.l.b16 %v1293
    %v1586 = vunpack.c.l.b16 %v1294
    %v1587 = vunpack.c.l.b16 %v1295
    %v1588 = vunpack.c.l.b16 %v1296
    %v1589 = vunpack.c.l.b16 %v1297
    %v1590 = vunpack.c.l.b16 %v1298
    %v1591 = vunpack.c.l.b16 %v1299
    %v1592 = vunpack.c.l.b16 %v1300
    %v1593 = vunpack.c.l.b16 %v1301
    %v1594 = vunpack.c.l.b16 %v1302
    %v1595 = vunpack.c.l.b16 %v1303
    %v1596 = vunpack.c.l.b16 %v1304
    %v1597 = vunpack.c.l.b16 %v1305
    %v1598 = vunpack.c.l.b16 %v1306
    %v1599 = vunpack.c.l.b16 %v1307
    %v1600 = vunpack.c.l.b16 %v1308
    %v1601 = vunpack.c.l.b16 %v1309
    %v1602 = vunpack.c.l.b16 %v1310
    %v1603 = vunpack.c.l.b16 %v1311
    %v1604 = vunpack.c.l.b16 %v1312
    %v1605 = vunpack.c.l.b16 %v1313
    %v1606 = vunpack.c.l.b16 %v1314
    %v1607 = vunpack.c.l.b16 %v1315
    %v1608 = vunpack.c.l.b16 %v1316
    %v1609 = vunpack.c.l.b16 %v1317
    %v1610 = vunpack.c.l.b16 %v1318
    %v1611 = vunpack.c.l.b16 %v1319
    %v1612 = vunpack.c.l.b16 %v1320
    %v1613 = vunpack.c.l.b16 %v1321
    %v1614 = vunpack.c.l.b16 %v1322
    %v1615 = vunpack.c.l.b16 %v1323
    %v1616 = vunpack.c.l.b16 %v1324
    %v1617 = vunpack.c.l.b16 %v1325
    %v1618 = vunpack.c.l.b16 %v1326
    %v1619 = vunpack.c.l.b16 %v1327
    %v1620 = vpack.c.b16 %v1477, %v1476
    %v1621 = vpack.c.b16 %v1479, %v1478
    %v1622 = vpack.c.b16 %v1481, %v1480
    %v1623 = vpack.c.b16 %v1483, %v1482
    %v1624 = vpack.c.b16 %v1485, %v1484
    %v1625 = vpack.c.b16 %v1487, %v1486
    %v1626 = vpack.c.b16 %v1489, %v1488
    %v1627 = vpack.c.b16 %v1491, %v1490
    %v1628 = vpack.c.b16 %v1493, %v1492
    %v1629 = vpack.c.b16 %v1495, %v1494
    %v1630 = vpack.c.b16 %v1497, %v1496
    %v1631 = vpack.c.b16 %v1499, %v1498
    %v1632 = vpack.c.b16 %v1501, %v1500
    %v1633 = vpack.c.b16 %v1503, %v1502
    %v1634 = vpack.c.b16 %v1505, %v1504
    %v1635 = vpack.c.b16 %v1507, %v1506
    %v1636 = vpack.c.b16 %v1509, %v1508
    %v1637 = vpack.c.b16 %v1511, %v1510
    %v1638 = vpack.c.b16 %v1513, %v1512
    %v1639 = vpack.c.b16 %v1515, %v1514
    %v1640 = vpack.c.b16 %v1517, %v1516
    %v1641 = vpack.c.b16 %v1519, %v1518
    %v1642 = vpack.c.b16 %v1521, %v1520
    %v1643 = vpack.c.b16 %v1523, %v1522
    %v1644 = vpack.c.b16 %v1525, %v1524
    %v1645 = vpack.c.b16 %v1527, %v1526
    %v1646 = vpack.c.b16 %v1529, %v1528
    %v1647 = vpack.c.b16 %v1531, %v1530
    %v1648 = vpack.c.b16 %v1533, %v1532
    %v1649 = vpack.c.b16 %v1535, %v1534
    %v1650 = vpack.c.b16 %v1537, %v1536
    %v1651 = vpack.c.b16 %v1539, %v1538
    %v1652 = vpack.c.b16 %v1541, %v1540
    %v1653 = vpack.c.b16 %v1543, %v1542
    %v1654 = vpack.c.b16 %v1545, %v1544
    %v1655 = vpack.c.b16 %v1547, %v1546
    %v1656 = vpack.c.b16 %v1549, %v1548
    %v1657 = vpack.c.b16 %v1551, %v1550
    %v1658 = vpack.c.b16 %v1553, %v1552
    %v1659 = vpack.c.b16 %v1555, %v1554
    %v1660 = vpack.c.b16 %v1557, %v1556
    %v1661 = vpack.c.b16 %v1559, %v1558
    %v1662 = vpack.c.b16 %v1561, %v1560
    %v1663 = vpack.c.b16 %v1563, %v1562
    %v1664 = vpack.c.b16 %v1565, %v1564
    %v1665 = vpack.c.b16 %v1567, %v1566
    %v1666 = vpack.c.b16 %v1569, %v1568
    %v1667 = vpack.c.b16 %v1571, %v1570
    %v1668 = vpack.c.b16 %v1573, %v1572
    %v1669 = vpack.c.b16 %v1575, %v1574
    %v1670 = vpack.c.b16 %v1577, %v1576
    %v1671 = vpack.c.b16 %v1579, %v1578
    %v1672 = vpack.c.b16 %v1581, %v1580
    %v1673 = vpack.c.b16 %v1583, %v1582
    %v1674 = vpack.c.b16 %v1585, %v1584
    %v1675 = vpack.c.b16 %v1587, %v1586
    %v1676 = vpack.c.b16 %v1589, %v1588
    %v1677 = vpack.c.b16 %v1591, %v1590
    %v1678 = vpack.c.b16 %v1593, %v1592
    %v1679 = vpack.c.b16 %v1595, %v1594
    %v1680 = vpack.c.b16 %v1597, %v1596
    %v1681 = vpack.c.b16 %v1599, %v1598
    %v1682 = vpack.c.b16 %v1601, %v1600
    %v1683 = vpack.c.b16 %v1603, %v1602
    %v1684 = vpack.c.b16 %v1605, %v1604
    %v1685 = vpack.c.b16 %v1607, %v1606
    %v1686 = vpack.c.b16 %v1609, %v1608
    %v1687 = vpack.c.b16 %v1611, %v1610
    %v1688 = vpack.c.b16 %v1613, %v1612
    %v1689 = vpack.c.b16 %v1615, %v1614
    %v1690 = vpack.c.b16 %v1617, %v1616
    %v1691 = vpack.c.b16 %v1619, %v1618
    %1764 = vmatpush.bf16.msra.mxu0 %v1627
    %1765 = vmatpush.bf16.msra.mxu0 %v1626
    %1766 = vmatpush.bf16.msra.mxu0 %v1625
    %1767 = vmatpush.bf16.msra.mxu0 %v1624
    %1768 = vmatpush.bf16.msra.mxu0 %v1623
    %1769 = vmatpush.bf16.msra.mxu0 %v1622
    %1770 = vmatpush.bf16.msra.mxu0 %v1621
    %1771 = vmatpush.bf16.msra.mxu0 %v1620
    %1772 = vmatmul.bf16.gmra.mxu0 %v784
    %v1773 = vpop.f32.mrf.mxu0
    %v1774 = vadd.f32 %v1330, %v1773
    %v1775 = vpop.f32.mrf.mxu0
    %v1776 = vadd.f32 %v1330, %v1775
    %1777 = vmatmul.bf16.gmra.mxu0 %v785
    %v1778 = vpop.f32.mrf.mxu0
    %v1779 = vadd.f32 %v1330, %v1778
    %v1780 = vpop.f32.mrf.mxu0
    %v1781 = vadd.f32 %v1330, %v1780
    %1782 = vmatmul.bf16.gmra.mxu0 %v786
    %v1783 = vpop.f32.mrf.mxu0
    %v1784 = vadd.f32 %v1330, %v1783
    %v1785 = vpop.f32.mrf.mxu0
    %v1786 = vadd.f32 %v1330, %v1785
    %1787 = vmatmul.bf16.gmra.mxu0 %v787
    %v1788 = vpop.f32.mrf.mxu0
    %v1789 = vadd.f32 %v1330, %v1788
    %v1790 = vpop.f32.mrf.mxu0
    %v1791 = vadd.f32 %v1330, %v1790
    %1792 = vmatmul.bf16.gmra.mxu0 %v788
    %v1793 = vpop.f32.mrf.mxu0
    %v1794 = vadd.f32 %v1330, %v1793
    %v1795 = vpop.f32.mrf.mxu0
    %v1796 = vadd.f32 %v1330, %v1795
    %1797 = vmatmul.bf16.gmra.mxu0 %v789
    %v1798 = vpop.f32.mrf.mxu0
    %v1799 = vadd.f32 %v1330, %v1798
    %v1800 = vpop.f32.mrf.mxu0
    %v1801 = vadd.f32 %v1330, %v1800
    %1802 = vmatmul.bf16.gmra.mxu0 %v790
    %v1803 = vpop.f32.mrf.mxu0
    %v1804 = vadd.f32 %v1330, %v1803
    %v1805 = vpop.f32.mrf.mxu0
    %v1806 = vadd.f32 %v1330, %v1805
    %1807 = vmatmul.bf16.gmra.mxu0 %v791
    %v1808 = vpop.f32.mrf.mxu0
    %v1809 = vadd.f32 %v1330, %v1808
    %v1810 = vpop.f32.mrf.mxu0
    %v1811 = vadd.f32 %v1330, %v1810
    %1812 = vdwg.mxu0
    %1813 = vmatpush.bf16.msra.mxu0 %v1635
    %1814 = vmatpush.bf16.msra.mxu0 %v1634
    %1815 = vmatpush.bf16.msra.mxu0 %v1633
    %1816 = vmatpush.bf16.msra.mxu0 %v1632
    %1817 = vmatpush.bf16.msra.mxu0 %v1631
    %1818 = vmatpush.bf16.msra.mxu0 %v1630
    %1819 = vmatpush.bf16.msra.mxu0 %v1629
    %1820 = vmatpush.bf16.msra.mxu0 %v1628
    %1821 = vmatmul.bf16.gmra.mxu0 %v832
    %v1822 = vpop.f32.mrf.mxu0
    %v1823 = vadd.f32 %v1774, %v1822
    %v1824 = vpop.f32.mrf.mxu0
    %v1825 = vadd.f32 %v1776, %v1824
    %1826 = vmatmul.bf16.gmra.mxu0 %v833
    %v1827 = vpop.f32.mrf.mxu0
    %v1828 = vadd.f32 %v1779, %v1827
    %v1829 = vpop.f32.mrf.mxu0
    %v1830 = vadd.f32 %v1781, %v1829
    %1831 = vmatmul.bf16.gmra.mxu0 %v834
    %v1832 = vpop.f32.mrf.mxu0
    %v1833 = vadd.f32 %v1784, %v1832
    %v1834 = vpop.f32.mrf.mxu0
    %v1835 = vadd.f32 %v1786, %v1834
    %1836 = vmatmul.bf16.gmra.mxu0 %v835
    %v1837 = vpop.f32.mrf.mxu0
    %v1838 = vadd.f32 %v1789, %v1837
    %v1839 = vpop.f32.mrf.mxu0
    %v1840 = vadd.f32 %v1791, %v1839
    %1841 = vmatmul.bf16.gmra.mxu0 %v836
    %v1842 = vpop.f32.mrf.mxu0
    %v1843 = vadd.f32 %v1794, %v1842
    %v1844 = vpop.f32.mrf.mxu0
    %v1845 = vadd.f32 %v1796, %v1844
    %1846 = vmatmul.bf16.gmra.mxu0 %v837
    %v1847 = vpop.f32.mrf.mxu0
    %v1848 = vadd.f32 %v1799, %v1847
    %v1849 = vpop.f32.mrf.mxu0
    %v1850 = vadd.f32 %v1801, %v1849
    %1851 = vmatmul.bf16.gmra.mxu0 %v838
    %v1852 = vpop.f32.mrf.mxu0
    %v1853 = vadd.f32 %v1804, %v1852
    %v1854 = vpop.f32.mrf.mxu0
    %v1855 = vadd.f32 %v1806, %v1854
    %1856 = vmatmul.bf16.gmra.mxu0 %v839
    %v1857 = vpop.f32.mrf.mxu0
    %v1858 = vadd.f32 %v1809, %v1857
    %v1859 = vpop.f32.mrf.mxu0
    %v1860 = vadd.f32 %v1811, %v1859
    %1861 = vdwg.mxu0
    %1862 = vmatpush.bf16.msra.mxu0 %v1643
    %1863 = vmatpush.bf16.msra.mxu0 %v1642
    %1864 = vmatpush.bf16.msra.mxu0 %v1641
    %1865 = vmatpush.bf16.msra.mxu0 %v1640
    %1866 = vmatpush.bf16.msra.mxu0 %v1639
    %1867 = vmatpush.bf16.msra.mxu0 %v1638
    %1868 = vmatpush.bf16.msra.mxu0 %v1637
    %1869 = vmatpush.bf16.msra.mxu0 %v1636
    %1870 = vmatmul.bf16.gmra.mxu0 %v880
    %v1871 = vpop.f32.mrf.mxu0
    %v1872 = vadd.f32 %v1823, %v1871
    %v1873 = vpop.f32.mrf.mxu0
    %v1874 = vadd.f32 %v1825, %v1873
    %1875 = vmatmul.bf16.gmra.mxu0 %v881
    %v1876 = vpop.f32.mrf.mxu0
    %v1877 = vadd.f32 %v1828, %v1876
    %v1878 = vpop.f32.mrf.mxu0
    %v1879 = vadd.f32 %v1830, %v1878
    %1880 = vmatmul.bf16.gmra.mxu0 %v882
    %v1881 = vpop.f32.mrf.mxu0
    %v1882 = vadd.f32 %v1833, %v1881
    %v1883 = vpop.f32.mrf.mxu0
    %v1884 = vadd.f32 %v1835, %v1883
    %1885 = vmatmul.bf16.gmra.mxu0 %v883
    %v1886 = vpop.f32.mrf.mxu0
    %v1887 = vadd.f32 %v1838, %v1886
    %v1888 = vpop.f32.mrf.mxu0
    %v1889 = vadd.f32 %v1840, %v1888
    %1890 = vmatmul.bf16.gmra.mxu0 %v884
    %v1891 = vpop.f32.mrf.mxu0
    %v1892 = vadd.f32 %v1843, %v1891
    %v1893 = vpop.f32.mrf.mxu0
    %v1894 = vadd.f32 %v1845, %v1893
    %1895 = vmatmul.bf16.gmra.mxu0 %v885
    %v1896 = vpop.f32.mrf.mxu0
    %v1897 = vadd.f32 %v1848, %v1896
    %v1898 = vpop.f32.mrf.mxu0
    %v1899 = vadd.f32 %v1850, %v1898
    %1900 = vmatmul.bf16.gmra.mxu0 %v886
    %v1901 = vpop.f32.mrf.mxu0
    %v1902 = vadd.f32 %v1853, %v1901
    %v1903 = vpop.f32.mrf.mxu0
    %v1904 = vadd.f32 %v1855, %v1903
    %1905 = vmatmul.bf16.gmra.mxu0 %v887
    %v1906 = vpop.f32.mrf.mxu0
    %v1907 = vadd.f32 %v1858, %v1906
    %v1908 = vpop.f32.mrf.mxu0
    %v1909 = vadd.f32 %v1860, %v1908
    %1910 = vdwg.mxu0
    %1911 = vmatpush.bf16.msra.mxu0 %v1651
    %1912 = vmatpush.bf16.msra.mxu0 %v1650
    %1913 = vmatpush.bf16.msra.mxu0 %v1649
    %1914 = vmatpush.bf16.msra.mxu0 %v1648
    %1915 = vmatpush.bf16.msra.mxu0 %v1647
    %1916 = vmatpush.bf16.msra.mxu0 %v1646
    %1917 = vmatpush.bf16.msra.mxu0 %v1645
    %1918 = vmatpush.bf16.msra.mxu0 %v1644
    %1919 = vmatmul.bf16.gmra.mxu0 %v928
    %v1920 = vpop.f32.mrf.mxu0
    %v1921 = vadd.f32 %v1872, %v1920
    %v1922 = vpop.f32.mrf.mxu0
    %v1923 = vadd.f32 %v1874, %v1922
    %1924 = vmatmul.bf16.gmra.mxu0 %v929
    %v1925 = vpop.f32.mrf.mxu0
    %v1926 = vadd.f32 %v1877, %v1925
    %v1927 = vpop.f32.mrf.mxu0
    %v1928 = vadd.f32 %v1879, %v1927
    %1929 = vmatmul.bf16.gmra.mxu0 %v930
    %v1930 = vpop.f32.mrf.mxu0
    %v1931 = vadd.f32 %v1882, %v1930
    %v1932 = vpop.f32.mrf.mxu0
    %v1933 = vadd.f32 %v1884, %v1932
    %1934 = vmatmul.bf16.gmra.mxu0 %v931
    %v1935 = vpop.f32.mrf.mxu0
    %v1936 = vadd.f32 %v1887, %v1935
    %v1937 = vpop.f32.mrf.mxu0
    %v1938 = vadd.f32 %v1889, %v1937
    %1939 = vmatmul.bf16.gmra.mxu0 %v932
    %v1940 = vpop.f32.mrf.mxu0
    %v1941 = vadd.f32 %v1892, %v1940
    %v1942 = vpop.f32.mrf.mxu0
    %v1943 = vadd.f32 %v1894, %v1942
    %1944 = vmatmul.bf16.gmra.mxu0 %v933
    %v1945 = vpop.f32.mrf.mxu0
    %v1946 = vadd.f32 %v1897, %v1945
    %v1947 = vpop.f32.mrf.mxu0
    %v1948 = vadd.f32 %v1899, %v1947
    %1949 = vmatmul.bf16.gmra.mxu0 %v934
    %v1950 = vpop.f32.mrf.mxu0
    %v1951 = vadd.f32 %v1902, %v1950
    %v1952 = vpop.f32.mrf.mxu0
    %v1953 = vadd.f32 %v1904, %v1952
    %1954 = vmatmul.bf16.gmra.mxu0 %v935
    %v1955 = vpop.f32.mrf.mxu0
    %v1956 = vadd.f32 %v1907, %v1955
    %v1957 = vpop.f32.mrf.mxu0
    %v1958 = vadd.f32 %v1909, %v1957
    %1959 = vdwg.mxu0
    %1960 = vmatpush.bf16.msra.mxu0 %v1659
    %1961 = vmatpush.bf16.msra.mxu0 %v1658
    %1962 = vmatpush.bf16.msra.mxu0 %v1657
    %1963 = vmatpush.bf16.msra.mxu0 %v1656
    %1964 = vmatpush.bf16.msra.mxu0 %v1655
    %1965 = vmatpush.bf16.msra.mxu0 %v1654
    %1966 = vmatpush.bf16.msra.mxu0 %v1653
    %1967 = vmatpush.bf16.msra.mxu0 %v1652
    %1968 = vmatmul.bf16.gmra.mxu0 %v976
    %v1969 = vpop.f32.mrf.mxu0
    %v1970 = vadd.f32 %v1921, %v1969
    %v1971 = vpop.f32.mrf.mxu0
    %v1972 = vadd.f32 %v1923, %v1971
    %1973 = vmatmul.bf16.gmra.mxu0 %v977
    %v1974 = vpop.f32.mrf.mxu0
    %v1975 = vadd.f32 %v1926, %v1974
    %v1976 = vpop.f32.mrf.mxu0
    %v1977 = vadd.f32 %v1928, %v1976
    %1978 = vmatmul.bf16.gmra.mxu0 %v978
    %v1979 = vpop.f32.mrf.mxu0
    %v1980 = vadd.f32 %v1931, %v1979
    %v1981 = vpop.f32.mrf.mxu0
    %v1982 = vadd.f32 %v1933, %v1981
    %1983 = vmatmul.bf16.gmra.mxu0 %v979
    %v1984 = vpop.f32.mrf.mxu0
    %v1985 = vadd.f32 %v1936, %v1984
    %v1986 = vpop.f32.mrf.mxu0
    %v1987 = vadd.f32 %v1938, %v1986
    %1988 = vmatmul.bf16.gmra.mxu0 %v980
    %v1989 = vpop.f32.mrf.mxu0
    %v1990 = vadd.f32 %v1941, %v1989
    %v1991 = vpop.f32.mrf.mxu0
    %v1992 = vadd.f32 %v1943, %v1991
    %1993 = vmatmul.bf16.gmra.mxu0 %v981
    %v1994 = vpop.f32.mrf.mxu0
    %v1995 = vadd.f32 %v1946, %v1994
    %v1996 = vpop.f32.mrf.mxu0
    %v1997 = vadd.f32 %v1948, %v1996
    %1998 = vmatmul.bf16.gmra.mxu0 %v982
    %v1999 = vpop.f32.mrf.mxu0
    %v2000 = vadd.f32 %v1951, %v1999
    %v2001 = vpop.f32.mrf.mxu0
    %v2002 = vadd.f32 %v1953, %v2001
    %2003 = vmatmul.bf16.gmra.mxu0 %v983
    %v2004 = vpop.f32.mrf.mxu0
    %v2005 = vadd.f32 %v1956, %v2004
    %v2006 = vpop.f32.mrf.mxu0
    %v2007 = vadd.f32 %v1958, %v2006
    %2008 = vdwg.mxu0
    %2009 = vmatpush.bf16.msra.mxu0 %v1667
    %2010 = vmatpush.bf16.msra.mxu0 %v1666
    %2011 = vmatpush.bf16.msra.mxu0 %v1665
    %2012 = vmatpush.bf16.msra.mxu0 %v1664
    %2013 = vmatpush.bf16.msra.mxu0 %v1663
    %2014 = vmatpush.bf16.msra.mxu0 %v1662
    %2015 = vmatpush.bf16.msra.mxu0 %v1661
    %2016 = vmatpush.bf16.msra.mxu0 %v1660
    %2017 = vmatmul.bf16.gmra.mxu0 %v1024
    %v2018 = vpop.f32.mrf.mxu0
    %v2019 = vadd.f32 %v1970, %v2018
    %v2020 = vpop.f32.mrf.mxu0
    %v2021 = vadd.f32 %v1972, %v2020
    %2022 = vmatmul.bf16.gmra.mxu0 %v1025
    %v2023 = vpop.f32.mrf.mxu0
    %v2024 = vadd.f32 %v1975, %v2023
    %v2025 = vpop.f32.mrf.mxu0
    %v2026 = vadd.f32 %v1977, %v2025
    %2027 = vmatmul.bf16.gmra.mxu0 %v1026
    %v2028 = vpop.f32.mrf.mxu0
    %v2029 = vadd.f32 %v1980, %v2028
    %v2030 = vpop.f32.mrf.mxu0
    %v2031 = vadd.f32 %v1982, %v2030
    %2032 = vmatmul.bf16.gmra.mxu0 %v1027
    %v2033 = vpop.f32.mrf.mxu0
    %v2034 = vadd.f32 %v1985, %v2033
    %v2035 = vpop.f32.mrf.mxu0
    %v2036 = vadd.f32 %v1987, %v2035
    %2037 = vmatmul.bf16.gmra.mxu0 %v1028
    %v2038 = vpop.f32.mrf.mxu0
    %v2039 = vadd.f32 %v1990, %v2038
    %v2040 = vpop.f32.mrf.mxu0
    %v2041 = vadd.f32 %v1992, %v2040
    %2042 = vmatmul.bf16.gmra.mxu0 %v1029
    %v2043 = vpop.f32.mrf.mxu0
    %v2044 = vadd.f32 %v1995, %v2043
    %v2045 = vpop.f32.mrf.mxu0
    %v2046 = vadd.f32 %v1997, %v2045
    %2047 = vmatmul.bf16.gmra.mxu0 %v1030
    %v2048 = vpop.f32.mrf.mxu0
    %v2049 = vadd.f32 %v2000, %v2048
    %v2050 = vpop.f32.mrf.mxu0
    %v2051 = vadd.f32 %v2002, %v2050
    %2052 = vmatmul.bf16.gmra.mxu0 %v1031
    %v2053 = vpop.f32.mrf.mxu0
    %v2054 = vadd.f32 %v2005, %v2053
    %v2055 = vpop.f32.mrf.mxu0
    %v2056 = vadd.f32 %v2007, %v2055
    %2057 = vdwg.mxu0
    %2058 = vmatpush.bf16.msra.mxu0 %v1675
    %2059 = vmatpush.bf16.msra.mxu0 %v1674
    %2060 = vmatpush.bf16.msra.mxu0 %v1673
    %2061 = vmatpush.bf16.msra.mxu0 %v1672
    %2062 = vmatpush.bf16.msra.mxu0 %v1671
    %2063 = vmatpush.bf16.msra.mxu0 %v1670
    %2064 = vmatpush.bf16.msra.mxu0 %v1669
    %2065 = vmatpush.bf16.msra.mxu0 %v1668
    %2066 = vmatmul.bf16.gmra.mxu0 %v1072
    %v2067 = vpop.f32.mrf.mxu0
    %v2068 = vadd.f32 %v2019, %v2067
    %v2069 = vpop.f32.mrf.mxu0
    %v2070 = vadd.f32 %v2021, %v2069
    %2071 = vmatmul.bf16.gmra.mxu0 %v1073
    %v2072 = vpop.f32.mrf.mxu0
    %v2073 = vadd.f32 %v2024, %v2072
    %v2074 = vpop.f32.mrf.mxu0
    %v2075 = vadd.f32 %v2026, %v2074
    %2076 = vmatmul.bf16.gmra.mxu0 %v1074
    %v2077 = vpop.f32.mrf.mxu0
    %v2078 = vadd.f32 %v2029, %v2077
    %v2079 = vpop.f32.mrf.mxu0
    %v2080 = vadd.f32 %v2031, %v2079
    %2081 = vmatmul.bf16.gmra.mxu0 %v1075
    %v2082 = vpop.f32.mrf.mxu0
    %v2083 = vadd.f32 %v2034, %v2082
    %v2084 = vpop.f32.mrf.mxu0
    %v2085 = vadd.f32 %v2036, %v2084
    %2086 = vmatmul.bf16.gmra.mxu0 %v1076
    %v2087 = vpop.f32.mrf.mxu0
    %v2088 = vadd.f32 %v2039, %v2087
    %v2089 = vpop.f32.mrf.mxu0
    %v2090 = vadd.f32 %v2041, %v2089
    %2091 = vmatmul.bf16.gmra.mxu0 %v1077
    %v2092 = vpop.f32.mrf.mxu0
    %v2093 = vadd.f32 %v2044, %v2092
    %v2094 = vpop.f32.mrf.mxu0
    %v2095 = vadd.f32 %v2046, %v2094
    %2096 = vmatmul.bf16.gmra.mxu0 %v1078
    %v2097 = vpop.f32.mrf.mxu0
    %v2098 = vadd.f32 %v2049, %v2097
    %v2099 = vpop.f32.mrf.mxu0
    %v2100 = vadd.f32 %v2051, %v2099
    %2101 = vmatmul.bf16.gmra.mxu0 %v1079
    %v2102 = vpop.f32.mrf.mxu0
    %v2103 = vadd.f32 %v2054, %v2102
    %v2104 = vpop.f32.mrf.mxu0
    %v2105 = vadd.f32 %v2056, %v2104
    %2106 = vdwg.mxu0
    %2107 = vmatpush.bf16.msra.mxu0 %v1683
    %2108 = vmatpush.bf16.msra.mxu0 %v1682
    %2109 = vmatpush.bf16.msra.mxu0 %v1681
    %2110 = vmatpush.bf16.msra.mxu0 %v1680
    %2111 = vmatpush.bf16.msra.mxu0 %v1679
    %2112 = vmatpush.bf16.msra.mxu0 %v1678
    %2113 = vmatpush.bf16.msra.mxu0 %v1677
    %2114 = vmatpush.bf16.msra.mxu0 %v1676
    %2115 = vmatmul.bf16.gmra.mxu0 %v1120
    %v2116 = vpop.f32.mrf.mxu0
    %v2117 = vadd.f32 %v2068, %v2116
    %v2118 = vpop.f32.mrf.mxu0
    %v2119 = vadd.f32 %v2070, %v2118
    %2120 = vmatmul.bf16.gmra.mxu0 %v1121
    %v2121 = vpop.f32.mrf.mxu0
    %v2122 = vadd.f32 %v2073, %v2121
    %v2123 = vpop.f32.mrf.mxu0
    %v2124 = vadd.f32 %v2075, %v2123
    %2125 = vmatmul.bf16.gmra.mxu0 %v1122
    %v2126 = vpop.f32.mrf.mxu0
    %v2127 = vadd.f32 %v2078, %v2126
    %v2128 = vpop.f32.mrf.mxu0
    %v2129 = vadd.f32 %v2080, %v2128
    %2130 = vmatmul.bf16.gmra.mxu0 %v1123
    %v2131 = vpop.f32.mrf.mxu0
    %v2132 = vadd.f32 %v2083, %v2131
    %v2133 = vpop.f32.mrf.mxu0
    %v2134 = vadd.f32 %v2085, %v2133
    %2135 = vmatmul.bf16.gmra.mxu0 %v1124
    %v2136 = vpop.f32.mrf.mxu0
    %v2137 = vadd.f32 %v2088, %v2136
    %v2138 = vpop.f32.mrf.mxu0
    %v2139 = vadd.f32 %v2090, %v2138
    %2140 = vmatmul.bf16.gmra.mxu0 %v1125
    %v2141 = vpop.f32.mrf.mxu0
    %v2142 = vadd.f32 %v2093, %v2141
    %v2143 = vpop.f32.mrf.mxu0
    %v2144 = vadd.f32 %v2095, %v2143
    %2145 = vmatmul.bf16.gmra.mxu0 %v1126
    %v2146 = vpop.f32.mrf.mxu0
    %v2147 = vadd.f32 %v2098, %v2146
    %v2148 = vpop.f32.mrf.mxu0
    %v2149 = vadd.f32 %v2100, %v2148
    %2150 = vmatmul.bf16.gmra.mxu0 %v1127
    %v2151 = vpop.f32.mrf.mxu0
    %v2152 = vadd.f32 %v2103, %v2151
    %v2153 = vpop.f32.mrf.mxu0
    %v2154 = vadd.f32 %v2105, %v2153
    %2155 = vdwg.mxu0
    %2156 = vmatpush.bf16.msra.mxu0 %v1691
    %2157 = vmatpush.bf16.msra.mxu0 %v1690
    %2158 = vmatpush.bf16.msra.mxu0 %v1689
    %2159 = vmatpush.bf16.msra.mxu0 %v1688
    %2160 = vmatpush.bf16.msra.mxu0 %v1687
    %2161 = vmatpush.bf16.msra.mxu0 %v1686
    %2162 = vmatpush.bf16.msra.mxu0 %v1685
    %2163 = vmatpush.bf16.msra.mxu0 %v1684
    %2164 = vmatmul.bf16.gmra.mxu0 %v1168
    %v2165 = vpop.f32.mrf.mxu0
    %v2166 = vadd.f32 %v2117, %v2165
    %v2167 = vpop.f32.mrf.mxu0
    %v2168 = vadd.f32 %v2119, %v2167
    %2169 = vmatmul.bf16.gmra.mxu0 %v1169
    %v2170 = vpop.f32.mrf.mxu0
    %v2171 = vadd.f32 %v2122, %v2170
    %v2172 = vpop.f32.mrf.mxu0
    %v2173 = vadd.f32 %v2124, %v2172
    %2174 = vmatmul.bf16.gmra.mxu0 %v1170
    %v2175 = vpop.f32.mrf.mxu0
    %v2176 = vadd.f32 %v2127, %v2175
    %v2177 = vpop.f32.mrf.mxu0
    %v2178 = vadd.f32 %v2129, %v2177
    %2179 = vmatmul.bf16.gmra.mxu0 %v1171
    %v2180 = vpop.f32.mrf.mxu0
    %v2181 = vadd.f32 %v2132, %v2180
    %v2182 = vpop.f32.mrf.mxu0
    %v2183 = vadd.f32 %v2134, %v2182
    %2184 = vmatmul.bf16.gmra.mxu0 %v1172
    %v2185 = vpop.f32.mrf.mxu0
    %v2186 = vadd.f32 %v2137, %v2185
    %v2187 = vpop.f32.mrf.mxu0
    %v2188 = vadd.f32 %v2139, %v2187
    %2189 = vmatmul.bf16.gmra.mxu0 %v1173
    %v2190 = vpop.f32.mrf.mxu0
    %v2191 = vadd.f32 %v2142, %v2190
    %v2192 = vpop.f32.mrf.mxu0
    %v2193 = vadd.f32 %v2144, %v2192
    %2194 = vmatmul.bf16.gmra.mxu0 %v1174
    %v2195 = vpop.f32.mrf.mxu0
    %v2196 = vadd.f32 %v2147, %v2195
    %v2197 = vpop.f32.mrf.mxu0
    %v2198 = vadd.f32 %v2149, %v2197
    %2199 = vmatmul.bf16.gmra.mxu0 %v1175
    %v2200 = vpop.f32.mrf.mxu0
    %v2201 = vadd.f32 %v2152, %v2200
    %v2202 = vpop.f32.mrf.mxu0
    %v2203 = vadd.f32 %v2154, %v2202
    %2204 = vdwg.mxu0
    %v2205 = vmax.f32 %v2166, 0.0
    %v2206 = vmax.f32 %v2168, 0.0
    %v2207 = vmax.f32 %v2171, 0.0
    %v2208 = vmax.f32 %v2173, 0.0
    %v2209 = vmax.f32 %v2176, 0.0
    %v2210 = vmax.f32 %v2178, 0.0
    %v2211 = vmax.f32 %v2181, 0.0
    %v2212 = vmax.f32 %v2183, 0.0
    %v2213 = vmax.f32 %v2186, 0.0
    %v2214 = vmax.f32 %v2188, 0.0
    %v2215 = vmax.f32 %v2191, 0.0
    %v2216 = vmax.f32 %v2193, 0.0
    %v2217 = vmax.f32 %v2196, 0.0
    %v2218 = vmax.f32 %v2198, 0.0
    %v2219 = vmax.f32 %v2201, 0.0
    %v2220 = vmax.f32 %v2203, 0.0
    %2221 = vst [vmem:[%s446 + $0x8] sm:$0xff] %v2205
    %2222 = vst [vmem:[%s446 + $0x20] sm:$0xff] %v2206
    %2223 = vst [vmem:[%s446 + $0x38] sm:$0xff] %v2207
    %2224 = vst [vmem:[%s446 + $0x50] sm:$0xff] %v2208
    %2225 = vst [vmem:[%s446 + $0x68] sm:$0xff] %v2209
    %2226 = vst [vmem:[%s446 + $0x80] sm:$0xff] %v2210
    %2227 = vst [vmem:[%s446 + $0x98] sm:$0xff] %v2211
    %2228 = vst [vmem:[%s446 + $0xb0] sm:$0xff] %v2212
    %2229 = vst [vmem:[%s446 + $0xf8] sm:$0xff] %v2213
    %2230 = vst [vmem:[%s446 + $0x110] sm:$0xff] %v2214
    %2231 = vst [vmem:[%s446 + $0x128] sm:$0xff] %v2215
    %2232 = vst [vmem:[%s446 + $0x140] sm:$0xff] %v2216
    %2233 = vst [vmem:[%s446 + $0x158] sm:$0xff] %v2217
    %2234 = vst [vmem:[%s446 + $0x170] sm:$0xff] %v2218
    %2235 = vst [vmem:[%s446 + $0x188] sm:$0xff] %v2219
    %2236 = vst [vmem:[%s446 + $0x1a0] sm:$0xff] %v2220
    %v2237 = vld [vmem:[#allocation2 + $0x7] sm:$0xff]
    %v2238 = vld [vmem:[#allocation2 + $0x1f] sm:$0xff]
    %v2239 = vld [vmem:[#allocation2 + $0x37] sm:$0xff]
    %v2240 = vld [vmem:[#allocation2 + $0x4f] sm:$0xff]
    %v2241 = vld [vmem:[#allocation2 + $0x67] sm:$0xff]
    %v2242 = vld [vmem:[#allocation2 + $0x7f] sm:$0xff]
    %v2243 = vld [vmem:[#allocation2 + $0x97] sm:$0xff]
    %v2244 = vld [vmem:[#allocation2 + $0xaf] sm:$0xff]
    %v2245 = vld [vmem:[#allocation2 + $0xf7] sm:$0xff]
    %v2246 = vld [vmem:[#allocation2 + $0x10f] sm:$0xff]
    %v2247 = vld [vmem:[#allocation2 + $0x127] sm:$0xff]
    %v2248 = vld [vmem:[#allocation2 + $0x13f] sm:$0xff]
    %v2249 = vld [vmem:[#allocation2 + $0x157] sm:$0xff]
    %v2250 = vld [vmem:[#allocation2 + $0x16f] sm:$0xff]
    %v2251 = vld [vmem:[#allocation2 + $0x187] sm:$0xff]
    %v2252 = vld [vmem:[#allocation2 + $0x19f] sm:$0xff]
    %v2253 = vpack.c.bf16 %v2237, %v2237
    %v2254 = vpack.c.bf16 %v2238, %v2238
    %v2255 = vpack.c.bf16 %v2239, %v2239
    %v2256 = vpack.c.bf16 %v2240, %v2240
    %v2257 = vpack.c.bf16 %v2241, %v2241
    %v2258 = vpack.c.bf16 %v2242, %v2242
    %v2259 = vpack.c.bf16 %v2243, %v2243
    %v2260 = vpack.c.bf16 %v2244, %v2244
    %v2261 = vpack.c.bf16 %v2245, %v2245
    %v2262 = vpack.c.bf16 %v2246, %v2246
    %v2263 = vpack.c.bf16 %v2247, %v2247
    %v2264 = vpack.c.bf16 %v2248, %v2248
    %v2265 = vpack.c.bf16 %v2249, %v2249
    %v2266 = vpack.c.bf16 %v2250, %v2250
    %v2267 = vpack.c.bf16 %v2251, %v2251
    %v2268 = vpack.c.bf16 %v2252, %v2252
    %v2269 = vld [vmem:[#allocation2 + $0x8] sm:$0xff]
    %v2270 = vld [vmem:[#allocation2 + $0x20] sm:$0xff]
    %v2271 = vld [vmem:[#allocation2 + $0x38] sm:$0xff]
    %v2272 = vld [vmem:[#allocation2 + $0x50] sm:$0xff]
    %v2273 = vld [vmem:[#allocation2 + $0x68] sm:$0xff]
    %v2274 = vld [vmem:[#allocation2 + $0x80] sm:$0xff]
    %v2275 = vld [vmem:[#allocation2 + $0x98] sm:$0xff]
    %v2276 = vld [vmem:[#allocation2 + $0xb0] sm:$0xff]
    %v2277 = vld [vmem:[#allocation2 + $0xf8] sm:$0xff]
    %v2278 = vld [vmem:[#allocation2 + $0x110] sm:$0xff]
    %v2279 = vld [vmem:[#allocation2 + $0x128] sm:$0xff]
    %v2280 = vld [vmem:[#allocation2 + $0x140] sm:$0xff]
    %v2281 = vld [vmem:[#allocation2 + $0x158] sm:$0xff]
    %v2282 = vld [vmem:[#allocation2 + $0x170] sm:$0xff]
    %v2283 = vld [vmem:[#allocation2 + $0x188] sm:$0xff]
    %v2284 = vld [vmem:[#allocation2 + $0x1a0] sm:$0xff]
    %v2285 = vpack.c.bf16 %v2269, %v2269
    %v2286 = vpack.c.bf16 %v2270, %v2270
    %v2287 = vpack.c.bf16 %v2271, %v2271
    %v2288 = vpack.c.bf16 %v2272, %v2272
    %v2289 = vpack.c.bf16 %v2273, %v2273
    %v2290 = vpack.c.bf16 %v2274, %v2274
    %v2291 = vpack.c.bf16 %v2275, %v2275
    %v2292 = vpack.c.bf16 %v2276, %v2276
    %v2293 = vpack.c.bf16 %v2277, %v2277
    %v2294 = vpack.c.bf16 %v2278, %v2278
    %v2295 = vpack.c.bf16 %v2279, %v2279
    %v2296 = vpack.c.bf16 %v2280, %v2280
    %v2297 = vpack.c.bf16 %v2281, %v2281
    %v2298 = vpack.c.bf16 %v2282, %v2282
    %v2299 = vpack.c.bf16 %v2283, %v2283
    %v2300 = vpack.c.bf16 %v2284, %v2284
    %v2301 = vld [vmem:[#allocation2 + $0x9] sm:$0xff]
    %v2302 = vld [vmem:[#allocation2 + $0x21] sm:$0xff]
    %v2303 = vld [vmem:[#allocation2 + $0x39] sm:$0xff]
    %v2304 = vld [vmem:[#allocation2 + $0x51] sm:$0xff]
    %v2305 = vld [vmem:[#allocation2 + $0x69] sm:$0xff]
    %v2306 = vld [vmem:[#allocation2 + $0x81] sm:$0xff]
    %v2307 = vld [vmem:[#allocation2 + $0x99] sm:$0xff]
    %v2308 = vld [vmem:[#allocation2 + $0xb1] sm:$0xff]
    %v2309 = vld [vmem:[#allocation2 + $0xf9] sm:$0xff]
    %v2310 = vld [vmem:[#allocation2 + $0x111] sm:$0xff]
    %v2311 = vld [vmem:[#allocation2 + $0x129] sm:$0xff]
    %v2312 = vld [vmem:[#allocation2 + $0x141] sm:$0xff]
    %v2313 = vld [vmem:[#allocation2 + $0x159] sm:$0xff]
    %v2314 = vld [vmem:[#allocation2 + $0x171] sm:$0xff]
    %v2315 = vld [vmem:[#allocation2 + $0x189] sm:$0xff]
    %v2316 = vld [vmem:[#allocation2 + $0x1a1] sm:$0xff]
    %v2317 = vpack.c.bf16 %v2301, %v2301
    %v2318 = vpack.c.bf16 %v2302, %v2302
    %v2319 = vpack.c.bf16 %v2303, %v2303
    %v2320 = vpack.c.bf16 %v2304, %v2304
    %v2321 = vpack.c.bf16 %v2305, %v2305
    %v2322 = vpack.c.bf16 %v2306, %v2306
    %v2323 = vpack.c.bf16 %v2307, %v2307
    %v2324 = vpack.c.bf16 %v2308, %v2308
    %v2325 = vpack.c.bf16 %v2309, %v2309
    %v2326 = vpack.c.bf16 %v2310, %v2310
    %v2327 = vpack.c.bf16 %v2311, %v2311
    %v2328 = vpack.c.bf16 %v2312, %v2312
    %v2329 = vpack.c.bf16 %v2313, %v2313
    %v2330 = vpack.c.bf16 %v2314, %v2314
    %v2331 = vpack.c.bf16 %v2315, %v2315
    %v2332 = vpack.c.bf16 %v2316, %v2316
    %v2333 = vld [vmem:[%s446 + $0x7] sm:$0xff]
    %v2334 = vld [vmem:[%s446 + $0x1f] sm:$0xff]
    %v2335 = vld [vmem:[%s446 + $0x37] sm:$0xff]
    %v2336 = vld [vmem:[%s446 + $0x4f] sm:$0xff]
    %v2337 = vld [vmem:[%s446 + $0x67] sm:$0xff]
    %v2338 = vld [vmem:[%s446 + $0x7f] sm:$0xff]
    %v2339 = vld [vmem:[%s446 + $0x97] sm:$0xff]
    %v2340 = vld [vmem:[%s446 + $0xaf] sm:$0xff]
    %v2341 = vld [vmem:[%s446 + $0xf7] sm:$0xff]
    %v2342 = vld [vmem:[%s446 + $0x10f] sm:$0xff]
    %v2343 = vld [vmem:[%s446 + $0x127] sm:$0xff]
    %v2344 = vld [vmem:[%s446 + $0x13f] sm:$0xff]
    %v2345 = vld [vmem:[%s446 + $0x157] sm:$0xff]
    %v2346 = vld [vmem:[%s446 + $0x16f] sm:$0xff]
    %v2347 = vld [vmem:[%s446 + $0x187] sm:$0xff]
    %v2348 = vld [vmem:[%s446 + $0x19f] sm:$0xff]
    %v2349 = vpack.c.bf16 %v2333, %v2333
    %v2350 = vpack.c.bf16 %v2334, %v2334
    %v2351 = vpack.c.bf16 %v2335, %v2335
    %v2352 = vpack.c.bf16 %v2336, %v2336
    %v2353 = vpack.c.bf16 %v2337, %v2337
    %v2354 = vpack.c.bf16 %v2338, %v2338
    %v2355 = vpack.c.bf16 %v2339, %v2339
    %v2356 = vpack.c.bf16 %v2340, %v2340
    %v2357 = vpack.c.bf16 %v2341, %v2341
    %v2358 = vpack.c.bf16 %v2342, %v2342
    %v2359 = vpack.c.bf16 %v2343, %v2343
    %v2360 = vpack.c.bf16 %v2344, %v2344
    %v2361 = vpack.c.bf16 %v2345, %v2345
    %v2362 = vpack.c.bf16 %v2346, %v2346
    %v2363 = vpack.c.bf16 %v2347, %v2347
    %v2364 = vpack.c.bf16 %v2348, %v2348
    %v2365 = vld [vmem:[%s446 + $0x8] sm:$0xff]
    %v2366 = vld [vmem:[%s446 + $0x20] sm:$0xff]
    %v2367 = vld [vmem:[%s446 + $0x38] sm:$0xff]
    %v2368 = vld [vmem:[%s446 + $0x50] sm:$0xff]
    %v2369 = vld [vmem:[%s446 + $0x68] sm:$0xff]
    %v2370 = vld [vmem:[%s446 + $0x80] sm:$0xff]
    %v2371 = vld [vmem:[%s446 + $0x98] sm:$0xff]
    %v2372 = vld [vmem:[%s446 + $0xb0] sm:$0xff]
    %v2373 = vld [vmem:[%s446 + $0xf8] sm:$0xff]
    %v2374 = vld [vmem:[%s446 + $0x110] sm:$0xff]
    %v2375 = vld [vmem:[%s446 + $0x128] sm:$0xff]
    %v2376 = vld [vmem:[%s446 + $0x140] sm:$0xff]
    %v2377 = vld [vmem:[%s446 + $0x158] sm:$0xff]
    %v2378 = vld [vmem:[%s446 + $0x170] sm:$0xff]
    %v2379 = vld [vmem:[%s446 + $0x188] sm:$0xff]
    %v2380 = vld [vmem:[%s446 + $0x1a0] sm:$0xff]
    %v2381 = vpack.c.bf16 %v2365, %v2365
    %v2382 = vpack.c.bf16 %v2366, %v2366
    %v2383 = vpack.c.bf16 %v2367, %v2367
    %v2384 = vpack.c.bf16 %v2368, %v2368
    %v2385 = vpack.c.bf16 %v2369, %v2369
    %v2386 = vpack.c.bf16 %v2370, %v2370
    %v2387 = vpack.c.bf16 %v2371, %v2371
    %v2388 = vpack.c.bf16 %v2372, %v2372
    %v2389 = vpack.c.bf16 %v2373, %v2373
    %v2390 = vpack.c.bf16 %v2374, %v2374
    %v2391 = vpack.c.bf16 %v2375, %v2375
    %v2392 = vpack.c.bf16 %v2376, %v2376
    %v2393 = vpack.c.bf16 %v2377, %v2377
    %v2394 = vpack.c.bf16 %v2378, %v2378
    %v2395 = vpack.c.bf16 %v2379, %v2379
    %v2396 = vpack.c.bf16 %v2380, %v2380
    %v2397 = vld [vmem:[%s446 + $0x9] sm:$0xff]
    %v2398 = vld [vmem:[%s446 + $0x21] sm:$0xff]
    %v2399 = vld [vmem:[%s446 + $0x39] sm:$0xff]
    %v2400 = vld [vmem:[%s446 + $0x51] sm:$0xff]
    %v2401 = vld [vmem:[%s446 + $0x69] sm:$0xff]
    %v2402 = vld [vmem:[%s446 + $0x81] sm:$0xff]
    %v2403 = vld [vmem:[%s446 + $0x99] sm:$0xff]
    %v2404 = vld [vmem:[%s446 + $0xb1] sm:$0xff]
    %v2405 = vld [vmem:[%s446 + $0xf9] sm:$0xff]
    %v2406 = vld [vmem:[%s446 + $0x111] sm:$0xff]
    %v2407 = vld [vmem:[%s446 + $0x129] sm:$0xff]
    %v2408 = vld [vmem:[%s446 + $0x141] sm:$0xff]
    %v2409 = vld [vmem:[%s446 + $0x159] sm:$0xff]
    %v2410 = vld [vmem:[%s446 + $0x171] sm:$0xff]
    %v2411 = vld [vmem:[%s446 + $0x189] sm:$0xff]
    %v2412 = vld [vmem:[%s446 + $0x1a1] sm:$0xff]
    %v2413 = vpack.c.bf16 %v2397, %v2397
    %v2414 = vpack.c.bf16 %v2398, %v2398
    %v2415 = vpack.c.bf16 %v2399, %v2399
    %v2416 = vpack.c.bf16 %v2400, %v2400
    %v2417 = vpack.c.bf16 %v2401, %v2401
    %v2418 = vpack.c.bf16 %v2402, %v2402
    %v2419 = vpack.c.bf16 %v2403, %v2403
    %v2420 = vpack.c.bf16 %v2404, %v2404
    %v2421 = vpack.c.bf16 %v2405, %v2405
    %v2422 = vpack.c.bf16 %v2406, %v2406
    %v2423 = vpack.c.bf16 %v2407, %v2407
    %v2424 = vpack.c.bf16 %v2408, %v2408
    %v2425 = vpack.c.bf16 %v2409, %v2409
    %v2426 = vpack.c.bf16 %v2410, %v2410
    %v2427 = vpack.c.bf16 %v2411, %v2411
    %v2428 = vpack.c.bf16 %v2412, %v2412
    %v2429 = vld [vmem:[%s655 + $0x7] sm:$0xff]
    %v2430 = vld [vmem:[%s655 + $0x1f] sm:$0xff]
    %v2431 = vld [vmem:[%s655 + $0x37] sm:$0xff]
    %v2432 = vld [vmem:[%s655 + $0x4f] sm:$0xff]
    %v2433 = vld [vmem:[%s655 + $0x67] sm:$0xff]
    %v2434 = vld [vmem:[%s655 + $0x7f] sm:$0xff]
    %v2435 = vld [vmem:[%s655 + $0x97] sm:$0xff]
    %v2436 = vld [vmem:[%s655 + $0xaf] sm:$0xff]
    %v2437 = vld [vmem:[%s655 + $0xf7] sm:$0xff]
    %v2438 = vld [vmem:[%s655 + $0x10f] sm:$0xff]
    %v2439 = vld [vmem:[%s655 + $0x127] sm:$0xff]
    %v2440 = vld [vmem:[%s655 + $0x13f] sm:$0xff]
    %v2441 = vld [vmem:[%s655 + $0x157] sm:$0xff]
    %v2442 = vld [vmem:[%s655 + $0x16f] sm:$0xff]
    %v2443 = vld [vmem:[%s655 + $0x187] sm:$0xff]
    %v2444 = vld [vmem:[%s655 + $0x19f] sm:$0xff]
    %v2445 = vpack.c.bf16 %v2429, %v2429
    %v2446 = vpack.c.bf16 %v2430, %v2430
    %v2447 = vpack.c.bf16 %v2431, %v2431
    %v2448 = vpack.c.bf16 %v2432, %v2432
    %v2449 = vpack.c.bf16 %v2433, %v2433
    %v2450 = vpack.c.bf16 %v2434, %v2434
    %v2451 = vpack.c.bf16 %v2435, %v2435
    %v2452 = vpack.c.bf16 %v2436, %v2436
    %v2453 = vpack.c.bf16 %v2437, %v2437
    %v2454 = vpack.c.bf16 %v2438, %v2438
    %v2455 = vpack.c.bf16 %v2439, %v2439
    %v2456 = vpack.c.bf16 %v2440, %v2440
    %v2457 = vpack.c.bf16 %v2441, %v2441
    %v2458 = vpack.c.bf16 %v2442, %v2442
    %v2459 = vpack.c.bf16 %v2443, %v2443
    %v2460 = vpack.c.bf16 %v2444, %v2444
    %v2461 = vld [vmem:[%s655 + $0x8] sm:$0xff]
    %v2462 = vld [vmem:[%s655 + $0x20] sm:$0xff]
    %v2463 = vld [vmem:[%s655 + $0x38] sm:$0xff]
    %v2464 = vld [vmem:[%s655 + $0x50] sm:$0xff]
    %v2465 = vld [vmem:[%s655 + $0x68] sm:$0xff]
    %v2466 = vld [vmem:[%s655 + $0x80] sm:$0xff]
    %v2467 = vld [vmem:[%s655 + $0x98] sm:$0xff]
    %v2468 = vld [vmem:[%s655 + $0xb0] sm:$0xff]
    %v2469 = vld [vmem:[%s655 + $0xf8] sm:$0xff]
    %v2470 = vld [vmem:[%s655 + $0x110] sm:$0xff]
    %v2471 = vld [vmem:[%s655 + $0x128] sm:$0xff]
    %v2472 = vld [vmem:[%s655 + $0x140] sm:$0xff]
    %v2473 = vld [vmem:[%s655 + $0x158] sm:$0xff]
    %v2474 = vld [vmem:[%s655 + $0x170] sm:$0xff]
    %v2475 = vld [vmem:[%s655 + $0x188] sm:$0xff]
    %v2476 = vld [vmem:[%s655 + $0x1a0] sm:$0xff]
    %v2477 = vpack.c.bf16 %v2461, %v2461
    %v2478 = vpack.c.bf16 %v2462, %v2462
    %v2479 = vpack.c.bf16 %v2463, %v2463
    %v2480 = vpack.c.bf16 %v2464, %v2464
    %v2481 = vpack.c.bf16 %v2465, %v2465
    %v2482 = vpack.c.bf16 %v2466, %v2466
    %v2483 = vpack.c.bf16 %v2467, %v2467
    %v2484 = vpack.c.bf16 %v2468, %v2468
    %v2485 = vpack.c.bf16 %v2469, %v2469
    %v2486 = vpack.c.bf16 %v2470, %v2470
    %v2487 = vpack.c.bf16 %v2471, %v2471
    %v2488 = vpack.c.bf16 %v2472, %v2472
    %v2489 = vpack.c.bf16 %v2473, %v2473
    %v2490 = vpack.c.bf16 %v2474, %v2474
    %v2491 = vpack.c.bf16 %v2475, %v2475
    %v2492 = vpack.c.bf16 %v2476, %v2476
    %v2493 = vld [vmem:[%s655 + $0x9] sm:$0xff]
    %v2494 = vld [vmem:[%s655 + $0x21] sm:$0xff]
    %v2495 = vld [vmem:[%s655 + $0x39] sm:$0xff]
    %v2496 = vld [vmem:[%s655 + $0x51] sm:$0xff]
    %v2497 = vld [vmem:[%s655 + $0x69] sm:$0xff]
    %v2498 = vld [vmem:[%s655 + $0x81] sm:$0xff]
    %v2499 = vld [vmem:[%s655 + $0x99] sm:$0xff]
    %v2500 = vld [vmem:[%s655 + $0xb1] sm:$0xff]
    %v2501 = vld [vmem:[%s655 + $0xf9] sm:$0xff]
    %v2502 = vld [vmem:[%s655 + $0x111] sm:$0xff]
    %v2503 = vld [vmem:[%s655 + $0x129] sm:$0xff]
    %v2504 = vld [vmem:[%s655 + $0x141] sm:$0xff]
    %v2505 = vld [vmem:[%s655 + $0x159] sm:$0xff]
    %v2506 = vld [vmem:[%s655 + $0x171] sm:$0xff]
    %v2507 = vld [vmem:[%s655 + $0x189] sm:$0xff]
    %v2508 = vld [vmem:[%s655 + $0x1a1] sm:$0xff]
    %v2509 = vpack.c.bf16 %v2493, %v2493
    %v2510 = vpack.c.bf16 %v2494, %v2494
    %v2511 = vpack.c.bf16 %v2495, %v2495
    %v2512 = vpack.c.bf16 %v2496, %v2496
    %v2513 = vpack.c.bf16 %v2497, %v2497
    %v2514 = vpack.c.bf16 %v2498, %v2498
    %v2515 = vpack.c.bf16 %v2499, %v2499
    %v2516 = vpack.c.bf16 %v2500, %v2500
    %v2517 = vpack.c.bf16 %v2501, %v2501
    %v2518 = vpack.c.bf16 %v2502, %v2502
    %v2519 = vpack.c.bf16 %v2503, %v2503
    %v2520 = vpack.c.bf16 %v2504, %v2504
    %v2521 = vpack.c.bf16 %v2505, %v2505
    %v2522 = vpack.c.bf16 %v2506, %v2506
    %v2523 = vpack.c.bf16 %v2507, %v2507
    %v2524 = vpack.c.bf16 %v2508, %v2508
    %v2541 = vunpack.c.l.b16 %v2253
    %v2542 = vunpack.c.l.b16 %v2254
    %v2543 = vunpack.c.l.b16 %v2255
    %v2544 = vunpack.c.l.b16 %v2256
    %v2545 = vunpack.c.l.b16 %v2257
    %v2546 = vunpack.c.l.b16 %v2258
    %v2547 = vunpack.c.l.b16 %v2259
    %v2548 = vunpack.c.l.b16 %v2260
    %v2549 = vunpack.c.l.b16 %v2261
    %v2550 = vunpack.c.l.b16 %v2262
    %v2551 = vunpack.c.l.b16 %v2263
    %v2552 = vunpack.c.l.b16 %v2264
    %v2553 = vunpack.c.l.b16 %v2265
    %v2554 = vunpack.c.l.b16 %v2266
    %v2555 = vunpack.c.l.b16 %v2267
    %v2556 = vunpack.c.l.b16 %v2268
    %v2557 = vpack.c.b16 %v2542, %v2541
    %v2558 = vpack.c.b16 %v2544, %v2543
    %v2559 = vpack.c.b16 %v2546, %v2545
    %v2560 = vpack.c.b16 %v2548, %v2547
    %v2561 = vpack.c.b16 %v2550, %v2549
    %v2562 = vpack.c.b16 %v2552, %v2551
    %v2563 = vpack.c.b16 %v2554, %v2553
    %v2564 = vpack.c.b16 %v2556, %v2555
    %v2589 = vunpack.c.l.b16 %v2285
    %v2590 = vunpack.c.l.b16 %v2286
    %v2591 = vunpack.c.l.b16 %v2287
    %v2592 = vunpack.c.l.b16 %v2288
    %v2593 = vunpack.c.l.b16 %v2289
    %v2594 = vunpack.c.l.b16 %v2290
    %v2595 = vunpack.c.l.b16 %v2291
    %v2596 = vunpack.c.l.b16 %v2292
    %v2597 = vunpack.c.l.b16 %v2293
    %v2598 = vunpack.c.l.b16 %v2294
    %v2599 = vunpack.c.l.b16 %v2295
    %v2600 = vunpack.c.l.b16 %v2296
    %v2601 = vunpack.c.l.b16 %v2297
    %v2602 = vunpack.c.l.b16 %v2298
    %v2603 = vunpack.c.l.b16 %v2299
    %v2604 = vunpack.c.l.b16 %v2300
    %v2605 = vpack.c.b16 %v2590, %v2589
    %v2606 = vpack.c.b16 %v2592, %v2591
    %v2607 = vpack.c.b16 %v2594, %v2593
    %v2608 = vpack.c.b16 %v2596, %v2595
    %v2609 = vpack.c.b16 %v2598, %v2597
    %v2610 = vpack.c.b16 %v2600, %v2599
    %v2611 = vpack.c.b16 %v2602, %v2601
    %v2612 = vpack.c.b16 %v2604, %v2603
    %v2637 = vunpack.c.l.b16 %v2317
    %v2638 = vunpack.c.l.b16 %v2318
    %v2639 = vunpack.c.l.b16 %v2319
    %v2640 = vunpack.c.l.b16 %v2320
    %v2641 = vunpack.c.l.b16 %v2321
    %v2642 = vunpack.c.l.b16 %v2322
    %v2643 = vunpack.c.l.b16 %v2323
    %v2644 = vunpack.c.l.b16 %v2324
    %v2645 = vunpack.c.l.b16 %v2325
    %v2646 = vunpack.c.l.b16 %v2326
    %v2647 = vunpack.c.l.b16 %v2327
    %v2648 = vunpack.c.l.b16 %v2328
    %v2649 = vunpack.c.l.b16 %v2329
    %v2650 = vunpack.c.l.b16 %v2330
    %v2651 = vunpack.c.l.b16 %v2331
    %v2652 = vunpack.c.l.b16 %v2332
    %v2653 = vpack.c.b16 %v2638, %v2637
    %v2654 = vpack.c.b16 %v2640, %v2639
    %v2655 = vpack.c.b16 %v2642, %v2641
    %v2656 = vpack.c.b16 %v2644, %v2643
    %v2657 = vpack.c.b16 %v2646, %v2645
    %v2658 = vpack.c.b16 %v2648, %v2647
    %v2659 = vpack.c.b16 %v2650, %v2649
    %v2660 = vpack.c.b16 %v2652, %v2651
    %v2685 = vunpack.c.l.b16 %v2349
    %v2686 = vunpack.c.l.b16 %v2350
    %v2687 = vunpack.c.l.b16 %v2351
    %v2688 = vunpack.c.l.b16 %v2352
    %v2689 = vunpack.c.l.b16 %v2353
    %v2690 = vunpack.c.l.b16 %v2354
    %v2691 = vunpack.c.l.b16 %v2355
    %v2692 = vunpack.c.l.b16 %v2356
    %v2693 = vunpack.c.l.b16 %v2357
    %v2694 = vunpack.c.l.b16 %v2358
    %v2695 = vunpack.c.l.b16 %v2359
    %v2696 = vunpack.c.l.b16 %v2360
    %v2697 = vunpack.c.l.b16 %v2361
    %v2698 = vunpack.c.l.b16 %v2362
    %v2699 = vunpack.c.l.b16 %v2363
    %v2700 = vunpack.c.l.b16 %v2364
    %v2701 = vpack.c.b16 %v2686, %v2685
    %v2702 = vpack.c.b16 %v2688, %v2687
    %v2703 = vpack.c.b16 %v2690, %v2689
    %v2704 = vpack.c.b16 %v2692, %v2691
    %v2705 = vpack.c.b16 %v2694, %v2693
    %v2706 = vpack.c.b16 %v2696, %v2695
    %v2707 = vpack.c.b16 %v2698, %v2697
    %v2708 = vpack.c.b16 %v2700, %v2699
    %v2733 = vunpack.c.l.b16 %v2381
    %v2734 = vunpack.c.l.b16 %v2382
    %v2735 = vunpack.c.l.b16 %v2383
    %v2736 = vunpack.c.l.b16 %v2384
    %v2737 = vunpack.c.l.b16 %v2385
    %v2738 = vunpack.c.l.b16 %v2386
    %v2739 = vunpack.c.l.b16 %v2387
    %v2740 = vunpack.c.l.b16 %v2388
    %v2741 = vunpack.c.l.b16 %v2389
    %v2742 = vunpack.c.l.b16 %v2390
    %v2743 = vunpack.c.l.b16 %v2391
    %v2744 = vunpack.c.l.b16 %v2392
    %v2745 = vunpack.c.l.b16 %v2393
    %v2746 = vunpack.c.l.b16 %v2394
    %v2747 = vunpack.c.l.b16 %v2395
    %v2748 = vunpack.c.l.b16 %v2396
    %v2749 = vpack.c.b16 %v2734, %v2733
    %v2750 = vpack.c.b16 %v2736, %v2735
    %v2751 = vpack.c.b16 %v2738, %v2737
    %v2752 = vpack.c.b16 %v2740, %v2739
    %v2753 = vpack.c.b16 %v2742, %v2741
    %v2754 = vpack.c.b16 %v2744, %v2743
    %v2755 = vpack.c.b16 %v2746, %v2745
    %v2756 = vpack.c.b16 %v2748, %v2747
    %v2781 = vunpack.c.l.b16 %v2413
    %v2782 = vunpack.c.l.b16 %v2414
    %v2783 = vunpack.c.l.b16 %v2415
    %v2784 = vunpack.c.l.b16 %v2416
    %v2785 = vunpack.c.l.b16 %v2417
    %v2786 = vunpack.c.l.b16 %v2418
    %v2787 = vunpack.c.l.b16 %v2419
    %v2788 = vunpack.c.l.b16 %v2420
    %v2789 = vunpack.c.l.b16 %v2421
    %v2790 = vunpack.c.l.b16 %v2422
    %v2791 = vunpack.c.l.b16 %v2423
    %v2792 = vunpack.c.l.b16 %v2424
    %v2793 = vunpack.c.l.b16 %v2425
    %v2794 = vunpack.c.l.b16 %v2426
    %v2795 = vunpack.c.l.b16 %v2427
    %v2796 = vunpack.c.l.b16 %v2428
    %v2797 = vpack.c.b16 %v2782, %v2781
    %v2798 = vpack.c.b16 %v2784, %v2783
    %v2799 = vpack.c.b16 %v2786, %v2785
    %v2800 = vpack.c.b16 %v2788, %v2787
    %v2801 = vpack.c.b16 %v2790, %v2789
    %v2802 = vpack.c.b16 %v2792, %v2791
    %v2803 = vpack.c.b16 %v2794, %v2793
    %v2804 = vpack.c.b16 %v2796, %v2795
    %v2829 = vunpack.c.l.b16 %v2445
    %v2830 = vunpack.c.l.b16 %v2446
    %v2831 = vunpack.c.l.b16 %v2447
    %v2832 = vunpack.c.l.b16 %v2448
    %v2833 = vunpack.c.l.b16 %v2449
    %v2834 = vunpack.c.l.b16 %v2450
    %v2835 = vunpack.c.l.b16 %v2451
    %v2836 = vunpack.c.l.b16 %v2452
    %v2837 = vunpack.c.l.b16 %v2453
    %v2838 = vunpack.c.l.b16 %v2454
    %v2839 = vunpack.c.l.b16 %v2455
    %v2840 = vunpack.c.l.b16 %v2456
    %v2841 = vunpack.c.l.b16 %v2457
    %v2842 = vunpack.c.l.b16 %v2458
    %v2843 = vunpack.c.l.b16 %v2459
    %v2844 = vunpack.c.l.b16 %v2460
    %v2845 = vpack.c.b16 %v2830, %v2829
    %v2846 = vpack.c.b16 %v2832, %v2831
    %v2847 = vpack.c.b16 %v2834, %v2833
    %v2848 = vpack.c.b16 %v2836, %v2835
    %v2849 = vpack.c.b16 %v2838, %v2837
    %v2850 = vpack.c.b16 %v2840, %v2839
    %v2851 = vpack.c.b16 %v2842, %v2841
    %v2852 = vpack.c.b16 %v2844, %v2843
    %v2877 = vunpack.c.l.b16 %v2477
    %v2878 = vunpack.c.l.b16 %v2478
    %v2879 = vunpack.c.l.b16 %v2479
    %v2880 = vunpack.c.l.b16 %v2480
    %v2881 = vunpack.c.l.b16 %v2481
    %v2882 = vunpack.c.l.b16 %v2482
    %v2883 = vunpack.c.l.b16 %v2483
    %v2884 = vunpack.c.l.b16 %v2484
    %v2885 = vunpack.c.l.b16 %v2485
    %v2886 = vunpack.c.l.b16 %v2486
    %v2887 = vunpack.c.l.b16 %v2487
    %v2888 = vunpack.c.l.b16 %v2488
    %v2889 = vunpack.c.l.b16 %v2489
    %v2890 = vunpack.c.l.b16 %v2490
    %v2891 = vunpack.c.l.b16 %v2491
    %v2892 = vunpack.c.l.b16 %v2492
    %v2893 = vpack.c.b16 %v2878, %v2877
    %v2894 = vpack.c.b16 %v2880, %v2879
    %v2895 = vpack.c.b16 %v2882, %v2881
    %v2896 = vpack.c.b16 %v2884, %v2883
    %v2897 = vpack.c.b16 %v2886, %v2885
    %v2898 = vpack.c.b16 %v2888, %v2887
    %v2899 = vpack.c.b16 %v2890, %v2889
    %v2900 = vpack.c.b16 %v2892, %v2891
    %v2925 = vunpack.c.l.b16 %v2509
    %v2926 = vunpack.c.l.b16 %v2510
    %v2927 = vunpack.c.l.b16 %v2511
    %v2928 = vunpack.c.l.b16 %v2512
    %v2929 = vunpack.c.l.b16 %v2513
    %v2930 = vunpack.c.l.b16 %v2514
    %v2931 = vunpack.c.l.b16 %v2515
    %v2932 = vunpack.c.l.b16 %v2516
    %v2933 = vunpack.c.l.b16 %v2517
    %v2934 = vunpack.c.l.b16 %v2518
    %v2935 = vunpack.c.l.b16 %v2519
    %v2936 = vunpack.c.l.b16 %v2520
    %v2937 = vunpack.c.l.b16 %v2521
    %v2938 = vunpack.c.l.b16 %v2522
    %v2939 = vunpack.c.l.b16 %v2523
    %v2940 = vunpack.c.l.b16 %v2524
    %v2941 = vpack.c.b16 %v2926, %v2925
    %v2942 = vpack.c.b16 %v2928, %v2927
    %v2943 = vpack.c.b16 %v2930, %v2929
    %v2944 = vpack.c.b16 %v2932, %v2931
    %v2945 = vpack.c.b16 %v2934, %v2933
    %v2946 = vpack.c.b16 %v2936, %v2935
    %v2947 = vpack.c.b16 %v2938, %v2937
    %v2948 = vpack.c.b16 %v2940, %v2939
    %v2957 = vld [vmem:[#allocation11] sm:$0xf]
    %v2958 = vld [vmem:[#allocation11 + $0x4] sm:$0xf]
    %v2959 = vld [vmem:[#allocation11 + $0x8] sm:$0xf]
    %v2960 = vld [vmem:[#allocation11 + $0xc] sm:$0xf]
    %v2961 = vld [vmem:[#allocation11 + $0x10] sm:$0xf]
    %v2962 = vld [vmem:[#allocation11 + $0x14] sm:$0xf]
    %v2963 = vld [vmem:[#allocation11 + $0x18] sm:$0xf]
    %v2964 = vld [vmem:[#allocation11 + $0x1c] sm:$0xf]
    %v2965 = vld [vmem:[#allocation11 + $0x20] sm:$0xf]
    %v2966 = vld [vmem:[#allocation11 + $0x24] sm:$0xf]
    %v2967 = vld [vmem:[#allocation11 + $0x28] sm:$0xf]
    %v2968 = vld [vmem:[#allocation11 + $0x2c] sm:$0xf]
    %v2969 = vld [vmem:[#allocation11 + $0x30] sm:$0xf]
    %v2970 = vld [vmem:[#allocation11 + $0x34] sm:$0xf]
    %v2971 = vld [vmem:[#allocation11 + $0x38] sm:$0xf]
    %v2972 = vld [vmem:[#allocation11 + $0x3c] sm:$0xf]
    %v2973 = vld [vmem:[#allocation11 + $0x40] sm:$0xf]
    %v2974 = vld [vmem:[#allocation11 + $0x44] sm:$0xf]
    %v2975 = vld [vmem:[#allocation11 + $0x48] sm:$0xf]
    %v2976 = vld [vmem:[#allocation11 + $0x4c] sm:$0xf]
    %v2977 = vld [vmem:[#allocation11 + $0x50] sm:$0xf]
    %v2978 = vld [vmem:[#allocation11 + $0x54] sm:$0xf]
    %v2979 = vld [vmem:[#allocation11 + $0x58] sm:$0xf]
    %v2980 = vld [vmem:[#allocation11 + $0x5c] sm:$0xf]
    %v2981 = vld [vmem:[#allocation11 + $0x60] sm:$0xf]
    %v2982 = vld [vmem:[#allocation11 + $0x64] sm:$0xf]
    %v2983 = vld [vmem:[#allocation11 + $0x68] sm:$0xf]
    %v2984 = vld [vmem:[#allocation11 + $0x6c] sm:$0xf]
    %v2985 = vld [vmem:[#allocation11 + $0x70] sm:$0xf]
    %v2986 = vld [vmem:[#allocation11 + $0x74] sm:$0xf]
    %v2987 = vld [vmem:[#allocation11 + $0x78] sm:$0xf]
    %v2988 = vld [vmem:[#allocation11 + $0x7c] sm:$0xf]
    %v2989 = vld [vmem:[#allocation11 + $0x80] sm:$0xf]
    %v2990 = vld [vmem:[#allocation11 + $0x84] sm:$0xf]
    %v2991 = vld [vmem:[#allocation11 + $0x88] sm:$0xf]
    %v2992 = vld [vmem:[#allocation11 + $0x8c] sm:$0xf]
    %v2993 = vld [vmem:[#allocation11 + $0x90] sm:$0xf]
    %v2994 = vld [vmem:[#allocation11 + $0x94] sm:$0xf]
    %v2995 = vld [vmem:[#allocation11 + $0x98] sm:$0xf]
    %v2996 = vld [vmem:[#allocation11 + $0x9c] sm:$0xf]
    %v2997 = vld [vmem:[#allocation11 + $0xa0] sm:$0xf]
    %v2998 = vld [vmem:[#allocation11 + $0xa4] sm:$0xf]
    %v2999 = vld [vmem:[#allocation11 + $0xa8] sm:$0xf]
    %v3000 = vld [vmem:[#allocation11 + $0xac] sm:$0xf]
    %v3001 = vld [vmem:[#allocation11 + $0xb0] sm:$0xf]
    %v3002 = vld [vmem:[#allocation11 + $0xb4] sm:$0xf]
    %v3003 = vld [vmem:[#allocation11 + $0xb8] sm:$0xf]
    %v3004 = vld [vmem:[#allocation11 + $0xbc] sm:$0xf]
    %v3005 = vld [vmem:[#allocation11 + $0xc0] sm:$0xf]
    %v3006 = vld [vmem:[#allocation11 + $0xc4] sm:$0xf]
    %v3007 = vld [vmem:[#allocation11 + $0xc8] sm:$0xf]
    %v3008 = vld [vmem:[#allocation11 + $0xcc] sm:$0xf]
    %v3009 = vld [vmem:[#allocation11 + $0xd0] sm:$0xf]
    %v3010 = vld [vmem:[#allocation11 + $0xd4] sm:$0xf]
    %v3011 = vld [vmem:[#allocation11 + $0xd8] sm:$0xf]
    %v3012 = vld [vmem:[#allocation11 + $0xdc] sm:$0xf]
    %v3013 = vld [vmem:[#allocation11 + $0xe0] sm:$0xf]
    %v3014 = vld [vmem:[#allocation11 + $0xe4] sm:$0xf]
    %v3015 = vld [vmem:[#allocation11 + $0xe8] sm:$0xf]
    %v3016 = vld [vmem:[#allocation11 + $0xec] sm:$0xf]
    %v3017 = vld [vmem:[#allocation11 + $0xf0] sm:$0xf]
    %v3018 = vld [vmem:[#allocation11 + $0xf4] sm:$0xf]
    %v3019 = vld [vmem:[#allocation11 + $0xf8] sm:$0xf]
    %v3020 = vld [vmem:[#allocation11 + $0xfc] sm:$0xf]
    %v3021 = vld [vmem:[#allocation11 + $0x100] sm:$0xf]
    %v3022 = vld [vmem:[#allocation11 + $0x104] sm:$0xf]
    %v3023 = vld [vmem:[#allocation11 + $0x108] sm:$0xf]
    %v3024 = vld [vmem:[#allocation11 + $0x10c] sm:$0xf]
    %v3025 = vld [vmem:[#allocation11 + $0x110] sm:$0xf]
    %v3026 = vld [vmem:[#allocation11 + $0x114] sm:$0xf]
    %v3027 = vld [vmem:[#allocation11 + $0x118] sm:$0xf]
    %v3028 = vld [vmem:[#allocation11 + $0x11c] sm:$0xf]
    %v3029 = vld [vmem:[#allocation11 + $0x120] sm:$0xf]
    %v3030 = vld [vmem:[#allocation11 + $0x124] sm:$0xf]
    %v3031 = vld [vmem:[#allocation11 + $0x128] sm:$0xf]
    %v3032 = vld [vmem:[#allocation11 + $0x12c] sm:$0xf]
    %v3033 = vld [vmem:[#allocation11 + $0x130] sm:$0xf]
    %v3034 = vld [vmem:[#allocation11 + $0x134] sm:$0xf]
    %v3035 = vld [vmem:[#allocation11 + $0x138] sm:$0xf]
    %v3036 = vld [vmem:[#allocation11 + $0x13c] sm:$0xf]
    %v3037 = vld [vmem:[#allocation11 + $0x140] sm:$0xf]
    %v3038 = vld [vmem:[#allocation11 + $0x144] sm:$0xf]
    %v3039 = vld [vmem:[#allocation11 + $0x148] sm:$0xf]
    %v3040 = vld [vmem:[#allocation11 + $0x14c] sm:$0xf]
    %v3041 = vld [vmem:[#allocation11 + $0x150] sm:$0xf]
    %v3042 = vld [vmem:[#allocation11 + $0x154] sm:$0xf]
    %v3043 = vld [vmem:[#allocation11 + $0x158] sm:$0xf]
    %v3044 = vld [vmem:[#allocation11 + $0x15c] sm:$0xf]
    %v3045 = vld [vmem:[#allocation11 + $0x160] sm:$0xf]
    %v3046 = vld [vmem:[#allocation11 + $0x164] sm:$0xf]
    %v3047 = vld [vmem:[#allocation11 + $0x168] sm:$0xf]
    %v3048 = vld [vmem:[#allocation11 + $0x16c] sm:$0xf]
    %v3049 = vld [vmem:[#allocation11 + $0x170] sm:$0xf]
    %v3050 = vld [vmem:[#allocation11 + $0x174] sm:$0xf]
    %v3051 = vld [vmem:[#allocation11 + $0x178] sm:$0xf]
    %v3052 = vld [vmem:[#allocation11 + $0x17c] sm:$0xf]
    %v3053 = vld [vmem:[#allocation11 + $0x180] sm:$0xf]
    %v3054 = vld [vmem:[#allocation11 + $0x184] sm:$0xf]
    %v3055 = vld [vmem:[#allocation11 + $0x188] sm:$0xf]
    %v3056 = vld [vmem:[#allocation11 + $0x18c] sm:$0xf]
    %v3057 = vld [vmem:[#allocation11 + $0x190] sm:$0xf]
    %v3058 = vld [vmem:[#allocation11 + $0x194] sm:$0xf]
    %v3059 = vld [vmem:[#allocation11 + $0x198] sm:$0xf]
    %v3060 = vld [vmem:[#allocation11 + $0x19c] sm:$0xf]
    %v3061 = vld [vmem:[#allocation11 + $0x1a0] sm:$0xf]
    %v3062 = vld [vmem:[#allocation11 + $0x1a4] sm:$0xf]
    %v3063 = vld [vmem:[#allocation11 + $0x1a8] sm:$0xf]
    %v3064 = vld [vmem:[#allocation11 + $0x1ac] sm:$0xf]
    %v3065 = vld [vmem:[#allocation11 + $0x1b0] sm:$0xf]
    %v3066 = vld [vmem:[#allocation11 + $0x1b4] sm:$0xf]
    %v3067 = vld [vmem:[#allocation11 + $0x1b8] sm:$0xf]
    %v3068 = vld [vmem:[#allocation11 + $0x1bc] sm:$0xf]
    %v3069 = vld [vmem:[#allocation11 + $0x1c0] sm:$0xf]
    %v3070 = vld [vmem:[#allocation11 + $0x1c4] sm:$0xf]
    %v3071 = vld [vmem:[#allocation11 + $0x1c8] sm:$0xf]
    %v3072 = vld [vmem:[#allocation11 + $0x1cc] sm:$0xf]
    %v3073 = vld [vmem:[#allocation11 + $0x1d0] sm:$0xf]
    %v3074 = vld [vmem:[#allocation11 + $0x1d4] sm:$0xf]
    %v3075 = vld [vmem:[#allocation11 + $0x1d8] sm:$0xf]
    %v3076 = vld [vmem:[#allocation11 + $0x1dc] sm:$0xf]
    %v3077 = vld [vmem:[#allocation11 + $0x1e0] sm:$0xf]
    %v3078 = vld [vmem:[#allocation11 + $0x1e4] sm:$0xf]
    %v3079 = vld [vmem:[#allocation11 + $0x1e8] sm:$0xf]
    %v3080 = vld [vmem:[#allocation11 + $0x1ec] sm:$0xf]
    %v3081 = vld [vmem:[#allocation11 + $0x1f0] sm:$0xf]
    %v3082 = vld [vmem:[#allocation11 + $0x1f4] sm:$0xf]
    %v3083 = vld [vmem:[#allocation11 + $0x1f8] sm:$0xf]
    %v3084 = vld [vmem:[#allocation11 + $0x1fc] sm:$0xf]
    %v3085 = vld [vmem:[#allocation11 + $0x200] sm:$0xf]
    %v3086 = vld [vmem:[#allocation11 + $0x204] sm:$0xf]
    %v3087 = vld [vmem:[#allocation11 + $0x208] sm:$0xf]
    %v3088 = vld [vmem:[#allocation11 + $0x20c] sm:$0xf]
    %v3089 = vld [vmem:[#allocation11 + $0x210] sm:$0xf]
    %v3090 = vld [vmem:[#allocation11 + $0x214] sm:$0xf]
    %v3091 = vld [vmem:[#allocation11 + $0x218] sm:$0xf]
    %v3092 = vld [vmem:[#allocation11 + $0x21c] sm:$0xf]
    %v3093 = vld [vmem:[#allocation11 + $0x220] sm:$0xf]
    %v3094 = vld [vmem:[#allocation11 + $0x224] sm:$0xf]
    %v3095 = vld [vmem:[#allocation11 + $0x228] sm:$0xf]
    %v3096 = vld [vmem:[#allocation11 + $0x22c] sm:$0xf]
    %v3097 = vld [vmem:[#allocation11 + $0x230] sm:$0xf]
    %v3098 = vld [vmem:[#allocation11 + $0x234] sm:$0xf]
    %v3099 = vld [vmem:[#allocation11 + $0x238] sm:$0xf]
    %v3100 = vld [vmem:[#allocation11 + $0x23c] sm:$0xf]
    %v3101 = vld [vmem:[%s6] sm:$0x1]
    %v3103 = vperm.slane %v3101, 0
    %v3249 = vunpack.c.l.b16 %v2957
    %v3250 = vunpack.c.l.b16 %v2958
    %v3251 = vunpack.c.l.b16 %v2959
    %v3252 = vunpack.c.l.b16 %v2960
    %v3253 = vunpack.c.l.b16 %v2961
    %v3254 = vunpack.c.l.b16 %v2962
    %v3255 = vunpack.c.l.b16 %v2963
    %v3256 = vunpack.c.l.b16 %v2964
    %v3257 = vunpack.c.l.b16 %v2965
    %v3258 = vunpack.c.l.b16 %v2966
    %v3259 = vunpack.c.l.b16 %v2967
    %v3260 = vunpack.c.l.b16 %v2968
    %v3261 = vunpack.c.l.b16 %v2969
    %v3262 = vunpack.c.l.b16 %v2970
    %v3263 = vunpack.c.l.b16 %v2971
    %v3264 = vunpack.c.l.b16 %v2972
    %v3265 = vunpack.c.l.b16 %v2973
    %v3266 = vunpack.c.l.b16 %v2974
    %v3267 = vunpack.c.l.b16 %v2975
    %v3268 = vunpack.c.l.b16 %v2976
    %v3269 = vunpack.c.l.b16 %v2977
    %v3270 = vunpack.c.l.b16 %v2978
    %v3271 = vunpack.c.l.b16 %v2979
    %v3272 = vunpack.c.l.b16 %v2980
    %v3273 = vunpack.c.l.b16 %v2981
    %v3274 = vunpack.c.l.b16 %v2982
    %v3275 = vunpack.c.l.b16 %v2983
    %v3276 = vunpack.c.l.b16 %v2984
    %v3277 = vunpack.c.l.b16 %v2985
    %v3278 = vunpack.c.l.b16 %v2986
    %v3279 = vunpack.c.l.b16 %v2987
    %v3280 = vunpack.c.l.b16 %v2988
    %v3281 = vunpack.c.l.b16 %v2989
    %v3282 = vunpack.c.l.b16 %v2990
    %v3283 = vunpack.c.l.b16 %v2991
    %v3284 = vunpack.c.l.b16 %v2992
    %v3285 = vunpack.c.l.b16 %v2993
    %v3286 = vunpack.c.l.b16 %v2994
    %v3287 = vunpack.c.l.b16 %v2995
    %v3288 = vunpack.c.l.b16 %v2996
    %v3289 = vunpack.c.l.b16 %v2997
    %v3290 = vunpack.c.l.b16 %v2998
    %v3291 = vunpack.c.l.b16 %v2999
    %v3292 = vunpack.c.l.b16 %v3000
    %v3293 = vunpack.c.l.b16 %v3001
    %v3294 = vunpack.c.l.b16 %v3002
    %v3295 = vunpack.c.l.b16 %v3003
    %v3296 = vunpack.c.l.b16 %v3004
    %v3297 = vunpack.c.l.b16 %v3005
    %v3298 = vunpack.c.l.b16 %v3006
    %v3299 = vunpack.c.l.b16 %v3007
    %v3300 = vunpack.c.l.b16 %v3008
    %v3301 = vunpack.c.l.b16 %v3009
    %v3302 = vunpack.c.l.b16 %v3010
    %v3303 = vunpack.c.l.b16 %v3011
    %v3304 = vunpack.c.l.b16 %v3012
    %v3305 = vunpack.c.l.b16 %v3013
    %v3306 = vunpack.c.l.b16 %v3014
    %v3307 = vunpack.c.l.b16 %v3015
    %v3308 = vunpack.c.l.b16 %v3016
    %v3309 = vunpack.c.l.b16 %v3017
    %v3310 = vunpack.c.l.b16 %v3018
    %v3311 = vunpack.c.l.b16 %v3019
    %v3312 = vunpack.c.l.b16 %v3020
    %v3313 = vunpack.c.l.b16 %v3021
    %v3314 = vunpack.c.l.b16 %v3022
    %v3315 = vunpack.c.l.b16 %v3023
    %v3316 = vunpack.c.l.b16 %v3024
    %v3317 = vunpack.c.l.b16 %v3025
    %v3318 = vunpack.c.l.b16 %v3026
    %v3319 = vunpack.c.l.b16 %v3027
    %v3320 = vunpack.c.l.b16 %v3028
    %v3321 = vunpack.c.l.b16 %v3029
    %v3322 = vunpack.c.l.b16 %v3030
    %v3323 = vunpack.c.l.b16 %v3031
    %v3324 = vunpack.c.l.b16 %v3032
    %v3325 = vunpack.c.l.b16 %v3033
    %v3326 = vunpack.c.l.b16 %v3034
    %v3327 = vunpack.c.l.b16 %v3035
    %v3328 = vunpack.c.l.b16 %v3036
    %v3329 = vunpack.c.l.b16 %v3037
    %v3330 = vunpack.c.l.b16 %v3038
    %v3331 = vunpack.c.l.b16 %v3039
    %v3332 = vunpack.c.l.b16 %v3040
    %v3333 = vunpack.c.l.b16 %v3041
    %v3334 = vunpack.c.l.b16 %v3042
    %v3335 = vunpack.c.l.b16 %v3043
    %v3336 = vunpack.c.l.b16 %v3044
    %v3337 = vunpack.c.l.b16 %v3045
    %v3338 = vunpack.c.l.b16 %v3046
    %v3339 = vunpack.c.l.b16 %v3047
    %v3340 = vunpack.c.l.b16 %v3048
    %v3341 = vunpack.c.l.b16 %v3049
    %v3342 = vunpack.c.l.b16 %v3050
    %v3343 = vunpack.c.l.b16 %v3051
    %v3344 = vunpack.c.l.b16 %v3052
    %v3345 = vunpack.c.l.b16 %v3053
    %v3346 = vunpack.c.l.b16 %v3054
    %v3347 = vunpack.c.l.b16 %v3055
    %v3348 = vunpack.c.l.b16 %v3056
    %v3349 = vunpack.c.l.b16 %v3057
    %v3350 = vunpack.c.l.b16 %v3058
    %v3351 = vunpack.c.l.b16 %v3059
    %v3352 = vunpack.c.l.b16 %v3060
    %v3353 = vunpack.c.l.b16 %v3061
    %v3354 = vunpack.c.l.b16 %v3062
    %v3355 = vunpack.c.l.b16 %v3063
    %v3356 = vunpack.c.l.b16 %v3064
    %v3357 = vunpack.c.l.b16 %v3065
    %v3358 = vunpack.c.l.b16 %v3066
    %v3359 = vunpack.c.l.b16 %v3067
    %v3360 = vunpack.c.l.b16 %v3068
    %v3361 = vunpack.c.l.b16 %v3069
    %v3362 = vunpack.c.l.b16 %v3070
    %v3363 = vunpack.c.l.b16 %v3071
    %v3364 = vunpack.c.l.b16 %v3072
    %v3365 = vunpack.c.l.b16 %v3073
    %v3366 = vunpack.c.l.b16 %v3074
    %v3367 = vunpack.c.l.b16 %v3075
    %v3368 = vunpack.c.l.b16 %v3076
    %v3369 = vunpack.c.l.b16 %v3077
    %v3370 = vunpack.c.l.b16 %v3078
    %v3371 = vunpack.c.l.b16 %v3079
    %v3372 = vunpack.c.l.b16 %v3080
    %v3373 = vunpack.c.l.b16 %v3081
    %v3374 = vunpack.c.l.b16 %v3082
    %v3375 = vunpack.c.l.b16 %v3083
    %v3376 = vunpack.c.l.b16 %v3084
    %v3377 = vunpack.c.l.b16 %v3085
    %v3378 = vunpack.c.l.b16 %v3086
    %v3379 = vunpack.c.l.b16 %v3087
    %v3380 = vunpack.c.l.b16 %v3088
    %v3381 = vunpack.c.l.b16 %v3089
    %v3382 = vunpack.c.l.b16 %v3090
    %v3383 = vunpack.c.l.b16 %v3091
    %v3384 = vunpack.c.l.b16 %v3092
    %v3385 = vunpack.c.l.b16 %v3093
    %v3386 = vunpack.c.l.b16 %v3094
    %v3387 = vunpack.c.l.b16 %v3095
    %v3388 = vunpack.c.l.b16 %v3096
    %v3389 = vunpack.c.l.b16 %v3097
    %v3390 = vunpack.c.l.b16 %v3098
    %v3391 = vunpack.c.l.b16 %v3099
    %v3392 = vunpack.c.l.b16 %v3100
    %v3393 = vpack.c.b16 %v3250, %v3249
    %v3394 = vpack.c.b16 %v3252, %v3251
    %v3395 = vpack.c.b16 %v3254, %v3253
    %v3396 = vpack.c.b16 %v3256, %v3255
    %v3397 = vpack.c.b16 %v3258, %v3257
    %v3398 = vpack.c.b16 %v3260, %v3259
    %v3399 = vpack.c.b16 %v3262, %v3261
    %v3400 = vpack.c.b16 %v3264, %v3263
    %v3401 = vpack.c.b16 %v3266, %v3265
    %v3402 = vpack.c.b16 %v3268, %v3267
    %v3403 = vpack.c.b16 %v3270, %v3269
    %v3404 = vpack.c.b16 %v3272, %v3271
    %v3405 = vpack.c.b16 %v3274, %v3273
    %v3406 = vpack.c.b16 %v3276, %v3275
    %v3407 = vpack.c.b16 %v3278, %v3277
    %v3408 = vpack.c.b16 %v3280, %v3279
    %v3409 = vpack.c.b16 %v3282, %v3281
    %v3410 = vpack.c.b16 %v3284, %v3283
    %v3411 = vpack.c.b16 %v3286, %v3285
    %v3412 = vpack.c.b16 %v3288, %v3287
    %v3413 = vpack.c.b16 %v3290, %v3289
    %v3414 = vpack.c.b16 %v3292, %v3291
    %v3415 = vpack.c.b16 %v3294, %v3293
    %v3416 = vpack.c.b16 %v3296, %v3295
    %v3417 = vpack.c.b16 %v3298, %v3297
    %v3418 = vpack.c.b16 %v3300, %v3299
    %v3419 = vpack.c.b16 %v3302, %v3301
    %v3420 = vpack.c.b16 %v3304, %v3303
    %v3421 = vpack.c.b16 %v3306, %v3305
    %v3422 = vpack.c.b16 %v3308, %v3307
    %v3423 = vpack.c.b16 %v3310, %v3309
    %v3424 = vpack.c.b16 %v3312, %v3311
    %v3425 = vpack.c.b16 %v3314, %v3313
    %v3426 = vpack.c.b16 %v3316, %v3315
    %v3427 = vpack.c.b16 %v3318, %v3317
    %v3428 = vpack.c.b16 %v3320, %v3319
    %v3429 = vpack.c.b16 %v3322, %v3321
    %v3430 = vpack.c.b16 %v3324, %v3323
    %v3431 = vpack.c.b16 %v3326, %v3325
    %v3432 = vpack.c.b16 %v3328, %v3327
    %v3433 = vpack.c.b16 %v3330, %v3329
    %v3434 = vpack.c.b16 %v3332, %v3331
    %v3435 = vpack.c.b16 %v3334, %v3333
    %v3436 = vpack.c.b16 %v3336, %v3335
    %v3437 = vpack.c.b16 %v3338, %v3337
    %v3438 = vpack.c.b16 %v3340, %v3339
    %v3439 = vpack.c.b16 %v3342, %v3341
    %v3440 = vpack.c.b16 %v3344, %v3343
    %v3441 = vpack.c.b16 %v3346, %v3345
    %v3442 = vpack.c.b16 %v3348, %v3347
    %v3443 = vpack.c.b16 %v3350, %v3349
    %v3444 = vpack.c.b16 %v3352, %v3351
    %v3445 = vpack.c.b16 %v3354, %v3353
    %v3446 = vpack.c.b16 %v3356, %v3355
    %v3447 = vpack.c.b16 %v3358, %v3357
    %v3448 = vpack.c.b16 %v3360, %v3359
    %v3449 = vpack.c.b16 %v3362, %v3361
    %v3450 = vpack.c.b16 %v3364, %v3363
    %v3451 = vpack.c.b16 %v3366, %v3365
    %v3452 = vpack.c.b16 %v3368, %v3367
    %v3453 = vpack.c.b16 %v3370, %v3369
    %v3454 = vpack.c.b16 %v3372, %v3371
    %v3455 = vpack.c.b16 %v3374, %v3373
    %v3456 = vpack.c.b16 %v3376, %v3375
    %v3457 = vpack.c.b16 %v3378, %v3377
    %v3458 = vpack.c.b16 %v3380, %v3379
    %v3459 = vpack.c.b16 %v3382, %v3381
    %v3460 = vpack.c.b16 %v3384, %v3383
    %v3461 = vpack.c.b16 %v3386, %v3385
    %v3462 = vpack.c.b16 %v3388, %v3387
    %v3463 = vpack.c.b16 %v3390, %v3389
    %v3464 = vpack.c.b16 %v3392, %v3391
    %3537 = vmatpush.bf16.msra.mxu0 %v3400
    %3538 = vmatpush.bf16.msra.mxu0 %v3399
    %3539 = vmatpush.bf16.msra.mxu0 %v3398
    %3540 = vmatpush.bf16.msra.mxu0 %v3397
    %3541 = vmatpush.bf16.msra.mxu0 %v3396
    %3542 = vmatpush.bf16.msra.mxu0 %v3395
    %3543 = vmatpush.bf16.msra.mxu0 %v3394
    %3544 = vmatpush.bf16.msra.mxu0 %v3393
    %3545 = vmatmul.bf16.gmra.mxu0 %v2557
    %v3546 = vpop.f32.mrf.mxu0
    %v3547 = vadd.f32 %v3103, %v3546
    %v3548 = vpop.f32.mrf.mxu0
    %v3549 = vadd.f32 %v3103, %v3548
    %3550 = vmatmul.bf16.gmra.mxu0 %v2558
    %v3551 = vpop.f32.mrf.mxu0
    %v3552 = vadd.f32 %v3103, %v3551
    %v3553 = vpop.f32.mrf.mxu0
    %v3554 = vadd.f32 %v3103, %v3553
    %3555 = vmatmul.bf16.gmra.mxu0 %v2559
    %v3556 = vpop.f32.mrf.mxu0
    %v3557 = vadd.f32 %v3103, %v3556
    %v3558 = vpop.f32.mrf.mxu0
    %v3559 = vadd.f32 %v3103, %v3558
    %3560 = vmatmul.bf16.gmra.mxu0 %v2560
    %v3561 = vpop.f32.mrf.mxu0
    %v3562 = vadd.f32 %v3103, %v3561
    %v3563 = vpop.f32.mrf.mxu0
    %v3564 = vadd.f32 %v3103, %v3563
    %3565 = vmatmul.bf16.gmra.mxu0 %v2561
    %v3566 = vpop.f32.mrf.mxu0
    %v3567 = vadd.f32 %v3103, %v3566
    %v3568 = vpop.f32.mrf.mxu0
    %v3569 = vadd.f32 %v3103, %v3568
    %3570 = vmatmul.bf16.gmra.mxu0 %v2562
    %v3571 = vpop.f32.mrf.mxu0
    %v3572 = vadd.f32 %v3103, %v3571
    %v3573 = vpop.f32.mrf.mxu0
    %v3574 = vadd.f32 %v3103, %v3573
    %3575 = vmatmul.bf16.gmra.mxu0 %v2563
    %v3576 = vpop.f32.mrf.mxu0
    %v3577 = vadd.f32 %v3103, %v3576
    %v3578 = vpop.f32.mrf.mxu0
    %v3579 = vadd.f32 %v3103, %v3578
    %3580 = vmatmul.bf16.gmra.mxu0 %v2564
    %v3581 = vpop.f32.mrf.mxu0
    %v3582 = vadd.f32 %v3103, %v3581
    %v3583 = vpop.f32.mrf.mxu0
    %v3584 = vadd.f32 %v3103, %v3583
    %3585 = vdwg.mxu0
    %3586 = vmatpush.bf16.msra.mxu0 %v3408
    %3587 = vmatpush.bf16.msra.mxu0 %v3407
    %3588 = vmatpush.bf16.msra.mxu0 %v3406
    %3589 = vmatpush.bf16.msra.mxu0 %v3405
    %3590 = vmatpush.bf16.msra.mxu0 %v3404
    %3591 = vmatpush.bf16.msra.mxu0 %v3403
    %3592 = vmatpush.bf16.msra.mxu0 %v3402
    %3593 = vmatpush.bf16.msra.mxu0 %v3401
    %3594 = vmatmul.bf16.gmra.mxu0 %v2605
    %v3595 = vpop.f32.mrf.mxu0
    %v3596 = vadd.f32 %v3547, %v3595
    %v3597 = vpop.f32.mrf.mxu0
    %v3598 = vadd.f32 %v3549, %v3597
    %3599 = vmatmul.bf16.gmra.mxu0 %v2606
    %v3600 = vpop.f32.mrf.mxu0
    %v3601 = vadd.f32 %v3552, %v3600
    %v3602 = vpop.f32.mrf.mxu0
    %v3603 = vadd.f32 %v3554, %v3602
    %3604 = vmatmul.bf16.gmra.mxu0 %v2607
    %v3605 = vpop.f32.mrf.mxu0
    %v3606 = vadd.f32 %v3557, %v3605
    %v3607 = vpop.f32.mrf.mxu0
    %v3608 = vadd.f32 %v3559, %v3607
    %3609 = vmatmul.bf16.gmra.mxu0 %v2608
    %v3610 = vpop.f32.mrf.mxu0
    %v3611 = vadd.f32 %v3562, %v3610
    %v3612 = vpop.f32.mrf.mxu0
    %v3613 = vadd.f32 %v3564, %v3612
    %3614 = vmatmul.bf16.gmra.mxu0 %v2609
    %v3615 = vpop.f32.mrf.mxu0
    %v3616 = vadd.f32 %v3567, %v3615
    %v3617 = vpop.f32.mrf.mxu0
    %v3618 = vadd.f32 %v3569, %v3617
    %3619 = vmatmul.bf16.gmra.mxu0 %v2610
    %v3620 = vpop.f32.mrf.mxu0
    %v3621 = vadd.f32 %v3572, %v3620
    %v3622 = vpop.f32.mrf.mxu0
    %v3623 = vadd.f32 %v3574, %v3622
    %3624 = vmatmul.bf16.gmra.mxu0 %v2611
    %v3625 = vpop.f32.mrf.mxu0
    %v3626 = vadd.f32 %v3577, %v3625
    %v3627 = vpop.f32.mrf.mxu0
    %v3628 = vadd.f32 %v3579, %v3627
    %3629 = vmatmul.bf16.gmra.mxu0 %v2612
    %v3630 = vpop.f32.mrf.mxu0
    %v3631 = vadd.f32 %v3582, %v3630
    %v3632 = vpop.f32.mrf.mxu0
    %v3633 = vadd.f32 %v3584, %v3632
    %3634 = vdwg.mxu0
    %3635 = vmatpush.bf16.msra.mxu0 %v3416
    %3636 = vmatpush.bf16.msra.mxu0 %v3415
    %3637 = vmatpush.bf16.msra.mxu0 %v3414
    %3638 = vmatpush.bf16.msra.mxu0 %v3413
    %3639 = vmatpush.bf16.msra.mxu0 %v3412
    %3640 = vmatpush.bf16.msra.mxu0 %v3411
    %3641 = vmatpush.bf16.msra.mxu0 %v3410
    %3642 = vmatpush.bf16.msra.mxu0 %v3409
    %3643 = vmatmul.bf16.gmra.mxu0 %v2653
    %v3644 = vpop.f32.mrf.mxu0
    %v3645 = vadd.f32 %v3596, %v3644
    %v3646 = vpop.f32.mrf.mxu0
    %v3647 = vadd.f32 %v3598, %v3646
    %3648 = vmatmul.bf16.gmra.mxu0 %v2654
    %v3649 = vpop.f32.mrf.mxu0
    %v3650 = vadd.f32 %v3601, %v3649
    %v3651 = vpop.f32.mrf.mxu0
    %v3652 = vadd.f32 %v3603, %v3651
    %3653 = vmatmul.bf16.gmra.mxu0 %v2655
    %v3654 = vpop.f32.mrf.mxu0
    %v3655 = vadd.f32 %v3606, %v3654
    %v3656 = vpop.f32.mrf.mxu0
    %v3657 = vadd.f32 %v3608, %v3656
    %3658 = vmatmul.bf16.gmra.mxu0 %v2656
    %v3659 = vpop.f32.mrf.mxu0
    %v3660 = vadd.f32 %v3611, %v3659
    %v3661 = vpop.f32.mrf.mxu0
    %v3662 = vadd.f32 %v3613, %v3661
    %3663 = vmatmul.bf16.gmra.mxu0 %v2657
    %v3664 = vpop.f32.mrf.mxu0
    %v3665 = vadd.f32 %v3616, %v3664
    %v3666 = vpop.f32.mrf.mxu0
    %v3667 = vadd.f32 %v3618, %v3666
    %3668 = vmatmul.bf16.gmra.mxu0 %v2658
    %v3669 = vpop.f32.mrf.mxu0
    %v3670 = vadd.f32 %v3621, %v3669
    %v3671 = vpop.f32.mrf.mxu0
    %v3672 = vadd.f32 %v3623, %v3671
    %3673 = vmatmul.bf16.gmra.mxu0 %v2659
    %v3674 = vpop.f32.mrf.mxu0
    %v3675 = vadd.f32 %v3626, %v3674
    %v3676 = vpop.f32.mrf.mxu0
    %v3677 = vadd.f32 %v3628, %v3676
    %3678 = vmatmul.bf16.gmra.mxu0 %v2660
    %v3679 = vpop.f32.mrf.mxu0
    %v3680 = vadd.f32 %v3631, %v3679
    %v3681 = vpop.f32.mrf.mxu0
    %v3682 = vadd.f32 %v3633, %v3681
    %3683 = vdwg.mxu0
    %3684 = vmatpush.bf16.msra.mxu0 %v3424
    %3685 = vmatpush.bf16.msra.mxu0 %v3423
    %3686 = vmatpush.bf16.msra.mxu0 %v3422
    %3687 = vmatpush.bf16.msra.mxu0 %v3421
    %3688 = vmatpush.bf16.msra.mxu0 %v3420
    %3689 = vmatpush.bf16.msra.mxu0 %v3419
    %3690 = vmatpush.bf16.msra.mxu0 %v3418
    %3691 = vmatpush.bf16.msra.mxu0 %v3417
    %3692 = vmatmul.bf16.gmra.mxu0 %v2701
    %v3693 = vpop.f32.mrf.mxu0
    %v3694 = vadd.f32 %v3645, %v3693
    %v3695 = vpop.f32.mrf.mxu0
    %v3696 = vadd.f32 %v3647, %v3695
    %3697 = vmatmul.bf16.gmra.mxu0 %v2702
    %v3698 = vpop.f32.mrf.mxu0
    %v3699 = vadd.f32 %v3650, %v3698
    %v3700 = vpop.f32.mrf.mxu0
    %v3701 = vadd.f32 %v3652, %v3700
    %3702 = vmatmul.bf16.gmra.mxu0 %v2703
    %v3703 = vpop.f32.mrf.mxu0
    %v3704 = vadd.f32 %v3655, %v3703
    %v3705 = vpop.f32.mrf.mxu0
    %v3706 = vadd.f32 %v3657, %v3705
    %3707 = vmatmul.bf16.gmra.mxu0 %v2704
    %v3708 = vpop.f32.mrf.mxu0
    %v3709 = vadd.f32 %v3660, %v3708
    %v3710 = vpop.f32.mrf.mxu0
    %v3711 = vadd.f32 %v3662, %v3710
    %3712 = vmatmul.bf16.gmra.mxu0 %v2705
    %v3713 = vpop.f32.mrf.mxu0
    %v3714 = vadd.f32 %v3665, %v3713
    %v3715 = vpop.f32.mrf.mxu0
    %v3716 = vadd.f32 %v3667, %v3715
    %3717 = vmatmul.bf16.gmra.mxu0 %v2706
    %v3718 = vpop.f32.mrf.mxu0
    %v3719 = vadd.f32 %v3670, %v3718
    %v3720 = vpop.f32.mrf.mxu0
    %v3721 = vadd.f32 %v3672, %v3720
    %3722 = vmatmul.bf16.gmra.mxu0 %v2707
    %v3723 = vpop.f32.mrf.mxu0
    %v3724 = vadd.f32 %v3675, %v3723
    %v3725 = vpop.f32.mrf.mxu0
    %v3726 = vadd.f32 %v3677, %v3725
    %3727 = vmatmul.bf16.gmra.mxu0 %v2708
    %v3728 = vpop.f32.mrf.mxu0
    %v3729 = vadd.f32 %v3680, %v3728
    %v3730 = vpop.f32.mrf.mxu0
    %v3731 = vadd.f32 %v3682, %v3730
    %3732 = vdwg.mxu0
    %3733 = vmatpush.bf16.msra.mxu0 %v3432
    %3734 = vmatpush.bf16.msra.mxu0 %v3431
    %3735 = vmatpush.bf16.msra.mxu0 %v3430
    %3736 = vmatpush.bf16.msra.mxu0 %v3429
    %3737 = vmatpush.bf16.msra.mxu0 %v3428
    %3738 = vmatpush.bf16.msra.mxu0 %v3427
    %3739 = vmatpush.bf16.msra.mxu0 %v3426
    %3740 = vmatpush.bf16.msra.mxu0 %v3425
    %3741 = vmatmul.bf16.gmra.mxu0 %v2749
    %v3742 = vpop.f32.mrf.mxu0
    %v3743 = vadd.f32 %v3694, %v3742
    %v3744 = vpop.f32.mrf.mxu0
    %v3745 = vadd.f32 %v3696, %v3744
    %3746 = vmatmul.bf16.gmra.mxu0 %v2750
    %v3747 = vpop.f32.mrf.mxu0
    %v3748 = vadd.f32 %v3699, %v3747
    %v3749 = vpop.f32.mrf.mxu0
    %v3750 = vadd.f32 %v3701, %v3749
    %3751 = vmatmul.bf16.gmra.mxu0 %v2751
    %v3752 = vpop.f32.mrf.mxu0
    %v3753 = vadd.f32 %v3704, %v3752
    %v3754 = vpop.f32.mrf.mxu0
    %v3755 = vadd.f32 %v3706, %v3754
    %3756 = vmatmul.bf16.gmra.mxu0 %v2752
    %v3757 = vpop.f32.mrf.mxu0
    %v3758 = vadd.f32 %v3709, %v3757
    %v3759 = vpop.f32.mrf.mxu0
    %v3760 = vadd.f32 %v3711, %v3759
    %3761 = vmatmul.bf16.gmra.mxu0 %v2753
    %v3762 = vpop.f32.mrf.mxu0
    %v3763 = vadd.f32 %v3714, %v3762
    %v3764 = vpop.f32.mrf.mxu0
    %v3765 = vadd.f32 %v3716, %v3764
    %3766 = vmatmul.bf16.gmra.mxu0 %v2754
    %v3767 = vpop.f32.mrf.mxu0
    %v3768 = vadd.f32 %v3719, %v3767
    %v3769 = vpop.f32.mrf.mxu0
    %v3770 = vadd.f32 %v3721, %v3769
    %3771 = vmatmul.bf16.gmra.mxu0 %v2755
    %v3772 = vpop.f32.mrf.mxu0
    %v3773 = vadd.f32 %v3724, %v3772
    %v3774 = vpop.f32.mrf.mxu0
    %v3775 = vadd.f32 %v3726, %v3774
    %3776 = vmatmul.bf16.gmra.mxu0 %v2756
    %v3777 = vpop.f32.mrf.mxu0
    %v3778 = vadd.f32 %v3729, %v3777
    %v3779 = vpop.f32.mrf.mxu0
    %v3780 = vadd.f32 %v3731, %v3779
    %3781 = vdwg.mxu0
    %3782 = vmatpush.bf16.msra.mxu0 %v3440
    %3783 = vmatpush.bf16.msra.mxu0 %v3439
    %3784 = vmatpush.bf16.msra.mxu0 %v3438
    %3785 = vmatpush.bf16.msra.mxu0 %v3437
    %3786 = vmatpush.bf16.msra.mxu0 %v3436
    %3787 = vmatpush.bf16.msra.mxu0 %v3435
    %3788 = vmatpush.bf16.msra.mxu0 %v3434
    %3789 = vmatpush.bf16.msra.mxu0 %v3433
    %3790 = vmatmul.bf16.gmra.mxu0 %v2797
    %v3791 = vpop.f32.mrf.mxu0
    %v3792 = vadd.f32 %v3743, %v3791
    %v3793 = vpop.f32.mrf.mxu0
    %v3794 = vadd.f32 %v3745, %v3793
    %3795 = vmatmul.bf16.gmra.mxu0 %v2798
    %v3796 = vpop.f32.mrf.mxu0
    %v3797 = vadd.f32 %v3748, %v3796
    %v3798 = vpop.f32.mrf.mxu0
    %v3799 = vadd.f32 %v3750, %v3798
    %3800 = vmatmul.bf16.gmra.mxu0 %v2799
    %v3801 = vpop.f32.mrf.mxu0
    %v3802 = vadd.f32 %v3753, %v3801
    %v3803 = vpop.f32.mrf.mxu0
    %v3804 = vadd.f32 %v3755, %v3803
    %3805 = vmatmul.bf16.gmra.mxu0 %v2800
    %v3806 = vpop.f32.mrf.mxu0
    %v3807 = vadd.f32 %v3758, %v3806
    %v3808 = vpop.f32.mrf.mxu0
    %v3809 = vadd.f32 %v3760, %v3808
    %3810 = vmatmul.bf16.gmra.mxu0 %v2801
    %v3811 = vpop.f32.mrf.mxu0
    %v3812 = vadd.f32 %v3763, %v3811
    %v3813 = vpop.f32.mrf.mxu0
    %v3814 = vadd.f32 %v3765, %v3813
    %3815 = vmatmul.bf16.gmra.mxu0 %v2802
    %v3816 = vpop.f32.mrf.mxu0
    %v3817 = vadd.f32 %v3768, %v3816
    %v3818 = vpop.f32.mrf.mxu0
    %v3819 = vadd.f32 %v3770, %v3818
    %3820 = vmatmul.bf16.gmra.mxu0 %v2803
    %v3821 = vpop.f32.mrf.mxu0
    %v3822 = vadd.f32 %v3773, %v3821
    %v3823 = vpop.f32.mrf.mxu0
    %v3824 = vadd.f32 %v3775, %v3823
    %3825 = vmatmul.bf16.gmra.mxu0 %v2804
    %v3826 = vpop.f32.mrf.mxu0
    %v3827 = vadd.f32 %v3778, %v3826
    %v3828 = vpop.f32.mrf.mxu0
    %v3829 = vadd.f32 %v3780, %v3828
    %3830 = vdwg.mxu0
    %3831 = vmatpush.bf16.msra.mxu0 %v3448
    %3832 = vmatpush.bf16.msra.mxu0 %v3447
    %3833 = vmatpush.bf16.msra.mxu0 %v3446
    %3834 = vmatpush.bf16.msra.mxu0 %v3445
    %3835 = vmatpush.bf16.msra.mxu0 %v3444
    %3836 = vmatpush.bf16.msra.mxu0 %v3443
    %3837 = vmatpush.bf16.msra.mxu0 %v3442
    %3838 = vmatpush.bf16.msra.mxu0 %v3441
    %3839 = vmatmul.bf16.gmra.mxu0 %v2845
    %v3840 = vpop.f32.mrf.mxu0
    %v3841 = vadd.f32 %v3792, %v3840
    %v3842 = vpop.f32.mrf.mxu0
    %v3843 = vadd.f32 %v3794, %v3842
    %3844 = vmatmul.bf16.gmra.mxu0 %v2846
    %v3845 = vpop.f32.mrf.mxu0
    %v3846 = vadd.f32 %v3797, %v3845
    %v3847 = vpop.f32.mrf.mxu0
    %v3848 = vadd.f32 %v3799, %v3847
    %3849 = vmatmul.bf16.gmra.mxu0 %v2847
    %v3850 = vpop.f32.mrf.mxu0
    %v3851 = vadd.f32 %v3802, %v3850
    %v3852 = vpop.f32.mrf.mxu0
    %v3853 = vadd.f32 %v3804, %v3852
    %3854 = vmatmul.bf16.gmra.mxu0 %v2848
    %v3855 = vpop.f32.mrf.mxu0
    %v3856 = vadd.f32 %v3807, %v3855
    %v3857 = vpop.f32.mrf.mxu0
    %v3858 = vadd.f32 %v3809, %v3857
    %3859 = vmatmul.bf16.gmra.mxu0 %v2849
    %v3860 = vpop.f32.mrf.mxu0
    %v3861 = vadd.f32 %v3812, %v3860
    %v3862 = vpop.f32.mrf.mxu0
    %v3863 = vadd.f32 %v3814, %v3862
    %3864 = vmatmul.bf16.gmra.mxu0 %v2850
    %v3865 = vpop.f32.mrf.mxu0
    %v3866 = vadd.f32 %v3817, %v3865
    %v3867 = vpop.f32.mrf.mxu0
    %v3868 = vadd.f32 %v3819, %v3867
    %3869 = vmatmul.bf16.gmra.mxu0 %v2851
    %v3870 = vpop.f32.mrf.mxu0
    %v3871 = vadd.f32 %v3822, %v3870
    %v3872 = vpop.f32.mrf.mxu0
    %v3873 = vadd.f32 %v3824, %v3872
    %3874 = vmatmul.bf16.gmra.mxu0 %v2852
    %v3875 = vpop.f32.mrf.mxu0
    %v3876 = vadd.f32 %v3827, %v3875
    %v3877 = vpop.f32.mrf.mxu0
    %v3878 = vadd.f32 %v3829, %v3877
    %3879 = vdwg.mxu0
    %3880 = vmatpush.bf16.msra.mxu0 %v3456
    %3881 = vmatpush.bf16.msra.mxu0 %v3455
    %3882 = vmatpush.bf16.msra.mxu0 %v3454
    %3883 = vmatpush.bf16.msra.mxu0 %v3453
    %3884 = vmatpush.bf16.msra.mxu0 %v3452
    %3885 = vmatpush.bf16.msra.mxu0 %v3451
    %3886 = vmatpush.bf16.msra.mxu0 %v3450
    %3887 = vmatpush.bf16.msra.mxu0 %v3449
    %3888 = vmatmul.bf16.gmra.mxu0 %v2893
    %v3889 = vpop.f32.mrf.mxu0
    %v3890 = vadd.f32 %v3841, %v3889
    %v3891 = vpop.f32.mrf.mxu0
    %v3892 = vadd.f32 %v3843, %v3891
    %3893 = vmatmul.bf16.gmra.mxu0 %v2894
    %v3894 = vpop.f32.mrf.mxu0
    %v3895 = vadd.f32 %v3846, %v3894
    %v3896 = vpop.f32.mrf.mxu0
    %v3897 = vadd.f32 %v3848, %v3896
    %3898 = vmatmul.bf16.gmra.mxu0 %v2895
    %v3899 = vpop.f32.mrf.mxu0
    %v3900 = vadd.f32 %v3851, %v3899
    %v3901 = vpop.f32.mrf.mxu0
    %v3902 = vadd.f32 %v3853, %v3901
    %3903 = vmatmul.bf16.gmra.mxu0 %v2896
    %v3904 = vpop.f32.mrf.mxu0
    %v3905 = vadd.f32 %v3856, %v3904
    %v3906 = vpop.f32.mrf.mxu0
    %v3907 = vadd.f32 %v3858, %v3906
    %3908 = vmatmul.bf16.gmra.mxu0 %v2897
    %v3909 = vpop.f32.mrf.mxu0
    %v3910 = vadd.f32 %v3861, %v3909
    %v3911 = vpop.f32.mrf.mxu0
    %v3912 = vadd.f32 %v3863, %v3911
    %3913 = vmatmul.bf16.gmra.mxu0 %v2898
    %v3914 = vpop.f32.mrf.mxu0
    %v3915 = vadd.f32 %v3866, %v3914
    %v3916 = vpop.f32.mrf.mxu0
    %v3917 = vadd.f32 %v3868, %v3916
    %3918 = vmatmul.bf16.gmra.mxu0 %v2899
    %v3919 = vpop.f32.mrf.mxu0
    %v3920 = vadd.f32 %v3871, %v3919
    %v3921 = vpop.f32.mrf.mxu0
    %v3922 = vadd.f32 %v3873, %v3921
    %3923 = vmatmul.bf16.gmra.mxu0 %v2900
    %v3924 = vpop.f32.mrf.mxu0
    %v3925 = vadd.f32 %v3876, %v3924
    %v3926 = vpop.f32.mrf.mxu0
    %v3927 = vadd.f32 %v3878, %v3926
    %3928 = vdwg.mxu0
    %3929 = vmatpush.bf16.msra.mxu0 %v3464
    %3930 = vmatpush.bf16.msra.mxu0 %v3463
    %3931 = vmatpush.bf16.msra.mxu0 %v3462
    %3932 = vmatpush.bf16.msra.mxu0 %v3461
    %3933 = vmatpush.bf16.msra.mxu0 %v3460
    %3934 = vmatpush.bf16.msra.mxu0 %v3459
    %3935 = vmatpush.bf16.msra.mxu0 %v3458
    %3936 = vmatpush.bf16.msra.mxu0 %v3457
    %3937 = vmatmul.bf16.gmra.mxu0 %v2941
    %v3938 = vpop.f32.mrf.mxu0
    %v3939 = vadd.f32 %v3890, %v3938
    %v3940 = vpop.f32.mrf.mxu0
    %v3941 = vadd.f32 %v3892, %v3940
    %3942 = vmatmul.bf16.gmra.mxu0 %v2942
    %v3943 = vpop.f32.mrf.mxu0
    %v3944 = vadd.f32 %v3895, %v3943
    %v3945 = vpop.f32.mrf.mxu0
    %v3946 = vadd.f32 %v3897, %v3945
    %3947 = vmatmul.bf16.gmra.mxu0 %v2943
    %v3948 = vpop.f32.mrf.mxu0
    %v3949 = vadd.f32 %v3900, %v3948
    %v3950 = vpop.f32.mrf.mxu0
    %v3951 = vadd.f32 %v3902, %v3950
    %3952 = vmatmul.bf16.gmra.mxu0 %v2944
    %v3953 = vpop.f32.mrf.mxu0
    %v3954 = vadd.f32 %v3905, %v3953
    %v3955 = vpop.f32.mrf.mxu0
    %v3956 = vadd.f32 %v3907, %v3955
    %3957 = vmatmul.bf16.gmra.mxu0 %v2945
    %v3958 = vpop.f32.mrf.mxu0
    %v3959 = vadd.f32 %v3910, %v3958
    %v3960 = vpop.f32.mrf.mxu0
    %v3961 = vadd.f32 %v3912, %v3960
    %3962 = vmatmul.bf16.gmra.mxu0 %v2946
    %v3963 = vpop.f32.mrf.mxu0
    %v3964 = vadd.f32 %v3915, %v3963
    %v3965 = vpop.f32.mrf.mxu0
    %v3966 = vadd.f32 %v3917, %v3965
    %3967 = vmatmul.bf16.gmra.mxu0 %v2947
    %v3968 = vpop.f32.mrf.mxu0
    %v3969 = vadd.f32 %v3920, %v3968
    %v3970 = vpop.f32.mrf.mxu0
    %v3971 = vadd.f32 %v3922, %v3970
    %3972 = vmatmul.bf16.gmra.mxu0 %v2948
    %v3973 = vpop.f32.mrf.mxu0
    %v3974 = vadd.f32 %v3925, %v3973
    %v3975 = vpop.f32.mrf.mxu0
    %v3976 = vadd.f32 %v3927, %v3975
    %3977 = vdwg.mxu0
    %v3978 = vmax.f32 %v3939, 0.0
    %v3979 = vmax.f32 %v3941, 0.0
    %v3980 = vmax.f32 %v3944, 0.0
    %v3981 = vmax.f32 %v3946, 0.0
    %v3982 = vmax.f32 %v3949, 0.0
    %v3983 = vmax.f32 %v3951, 0.0
    %v3984 = vmax.f32 %v3954, 0.0
    %v3985 = vmax.f32 %v3956, 0.0
    %v3986 = vmax.f32 %v3959, 0.0
    %v3987 = vmax.f32 %v3961, 0.0
    %v3988 = vmax.f32 %v3964, 0.0
    %v3989 = vmax.f32 %v3966, 0.0
    %v3990 = vmax.f32 %v3969, 0.0
    %v3991 = vmax.f32 %v3971, 0.0
    %v3992 = vmax.f32 %v3974, 0.0
    %v3993 = vmax.f32 %v3976, 0.0
    %3994 = vxpose.xlu0.b32.start [1/16] %v3978, 128
    %3995 = vxpose.xlu0.b32.cont [2/16] %v3979, 128
    %3996 = vxpose.xlu0.b32.cont [3/16] %v3980, 128
    %3997 = vxpose.xlu0.b32.cont [4/16] %v3981, 128
    %3998 = vxpose.xlu0.b32.cont [5/16] %v3982, 128
    %3999 = vxpose.xlu0.b32.cont [6/16] %v3983, 128
    %4000 = vxpose.xlu0.b32.cont [7/16] %v3984, 128
    %4001 = vxpose.xlu0.b32.cont [8/16] %v3985, 128
    %4002 = vxpose.xlu0.b32.cont [9/16] 0.0, 128
    %4003 = vxpose.xlu0.b32.cont [10/16] 0.0, 128
    %4004 = vxpose.xlu0.b32.cont [11/16] 0.0, 128
    %4005 = vxpose.xlu0.b32.cont [12/16] 0.0, 128
    %4006 = vxpose.xlu0.b32.cont [13/16] 0.0, 128
    %4007 = vxpose.xlu0.b32.cont [14/16] 0.0, 128
    %4008 = vxpose.xlu0.b32.cont [15/16] 0.0, 128
    %4009 = vxpose.xlu0.b32.end [16/16] 0.0, 128
    %v4010 = vpop.trf.xlu0
    %v4011 = vpop.trf.xlu0
    %v4012 = vpop.trf.xlu0
    %v4013 = vpop.trf.xlu0
    %v4014 = vpop.trf.xlu0
    %v4015 = vpop.trf.xlu0
    %v4016 = vpop.trf.xlu0
    %v4017 = vpop.trf.xlu0
    %v4018 = vpop.trf.xlu0
    %v4019 = vpop.trf.xlu0
    %v4020 = vpop.trf.xlu0
    %v4021 = vpop.trf.xlu0
    %v4022 = vpop.trf.xlu0
    %v4023 = vpop.trf.xlu0
    %v4024 = vpop.trf.xlu0
    %v4025 = vpop.trf.xlu0
    %4026 = vxpose.xlu0.b32.start [1/16] %v3986, 128
    %4027 = vxpose.xlu0.b32.cont [2/16] %v3987, 128
    %4028 = vxpose.xlu0.b32.cont [3/16] %v3988, 128
    %4029 = vxpose.xlu0.b32.cont [4/16] %v3989, 128
    %4030 = vxpose.xlu0.b32.cont [5/16] %v3990, 128
    %4031 = vxpose.xlu0.b32.cont [6/16] %v3991, 128
    %4032 = vxpose.xlu0.b32.cont [7/16] %v3992, 128
    %4033 = vxpose.xlu0.b32.cont [8/16] %v3993, 128
    %4034 = vxpose.xlu0.b32.cont [9/16] 0.0, 128
    %4035 = vxpose.xlu0.b32.cont [10/16] 0.0, 128
    %4036 = vxpose.xlu0.b32.cont [11/16] 0.0, 128
    %4037 = vxpose.xlu0.b32.cont [12/16] 0.0, 128
    %4038 = vxpose.xlu0.b32.cont [13/16] 0.0, 128
    %4039 = vxpose.xlu0.b32.cont [14/16] 0.0, 128
    %4040 = vxpose.xlu0.b32.cont [15/16] 0.0, 128
    %4041 = vxpose.xlu0.b32.end [16/16] 0.0, 128
    %v4042 = vpop.trf.xlu0
    %v4043 = vpop.trf.xlu0
    %v4044 = vpop.trf.xlu0
    %v4045 = vpop.trf.xlu0
    %v4046 = vpop.trf.xlu0
    %v4047 = vpop.trf.xlu0
    %v4048 = vpop.trf.xlu0
    %v4049 = vpop.trf.xlu0
    %v4050 = vpop.trf.xlu0
    %v4051 = vpop.trf.xlu0
    %v4052 = vpop.trf.xlu0
    %v4053 = vpop.trf.xlu0
    %v4054 = vpop.trf.xlu0
    %v4055 = vpop.trf.xlu0
    %v4056 = vpop.trf.xlu0
    %v4057 = vpop.trf.xlu0
    %4058 = vst.msk [vmem:[#allocation12] sm:$0xff] %vm130, %v4010
    %4059 = vst.msk [vmem:[#allocation12 + $0x8] sm:$0xff] %vm130, %v4011
    %4060 = vst.msk [vmem:[#allocation12 + $0x10] sm:$0xff] %vm130, %v4012
    %4061 = vst.msk [vmem:[#allocation12 + $0x18] sm:$0xff] %vm130, %v4013
    %4062 = vst.msk [vmem:[#allocation12 + $0x20] sm:$0xff] %vm130, %v4042
    %4063 = vst.msk [vmem:[#allocation12 + $0x28] sm:$0xff] %vm130, %v4043
    %4064 = vst.msk [vmem:[#allocation12 + $0x30] sm:$0xff] %vm130, %v4044
    %4065 = vst.msk [vmem:[#allocation12 + $0x38] sm:$0xff] %vm130, %v4045
    // Predicated region
    $region50: #{tpu_custom_call.1} parent=1 // pred_check
      _
    $region51: #{tpu_custom_call.1} parent=1 // pred_check_branch
      %4067 = sbr.rel (0) target = $region53
    $region52: #{tpu_custom_call.1} parent=1 // pred_region
      %4069 = vsyncadd [#allocation5], 0
      %s4070 = sshll.u32 [#allocation12], 4
      %s4071 = int_to_ptr.vmem [resolvable:$true] %s4070
      %s4072 = sshll.u32 %s7, 4
      %s4073 = int_to_ptr.hbm [resolvable:$true] %s4072
      %4078 = dma.vmem_to_hbm [thread:$0]  %s4071, 1024, %s4073, [#allocation5], 128, 128, 8
    $region53: #{tpu_custom_call.1} parent=1 // pred_fallthru
      _
    // Predicated region
    $region54: #{tpu_custom_call.1} parent=1 // pred_check
      _
    $region55: #{tpu_custom_call.1} parent=1 // pred_check_branch
      %4080 = sbr.rel (0) target = $region57
    $region56: #{tpu_custom_call.1} parent=1 // pred_region
      %4082 = dma.done [#allocation5], 1024
    $region57: #{tpu_custom_call.1} parent=1 // pred_fallthru
      _
    %4083 = vsyncpa [#allocation4], 1
    %4084 = vsyncpa [#allocation7], 1
    %4085 = vsyncpa [#allocation10], 1
    %4086 = vsyncpa [#allocation5], 1

</llo_original>
